<compile_context>
chip_gen: v7x
topology: tpu7x:2x2x1
jax: 0.10.0
libtpu: 0.0.40
codegen_flags: <defaults>
</compile_context>

<pallas_src>
import jax
import jax.numpy as jnp
import numpy as np
from jax import lax
from jax.experimental import pallas as pl
from jax.experimental.pallas import tpu as pltpu

LANE = 128


def _round_up(x, m):
    return ((x + m - 1) // m) * m


# --------------------------- static geometry ---------------------------------

def compute_conv_meta(cfg):
    """Per-conv-layer geometry ('valid' conv, floor-mode pooling, sublane-aligned pitch)."""
    h, w = cfg["height"], cfg["width"]
    metas = []
    for k, p in zip(cfg["kernel_sizes"], cfg["pool_kernel"]):
        wi = _round_up(w, 8)          # row pitch (sublane multiple) for the layer's input
        hi = h + 1                    # one extra zero row so shifted row-slices stay in range
        ho, wo = h - k + 1, w - k + 1
        hp, wp = ho // p, wo // p
        assert ho > 0 and wo > 0 and hp > 0 and wp > 0
        metas.append(dict(HI=hi, WI=wi, Ho=ho, Wo=wo, Hp=hp, Wp=wp, k=k, p=p))
        h, w = hp, wp
    return metas, (h, w)


# --------------------------- fused Pallas kernel ------------------------------

def _make_fused_kernel(metas, n_fc, bt):
    n_conv = len(metas)
    n_in = 1 + 2 * n_conv + 2 * n_fc

    def kernel(*refs):
        x_ref = refs[0]                         # (bt*Ho0*WI0, k0*k0*C) im2col patches
        conv_refs = refs[1:1 + 2 * n_conv]
        fc_refs = refs[1 + 2 * n_conv:n_in]
        out_ref = refs[n_in]
        scratch = refs[n_in + 1:]

        op_dtype = conv_refs[0].dtype           # matmul operand dtype (bf16 or f32)
        si = 0
        x_stage = None                          # staged f32 input for layers >= 1
        fc_in = None

        for l, m in enumerate(metas):
            ho, wi, hp, wp = m["Ho"], m["WI"], m["Hp"], m["Wp"]
            k, p = m["k"], m["p"]
            w_ref, bias_ref = conv_refs[2 * l], conv_refs[2 * l + 1]
            rows = ho * wi                      # full-width output rows; invalid cols unused

            if l == 0:
                # conv0 = ONE matmul: patches are pre-built host-side with K = k*k*Cin.
                acc = jnp.dot(x_ref[...], w_ref[...],
                              preferred_element_type=jnp.float32)
            else:
                # shifted-tap conv: k*k matmuls with K = co_prev (>=128), f32 accumulation.
                hi = m["HI"]
                cin = x_stage.shape[-1]
                x3d = x_stage.reshape(bt, hi * wi, cin)        # free (wi % 8 == 0)
                acc = None
                for t in range(k * k):
                    off = (t // k) * wi + (t % k)
                    lhs = x3d[:, off:off + rows, :].reshape(bt * rows, cin)
                    part = jnp.dot(lhs.astype(op_dtype), w_ref[t],
                                   preferred_element_type=jnp.float32)
                    acc = part if acc is None else acc + part

            co = acc.shape[-1]
            y2d = jnp.maximum(acc + bias_ref[...], 0.0)        # bias + ReLU in f32

            # ---- H-direction max pool in registers (reshapes touch outer dims only) ----
            yr = y2d.reshape(bt, ho, wi, co)[:, :hp * p].reshape(bt, hp, p, wi, co)
            yh = yr[:, :, 0:1]
            for q in range(1, p):
                yh = jnp.maximum(yh, yr[:, :, q:q + 1])        # (bt, hp, 1, wi, co)

            if l + 1 < n_conv:
                # W-direction pool via p strided sublane reads of the (p-x smaller) staging buf.
                yh_ref = scratch[si]; si += 1                  # (bt, hp, wi, co) f32
                yh_ref[...] = yh.reshape(bt, hp, wi, co)
                pooled = yh_ref[:, :, pl.ds(0, wp, p), :]
                for dw in range(1, p):
                    pooled = jnp.maximum(pooled, yh_ref[:, :, pl.ds(dw, wp, p), :])

                nxt_ref = scratch[si]; si += 1                 # (bt, HI', WI', co) f32
                # Zero padding strips only once: the interior is overwritten every step and
                # padded positions only feed conv outputs that are discarded downstream.
                @pl.when(pl.program_id(0) == 0)
                def _zero_pad():
                    nxt_ref[...] = jnp.zeros(nxt_ref.shape, nxt_ref.dtype)
                nxt_ref[:, 0:hp, 0:wp, :] = pooled
                x_stage = nxt_ref[...]
            else:
                # Last conv layer: stage flat so each pooled (hh, ww) position is a lane-dense
                # (bt, co) tile obtained with one strided sublane read per pool column.
                yl_ref = scratch[si]; si += 1                  # (bt*hp*wi, co) f32
                yl_ref[...] = yh.reshape(bt * hp * wi, co)
                pieces = []
                for hh in range(hp):
                    for ww in range(wp):
                        base = hh * wi + ww * p
                        piece = yl_ref[pl.ds(base, bt, hp * wi), :]
                        for dw in range(1, p):
                            piece = jnp.maximum(
                                piece, yl_ref[pl.ds(base + dw, bt, hp * wi), :])
                        pieces.append(piece)                   # (bt, co)
                fc_in = pieces[0] if len(pieces) == 1 else jnp.concatenate(pieces, axis=-1)

        # ---- FC head: flatten folded into weight 0 -> single K = Hp*Wp*co_pad matmul ----
        h = jnp.dot(fc_in.astype(op_dtype), fc_refs[0][...],
                    preferred_element_type=jnp.float32) + fc_refs[1][...]
        for li in range(1, n_fc):
            h = jnp.maximum(h, 0.0)
            h = jnp.dot(h.astype(op_dtype), fc_refs[2 * li][...],
                        preferred_element_type=jnp.float32) + fc_refs[2 * li + 1][...]
        out_ref[...] = h.astype(out_ref.dtype)

    return kernel


# --------------------------- one-time parameter prep --------------------------

def prepare_params(params, cfg, metas, op_dtype):
    """Pad/reorder weights once: conv0 -> (k*k*cin, cout_pad); later convs -> taps
    (k*k, cin_pad, cout_pad); FC0 -> (hp*wp*cout_pad, f0_pad) with the torch NCHW flatten
    permutation baked in; lane-padded FC.  Matmul operands cast to op_dtype, biases f32."""
    prepped = {"conv": [], "fc": []}
    co_prev = None
    for l, (w, b) in enumerate(params["conv"]):
        kh, kw, cin, cout = w.shape
        co = _round_up(cout, LANE)
        if l == 0:
            wt = w.reshape(kh * kw * cin, cout)                      # matches im2col order
            wt = jnp.pad(wt, ((0, 0), (0, co - cout))).astype(op_dtype)
        else:
            ci = co_prev
            wt = w.reshape(kh * kw, cin, cout)
            wt = jnp.pad(wt, ((0, 0), (0, ci - cin), (0, co - cout))).astype(op_dtype)
        bp = jnp.pad(b, (0, co - cout)).reshape(1, co).astype(jnp.float32)
        prepped["conv"].append((wt, bp))
        co_prev = co

    hp, wp = metas[-1]["Hp"], metas[-1]["Wp"]
    c_last = params["conv"][-1][0].shape[-1]
    w0, b0 = params["fc"][0]
    k_in, f0_real = w0.shape
    assert k_in == c_last * hp * wp
    f0 = _round_up(f0_real, LANE)
    w0r = w0.reshape(c_last, hp, wp, f0_real).transpose(1, 2, 0, 3)   # (hp, wp, c, f)
    w0r = jnp.pad(w0r, ((0, 0), (0, 0), (0, co_prev - c_last), (0, f0 - f0_real)))
    w0r = w0r.reshape(hp * wp * co_prev, f0).astype(op_dtype)         # pos-major, channel-minor
    b0r = jnp.pad(b0, (0, f0 - f0_real)).reshape(1, f0).astype(jnp.float32)
    prepped["fc"].append((w0r, b0r))

    fin = f0
    for (w, b) in params["fc"][1:]:
        kin, kout = w.shape
        fo = _round_up(kout, LANE)
        prepped["fc"].append(
            (jnp.pad(w, ((0, fin - kin), (0, fo - kout))).astype(op_dtype),
             jnp.pad(b, (0, fo - kout)).reshape(1, fo).astype(jnp.float32)))
        fin = fo
    return prepped


# --------------------------- forward wrapper ----------------------------------

def make_cnn_forward(cfg, metas, b_tile=16):
    assert b_tile % 8 == 0, "batch tile must be a sublane multiple"
    n_conv = len(cfg["conv_architecture"])
    n_fc = len(cfg["architecture"])
    n_classes = cfg["architecture"][-1]
    m0 = metas[0]
    k0 = cfg["kernel_sizes"][0]
    h_in, w_in = cfg["height"], cfg["width"]

    def _const_map(nd):
        return lambda b: (0,) * nd

    @jax.jit
    def forward(x_nchw, prepped):
        n = x_nchw.shape[0]
        op_dtype = prepped["conv"][0][0].dtype
        bt = n if n < b_tile else b_tile
        n_pad = _round_up(n, bt)
        grid = n_pad // bt
        ho0, wi0 = m0["Ho"], m0["WI"]

        # Host-side layout prep (tiny vs. the kernel's work): NCHW -> NHWC, cast to the
        # matmul operand dtype, pad, and build layer-0 im2col patches (fixes K=Cin geometry).
        x = jnp.transpose(x_nchw, (0, 2, 3, 1)).astype(op_dtype)
        x = jnp.pad(x, ((0, n_pad - n), (0, k0 - 1),
                        (0, wi0 + k0 - 1 - w_in), (0, 0)))
        patches = jnp.concatenate(
            [x[:, dh:dh + ho0, dw:dw + wi0, :] for dh in range(k0) for dw in range(k0)],
            axis=-1)
        c_patch = patches.shape[-1]
        patches = patches.reshape(n_pad * ho0 * wi0, c_patch)   # pre-flattened: no in-kernel reshape

        kernel = _make_fused_kernel(metas, n_fc, bt)

        flat = []
        in_specs = [pl.BlockSpec((bt * ho0 * wi0, c_patch), lambda b: (b, 0))]
        for (w, bia) in prepped["conv"] + prepped["fc"]:
            flat += [w, bia]
            in_specs.append(pl.BlockSpec(w.shape, _const_map(w.ndim)))
            in_specs.append(pl.BlockSpec(bia.shape, _const_map(bia.ndim)))

        out_pad = prepped["fc"][-1][1].shape[-1]

        scratch = []
        for l, m in enumerate(metas):
            co = prepped["conv"][l][1].shape[-1]
            if l + 1 < n_conv:
                scratch.append(pltpu.VMEM((bt, m["Hp"], m["WI"], co), jnp.float32))
                m2 = metas[l + 1]
                scratch.append(pltpu.VMEM((bt, m2["HI"], m2["WI"], co), jnp.float32))
            else:
                scratch.append(pltpu.VMEM((bt * m["Hp"] * m["WI"], co), jnp.float32))

        # Advisory cost estimate so XLA schedules the custom call sensibly.
        flops = 2 * n_pad * ho0 * wi0 * c_patch * prepped["conv"][0][0].shape[-1]
        for l in range(1, n_conv):
            m = metas[l]
            w = prepped["conv"][l][0]
            flops += 2 * n_pad * m["Ho"] * m["WI"] * w.shape[0] * w.shape[1] * w.shape[2]
        for (w, _) in prepped["fc"]:
            flops += 2 * n_pad * w.shape[0] * w.shape[1]
        bytes_accessed = patches.size * patches.dtype.itemsize + n_pad * out_pad * 4
        for (w, bia) in prepped["conv"] + prepped["fc"]:
            bytes_accessed += w.size * w.dtype.itemsize + bia.size * bia.dtype.itemsize

        out = pl.pallas_call(
            kernel,
            out_shape=jax.ShapeDtypeStruct((n_pad, out_pad), jnp.float32),
            grid_spec=pltpu.PrefetchScalarGridSpec(
                num_scalar_prefetch=0,
                grid=(grid,),                                   # bt samples per grid step
                in_specs=in_specs,
                out_specs=pl.BlockSpec((bt, out_pad), lambda b: (b, 0)),
                scratch_shapes=scratch),
            compiler_params=pltpu.CompilerParams(
                dimension_semantics=("parallel",),              # shards batch over v7x's 2 TCs
                vmem_limit_bytes=32 * 1024 * 1024),
            cost_estimate=pl.CostEstimate(flops=flops, transcendentals=0,
                                          bytes_accessed=bytes_accessed),
        )(patches, *flat)
        return out[:n, :n_classes]

    return forward
# TODO(synk): predict() (softmax + argmax) not requested; only forward() is implemented.


# --------------------------- pure-JAX reference --------------------------------

def reference_forward(x_nchw, params, pool_kernel):
    x = x_nchw.astype(jnp.float32)
    for (w, b), p in zip(params["conv"], pool_kernel):
        y = lax.conv_general_dilated(
            x, w, window_strides=(1, 1), padding="VALID",
            dimension_numbers=("NCHW", "HWIO", "NCHW"))
        y = jnp.maximum(y + b.reshape(1, -1, 1, 1), 0.0)
        x = lax.reduce_window(y, -jnp.inf, lax.max,
                              (1, 1, p, p), (1, 1, p, p), "VALID")
    h = x.reshape(x.shape[0], -1)
    n_fc = len(params["fc"])
    for i, (w, b) in enumerate(params["fc"]):
        h = h @ w + b
        if i < n_fc - 1:
            h = jnp.maximum(h, 0.0)
    return h


# --------------------------- deterministic init --------------------------------

def init_params(key, cfg, metas):
    params = {"conv": [], "fc": []}
    filters = [cfg["channels"]] + cfg["conv_architecture"]
    for i, k in enumerate(cfg["kernel_sizes"]):
        key, k1, k2 = jax.random.split(key, 3)
        w = 0.1 * jax.random.normal(k1, (k, k, filters[i], filters[i + 1]), jnp.float32)  # HWIO
        b = 0.1 * jax.random.normal(k2, (filters[i + 1],), jnp.float32)
        params["conv"].append((w, b))
    hp, wp = metas[-1]["Hp"], metas[-1]["Wp"]
    dims = [cfg["conv_architecture"][-1] * hp * wp] + cfg["architecture"]
    for i in range(len(cfg["architecture"])):
        key, k1, k2 = jax.random.split(key, 3)
        w = 0.1 * jax.random.normal(k1, (dims[i], dims[i + 1]), jnp.float32)
        b = 0.1 * jax.random.normal(k2, (dims[i + 1],), jnp.float32)
        params["fc"].append((w, b))
    return params


# --------------------------- main ----------------------------------------------

if __name__ == "__main__":
    cfg = dict(channels=4, height=16, width=16,
               conv_architecture=[8, 16], kernel_sizes=[3, 3],
               pool_kernel=[2, 2], architecture=[32, 10])

    key = jax.random.PRNGKey(0)
    kx, kp, kx2 = jax.random.split(key, 3)

    metas, _ = compute_conv_meta(cfg)
    params = init_params(kp, cfg, metas)
    forward = make_cnn_forward(cfg, metas, b_tile=16)

    # Small batch (single grid step), f32 operands: tight check vs. pure-JAX reference.
    x = jax.random.normal(kx, (2, cfg["channels"], cfg["height"], cfg["width"]), jnp.float32)
    ref = reference_forward(x, params, cfg["pool_kernel"])
    prepped32 = prepare_params(params, cfg, metas, jnp.float32)
    out32 = jax.block_until_ready(forward(x, prepped32))
    assert out32.shape == (2, cfg["architecture"][-1])
    np.testing.assert_allclose(np.asarray(out32), np.asarray(ref), rtol=1e-4, atol=1e-4)

    # bf16-operand / f32-accumulate run (MXU-native on all generations): looser check.
    prepped16 = prepare_params(params, cfg, metas, jnp.bfloat16)
    out16 = jax.block_until_ready(forward(x, prepped16))
    assert out16.shape == (2, cfg["architecture"][-1])
    np.testing.assert_allclose(np.asarray(out16), np.asarray(ref), rtol=5e-2, atol=5e-2)

    # Larger batch exercising the multi-step batch-tiled grid + batch padding (40 -> 3x16).
    xb = jax.random.normal(kx2, (40, cfg["channels"], cfg["height"], cfg["width"]), jnp.float32)
    refb = reference_forward(xb, params, cfg["pool_kernel"])
    outb = jax.block_until_ready(forward(xb, prepped32))
    assert outb.shape == (40, cfg["architecture"][-1])
    np.testing.assert_allclose(np.asarray(outb), np.asarray(refb), rtol=1e-4, atol=1e-4)

    print("KERNEL_OK")
</pallas_src>

<mosaic_0001>
module attributes {stable_mosaic.version = 11 : i64} {
  func.func @kernel(%arg0: i32, %arg1: memref<448x36xf32, #tpu.memory_space<vmem>>, %arg2: memref<36x128xf32, #tpu.memory_space<vmem>>, %arg3: memref<1x128xf32, #tpu.memory_space<vmem>>, %arg4: memref<9x128x128xf32, #tpu.memory_space<vmem>>, %arg5: memref<1x128xf32, #tpu.memory_space<vmem>>, %arg6: memref<512x128xf32, #tpu.memory_space<vmem>>, %arg7: memref<1x128xf32, #tpu.memory_space<vmem>>, %arg8: memref<128x128xf32, #tpu.memory_space<vmem>>, %arg9: memref<1x128xf32, #tpu.memory_space<vmem>>, %arg10: memref<2x128xf32, #tpu.memory_space<vmem>>, %arg11: memref<2x7x16x128xf32, #tpu.memory_space<vmem>>, %arg12: memref<2x8x8x128xf32, #tpu.memory_space<vmem>>, %arg13: memref<32x128xf32, #tpu.memory_space<vmem>>) attributes {dimension_semantics = [#tpu.dimension_semantics<parallel>], iteration_bounds = array<i64: 1>, scalar_prefetch = 0 : i64, scratch_operands = 3 : i64, tpu.core_type = #tpu.core_type<tc>, window_params = [{transform_indices = @transform_0, window_bounds = array<i64: 448, 36>}, {pipeline_mode = #tpu.pipeline_mode<synchronous>, transform_indices = @transform_1, window_bounds = array<i64: 36, 128>}, {pipeline_mode = #tpu.pipeline_mode<synchronous>, transform_indices = @transform_2, window_bounds = array<i64: 1, 128>}, {pipeline_mode = #tpu.pipeline_mode<synchronous>, transform_indices = @transform_3, window_bounds = array<i64: 9, 128, 128>}, {pipeline_mode = #tpu.pipeline_mode<synchronous>, transform_indices = @transform_4, window_bounds = array<i64: 1, 128>}, {pipeline_mode = #tpu.pipeline_mode<synchronous>, transform_indices = @transform_5, window_bounds = array<i64: 512, 128>}, {pipeline_mode = #tpu.pipeline_mode<synchronous>, transform_indices = @transform_6, window_bounds = array<i64: 1, 128>}, {pipeline_mode = #tpu.pipeline_mode<synchronous>, transform_indices = @transform_7, window_bounds = array<i64: 128, 128>}, {pipeline_mode = #tpu.pipeline_mode<synchronous>, transform_indices = @transform_8, window_bounds = array<i64: 1, 128>}, {transform_indices = @transform_9, window_bounds = array<i64: 2, 128>}]} {
    %c0 = arith.constant 0 : index
    %c0_0 = arith.constant 0 : index
    %0 = vector.load %arg1[%c0, %c0_0] : memref<448x36xf32, #tpu.memory_space<vmem>>, vector<448x36xf32>
    %c0_1 = arith.constant 0 : index
    %c0_2 = arith.constant 0 : index
    %1 = vector.load %arg2[%c0_1, %c0_2] : memref<36x128xf32, #tpu.memory_space<vmem>>, vector<36x128xf32>
    %cst = arith.constant dense<0.000000e+00> : vector<448x128xf32>
    %2 = tpu.matmul %0, %1, %cst {dimension_numbers = #tpu.dot_dimension_numbers<[1], [0], [0], [1], [0, 0, 1, 1], [], []>} : vector<448x36xf32>, vector<36x128xf32>, vector<448x128xf32> -> vector<448x128xf32>
    %c0_3 = arith.constant 0 : index
    %c0_4 = arith.constant 0 : index
    %3 = vector.load %arg3[%c0_3, %c0_4] : memref<1x128xf32, #tpu.memory_space<vmem>>, vector<1x128xf32>
    %4 = vector.broadcast %3 : vector<1x128xf32> to vector<448x128xf32>
    %5 = arith.addf %2, %4 : vector<448x128xf32>
    %cst_5 = arith.constant 0.000000e+00 : f32
    %6 = vector.broadcast %cst_5 : f32 to vector<448x128xf32>
    %7 = arith.maximumf %5, %6 : vector<448x128xf32>
    %8 = vector.shape_cast %7 : vector<448x128xf32> to vector<2x14x16x128xf32>
    %9 = vector.shape_cast %8 : vector<2x14x16x128xf32> to vector<2x7x2x16x128xf32>
    %10 = vector.extract_strided_slice %9 {offsets = [0, 0, 0, 0, 0], sizes = [2, 7, 1, 16, 128], strides = [1, 1, 1, 1, 1]} : vector<2x7x2x16x128xf32> to vector<2x7x1x16x128xf32>
    %11 = vector.extract_strided_slice %9 {offsets = [0, 0, 1, 0, 0], sizes = [2, 7, 1, 16, 128], strides = [1, 1, 1, 1, 1]} : vector<2x7x2x16x128xf32> to vector<2x7x1x16x128xf32>
    %12 = arith.maximumf %10, %11 : vector<2x7x1x16x128xf32>
    %13 = vector.shape_cast %12 : vector<2x7x1x16x128xf32> to vector<2x7x16x128xf32>
    %c0_6 = arith.constant 0 : index
    %c0_7 = arith.constant 0 : index
    %c0_8 = arith.constant 0 : index
    %c0_9 = arith.constant 0 : index
    %14 = vector.load %arg11[%c0_6, %c0_7, %c0_8, %c0_9] : memref<2x7x16x128xf32, #tpu.memory_space<vmem>>, vector<2x7x16x128xf32>
    tpu.vector_store %arg11[%c0_6, %c0_7, %c0_8, %c0_9], %13 {strides = array<i32>} : memref<2x7x16x128xf32, #tpu.memory_space<vmem>>, vector<2x7x16x128xf32>,
    %c0_10 = arith.constant 0 : index
    %c0_11 = arith.constant 0 : index
    %c0_12 = arith.constant 0 : index
    %c0_13 = arith.constant 0 : index
    %15 = tpu.strided_load %arg11[%c0_10, %c0_11, %c0_12, %c0_13] {strides = array<i32: 1, 1, 2, 1>} : memref<2x7x16x128xf32, #tpu.memory_space<vmem>>, vector<2x7x7x128xf32>
    %c0_14 = arith.constant 0 : index
    %c0_15 = arith.constant 0 : index
    %c1 = arith.constant 1 : index
    %c0_16 = arith.constant 0 : index
    %16 = tpu.strided_load %arg11[%c0_14, %c0_15, %c1, %c0_16] {strides = array<i32: 1, 1, 2, 1>} : memref<2x7x16x128xf32, #tpu.memory_space<vmem>>, vector<2x7x7x128xf32>
    %17 = arith.maximumf %15, %16 : vector<2x7x7x128xf32>
    %c0_i32 = arith.constant 0 : i32
    %18 = arith.cmpi eq, %arg0, %c0_i32 : i32
    %19 = arith.extui %18 : i1 to i32
    %c0_i32_17 = arith.constant 0 : i32
    %20 = arith.cmpi ne, %19, %c0_i32_17 : i32
    scf.if %20 {
      %cst_86 = arith.constant 0.000000e+00 : f32
      %116 = vector.broadcast %cst_86 : f32 to vector<2x8x8x128xf32>
      %c0_87 = arith.constant 0 : index
      %c0_88 = arith.constant 0 : index
      %c0_89 = arith.constant 0 : index
      %c0_90 = arith.constant 0 : index
      %117 = vector.load %arg12[%c0_87, %c0_88, %c0_89, %c0_90] : memref<2x8x8x128xf32, #tpu.memory_space<vmem>>, vector<2x8x8x128xf32>
      tpu.vector_store %arg12[%c0_87, %c0_88, %c0_89, %c0_90], %116 {strides = array<i32>} : memref<2x8x8x128xf32, #tpu.memory_space<vmem>>, vector<2x8x8x128xf32>,
    } else {
    }
    %c0_18 = arith.constant 0 : index
    %c0_19 = arith.constant 0 : index
    %c0_20 = arith.constant 0 : index
    %c0_21 = arith.constant 0 : index
    %21 = vector.load %arg12[%c0_18, %c0_19, %c0_20, %c0_21] : memref<2x8x8x128xf32, #tpu.memory_space<vmem>>, vector<2x7x7x128xf32>
    tpu.vector_store %arg12[%c0_18, %c0_19, %c0_20, %c0_21], %17 {strides = array<i32>} : memref<2x8x8x128xf32, #tpu.memory_space<vmem>>, vector<2x7x7x128xf32>,
    %c0_22 = arith.constant 0 : index
    %c0_23 = arith.constant 0 : index
    %c0_24 = arith.constant 0 : index
    %c0_25 = arith.constant 0 : index
    %22 = vector.load %arg12[%c0_22, %c0_23, %c0_24, %c0_25] : memref<2x8x8x128xf32, #tpu.memory_space<vmem>>, vector<2x8x8x128xf32>
    %23 = vector.shape_cast %22 : vector<2x8x8x128xf32> to vector<2x64x128xf32>
    %24 = vector.extract_strided_slice %23 {offsets = [0, 0, 0], sizes = [2, 40, 128], strides = [1, 1, 1]} : vector<2x64x128xf32> to vector<2x40x128xf32>
    %25 = vector.shape_cast %24 : vector<2x40x128xf32> to vector<80x128xf32>
    %c0_26 = arith.constant 0 : index
    %c0_27 = arith.constant 0 : index
    %c0_28 = arith.constant 0 : index
    %26 = vector.load %arg4[%c0_26, %c0_27, %c0_28] : memref<9x128x128xf32, #tpu.memory_space<vmem>>, vector<1x128x128xf32>
    %27 = vector.shape_cast %26 : vector<1x128x128xf32> to vector<128x128xf32>
    %cst_29 = arith.constant dense<0.000000e+00> : vector<80x128xf32>
    %28 = tpu.matmul %25, %27, %cst_29 {dimension_numbers = #tpu.dot_dimension_numbers<[1], [0], [0], [1], [0, 0, 1, 1], [], []>} : vector<80x128xf32>, vector<128x128xf32>, vector<80x128xf32> -> vector<80x128xf32>
    %29 = vector.extract_strided_slice %23 {offsets = [0, 1, 0], sizes = [2, 40, 128], strides = [1, 1, 1]} : vector<2x64x128xf32> to vector<2x40x128xf32>
    %30 = vector.shape_cast %29 : vector<2x40x128xf32> to vector<80x128xf32>
    %c1_30 = arith.constant 1 : index
    %c0_31 = arith.constant 0 : index
    %c0_32 = arith.constant 0 : index
    %31 = vector.load %arg4[%c1_30, %c0_31, %c0_32] : memref<9x128x128xf32, #tpu.memory_space<vmem>>, vector<1x128x128xf32>
    %32 = vector.shape_cast %31 : vector<1x128x128xf32> to vector<128x128xf32>
    %cst_33 = arith.constant dense<0.000000e+00> : vector<80x128xf32>
    %33 = tpu.matmul %30, %32, %cst_33 {dimension_numbers = #tpu.dot_dimension_numbers<[1], [0], [0], [1], [0, 0, 1, 1], [], []>} : vector<80x128xf32>, vector<128x128xf32>, vector<80x128xf32> -> vector<80x128xf32>
    %34 = arith.addf %28, %33 : vector<80x128xf32>
    %35 = vector.extract_strided_slice %23 {offsets = [0, 2, 0], sizes = [2, 40, 128], strides = [1, 1, 1]} : vector<2x64x128xf32> to vector<2x40x128xf32>
    %36 = vector.shape_cast %35 : vector<2x40x128xf32> to vector<80x128xf32>
    %c2 = arith.constant 2 : index
    %c0_34 = arith.constant 0 : index
    %c0_35 = arith.constant 0 : index
    %37 = vector.load %arg4[%c2, %c0_34, %c0_35] : memref<9x128x128xf32, #tpu.memory_space<vmem>>, vector<1x128x128xf32>
    %38 = vector.shape_cast %37 : vector<1x128x128xf32> to vector<128x128xf32>
    %cst_36 = arith.constant dense<0.000000e+00> : vector<80x128xf32>
    %39 = tpu.matmul %36, %38, %cst_36 {dimension_numbers = #tpu.dot_dimension_numbers<[1], [0], [0], [1], [0, 0, 1, 1], [], []>} : vector<80x128xf32>, vector<128x128xf32>, vector<80x128xf32> -> vector<80x128xf32>
    %40 = arith.addf %34, %39 : vector<80x128xf32>
    %41 = vector.extract_strided_slice %23 {offsets = [0, 8, 0], sizes = [2, 40, 128], strides = [1, 1, 1]} : vector<2x64x128xf32> to vector<2x40x128xf32>
    %42 = vector.shape_cast %41 : vector<2x40x128xf32> to vector<80x128xf32>
    %c3 = arith.constant 3 : index
    %c0_37 = arith.constant 0 : index
    %c0_38 = arith.constant 0 : index
    %43 = vector.load %arg4[%c3, %c0_37, %c0_38] : memref<9x128x128xf32, #tpu.memory_space<vmem>>, vector<1x128x128xf32>
    %44 = vector.shape_cast %43 : vector<1x128x128xf32> to vector<128x128xf32>
    %cst_39 = arith.constant dense<0.000000e+00> : vector<80x128xf32>
    %45 = tpu.matmul %42, %44, %cst_39 {dimension_numbers = #tpu.dot_dimension_numbers<[1], [0], [0], [1], [0, 0, 1, 1], [], []>} : vector<80x128xf32>, vector<128x128xf32>, vector<80x128xf32> -> vector<80x128xf32>
    %46 = arith.addf %40, %45 : vector<80x128xf32>
    %47 = vector.extract_strided_slice %23 {offsets = [0, 9, 0], sizes = [2, 40, 128], strides = [1, 1, 1]} : vector<2x64x128xf32> to vector<2x40x128xf32>
    %48 = vector.shape_cast %47 : vector<2x40x128xf32> to vector<80x128xf32>
    %c4 = arith.constant 4 : index
    %c0_40 = arith.constant 0 : index
    %c0_41 = arith.constant 0 : index
    %49 = vector.load %arg4[%c4, %c0_40, %c0_41] : memref<9x128x128xf32, #tpu.memory_space<vmem>>, vector<1x128x128xf32>
    %50 = vector.shape_cast %49 : vector<1x128x128xf32> to vector<128x128xf32>
    %cst_42 = arith.constant dense<0.000000e+00> : vector<80x128xf32>
    %51 = tpu.matmul %48, %50, %cst_42 {dimension_numbers = #tpu.dot_dimension_numbers<[1], [0], [0], [1], [0, 0, 1, 1], [], []>} : vector<80x128xf32>, vector<128x128xf32>, vector<80x128xf32> -> vector<80x128xf32>
    %52 = arith.addf %46, %51 : vector<80x128xf32>
    %53 = vector.extract_strided_slice %23 {offsets = [0, 10, 0], sizes = [2, 40, 128], strides = [1, 1, 1]} : vector<2x64x128xf32> to vector<2x40x128xf32>
    %54 = vector.shape_cast %53 : vector<2x40x128xf32> to vector<80x128xf32>
    %c5 = arith.constant 5 : index
    %c0_43 = arith.constant 0 : index
    %c0_44 = arith.constant 0 : index
    %55 = vector.load %arg4[%c5, %c0_43, %c0_44] : memref<9x128x128xf32, #tpu.memory_space<vmem>>, vector<1x128x128xf32>
    %56 = vector.shape_cast %55 : vector<1x128x128xf32> to vector<128x128xf32>
    %cst_45 = arith.constant dense<0.000000e+00> : vector<80x128xf32>
    %57 = tpu.matmul %54, %56, %cst_45 {dimension_numbers = #tpu.dot_dimension_numbers<[1], [0], [0], [1], [0, 0, 1, 1], [], []>} : vector<80x128xf32>, vector<128x128xf32>, vector<80x128xf32> -> vector<80x128xf32>
    %58 = arith.addf %52, %57 : vector<80x128xf32>
    %59 = vector.extract_strided_slice %23 {offsets = [0, 16, 0], sizes = [2, 40, 128], strides = [1, 1, 1]} : vector<2x64x128xf32> to vector<2x40x128xf32>
    %60 = vector.shape_cast %59 : vector<2x40x128xf32> to vector<80x128xf32>
    %c6 = arith.constant 6 : index
    %c0_46 = arith.constant 0 : index
    %c0_47 = arith.constant 0 : index
    %61 = vector.load %arg4[%c6, %c0_46, %c0_47] : memref<9x128x128xf32, #tpu.memory_space<vmem>>, vector<1x128x128xf32>
    %62 = vector.shape_cast %61 : vector<1x128x128xf32> to vector<128x128xf32>
    %cst_48 = arith.constant dense<0.000000e+00> : vector<80x128xf32>
    %63 = tpu.matmul %60, %62, %cst_48 {dimension_numbers = #tpu.dot_dimension_numbers<[1], [0], [0], [1], [0, 0, 1, 1], [], []>} : vector<80x128xf32>, vector<128x128xf32>, vector<80x128xf32> -> vector<80x128xf32>
    %64 = arith.addf %58, %63 : vector<80x128xf32>
    %65 = vector.extract_strided_slice %23 {offsets = [0, 17, 0], sizes = [2, 40, 128], strides = [1, 1, 1]} : vector<2x64x128xf32> to vector<2x40x128xf32>
    %66 = vector.shape_cast %65 : vector<2x40x128xf32> to vector<80x128xf32>
    %c7 = arith.constant 7 : index
    %c0_49 = arith.constant 0 : index
    %c0_50 = arith.constant 0 : index
    %67 = vector.load %arg4[%c7, %c0_49, %c0_50] : memref<9x128x128xf32, #tpu.memory_space<vmem>>, vector<1x128x128xf32>
    %68 = vector.shape_cast %67 : vector<1x128x128xf32> to vector<128x128xf32>
    %cst_51 = arith.constant dense<0.000000e+00> : vector<80x128xf32>
    %69 = tpu.matmul %66, %68, %cst_51 {dimension_numbers = #tpu.dot_dimension_numbers<[1], [0], [0], [1], [0, 0, 1, 1], [], []>} : vector<80x128xf32>, vector<128x128xf32>, vector<80x128xf32> -> vector<80x128xf32>
    %70 = arith.addf %64, %69 : vector<80x128xf32>
    %71 = vector.extract_strided_slice %23 {offsets = [0, 18, 0], sizes = [2, 40, 128], strides = [1, 1, 1]} : vector<2x64x128xf32> to vector<2x40x128xf32>
    %72 = vector.shape_cast %71 : vector<2x40x128xf32> to vector<80x128xf32>
    %c8 = arith.constant 8 : index
    %c0_52 = arith.constant 0 : index
    %c0_53 = arith.constant 0 : index
    %73 = vector.load %arg4[%c8, %c0_52, %c0_53] : memref<9x128x128xf32, #tpu.memory_space<vmem>>, vector<1x128x128xf32>
    %74 = vector.shape_cast %73 : vector<1x128x128xf32> to vector<128x128xf32>
    %cst_54 = arith.constant dense<0.000000e+00> : vector<80x128xf32>
    %75 = tpu.matmul %72, %74, %cst_54 {dimension_numbers = #tpu.dot_dimension_numbers<[1], [0], [0], [1], [0, 0, 1, 1], [], []>} : vector<80x128xf32>, vector<128x128xf32>, vector<80x128xf32> -> vector<80x128xf32>
    %76 = arith.addf %70, %75 : vector<80x128xf32>
    %c0_55 = arith.constant 0 : index
    %c0_56 = arith.constant 0 : index
    %77 = vector.load %arg5[%c0_55, %c0_56] : memref<1x128xf32, #tpu.memory_space<vmem>>, vector<1x128xf32>
    %78 = vector.broadcast %77 : vector<1x128xf32> to vector<80x128xf32>
    %79 = arith.addf %76, %78 : vector<80x128xf32>
    %cst_57 = arith.constant 0.000000e+00 : f32
    %80 = vector.broadcast %cst_57 : f32 to vector<80x128xf32>
    %81 = arith.maximumf %79, %80 : vector<80x128xf32>
    %82 = vector.shape_cast %81 : vector<80x128xf32> to vector<2x5x8x128xf32>
    %83 = vector.extract_strided_slice %82 {offsets = [0, 0, 0, 0], sizes = [2, 4, 8, 128], strides = [1, 1, 1, 1]} : vector<2x5x8x128xf32> to vector<2x4x8x128xf32>
    %84 = vector.shape_cast %83 : vector<2x4x8x128xf32> to vector<2x2x2x8x128xf32>
    %85 = vector.extract_strided_slice %84 {offsets = [0, 0, 0, 0, 0], sizes = [2, 2, 1, 8, 128], strides = [1, 1, 1, 1, 1]} : vector<2x2x2x8x128xf32> to vector<2x2x1x8x128xf32>
    %86 = vector.extract_strided_slice %84 {offsets = [0, 0, 1, 0, 0], sizes = [2, 2, 1, 8, 128], strides = [1, 1, 1, 1, 1]} : vector<2x2x2x8x128xf32> to vector<2x2x1x8x128xf32>
    %87 = arith.maximumf %85, %86 : vector<2x2x1x8x128xf32>
    %88 = vector.shape_cast %87 : vector<2x2x1x8x128xf32> to vector<32x128xf32>
    %c0_58 = arith.constant 0 : index
    %c0_59 = arith.constant 0 : index
    %89 = vector.load %arg13[%c0_58, %c0_59] : memref<32x128xf32, #tpu.memory_space<vmem>>, vector<32x128xf32>
    tpu.vector_store %arg13[%c0_58, %c0_59], %88 {strides = array<i32>} : memref<32x128xf32, #tpu.memory_space<vmem>>, vector<32x128xf32>,
    %c0_60 = arith.constant 0 : index
    %c0_61 = arith.constant 0 : index
    %90 = tpu.strided_load %arg13[%c0_60, %c0_61] {strides = array<i32: 16, 1>} : memref<32x128xf32, #tpu.memory_space<vmem>>, vector<2x128xf32>
    %c1_62 = arith.constant 1 : index
    %c0_63 = arith.constant 0 : index
    %91 = tpu.strided_load %arg13[%c1_62, %c0_63] {strides = array<i32: 16, 1>} : memref<32x128xf32, #tpu.memory_space<vmem>>, vector<2x128xf32>
    %92 = arith.maximumf %90, %91 : vector<2x128xf32>
    %c2_64 = arith.constant 2 : index
    %c0_65 = arith.constant 0 : index
    %93 = tpu.strided_load %arg13[%c2_64, %c0_65] {strides = array<i32: 16, 1>} : memref<32x128xf32, #tpu.memory_space<vmem>>, vector<2x128xf32>
    %c3_66 = arith.constant 3 : index
    %c0_67 = arith.constant 0 : index
    %94 = tpu.strided_load %arg13[%c3_66, %c0_67] {strides = array<i32: 16, 1>} : memref<32x128xf32, #tpu.memory_space<vmem>>, vector<2x128xf32>
    %95 = arith.maximumf %93, %94 : vector<2x128xf32>
    %c8_68 = arith.constant 8 : index
    %c0_69 = arith.constant 0 : index
    %96 = tpu.strided_load %arg13[%c8_68, %c0_69] {strides = array<i32: 16, 1>} : memref<32x128xf32, #tpu.memory_space<vmem>>, vector<2x128xf32>
    %c9 = arith.constant 9 : index
    %c0_70 = arith.constant 0 : index
    %97 = tpu.strided_load %arg13[%c9, %c0_70] {strides = array<i32: 16, 1>} : memref<32x128xf32, #tpu.memory_space<vmem>>, vector<2x128xf32>
    %98 = arith.maximumf %96, %97 : vector<2x128xf32>
    %c10 = arith.constant 10 : index
    %c0_71 = arith.constant 0 : index
    %99 = tpu.strided_load %arg13[%c10, %c0_71] {strides = array<i32: 16, 1>} : memref<32x128xf32, #tpu.memory_space<vmem>>, vector<2x128xf32>
    %c11 = arith.constant 11 : index
    %c0_72 = arith.constant 0 : index
    %100 = tpu.strided_load %arg13[%c11, %c0_72] {strides = array<i32: 16, 1>} : memref<32x128xf32, #tpu.memory_space<vmem>>, vector<2x128xf32>
    %101 = arith.maximumf %99, %100 : vector<2x128xf32>
    %102 = tpu.concatenate %92, %95, %98, %101 in 1 : vector<2x128xf32>, vector<2x128xf32>, vector<2x128xf32>, vector<2x128xf32> -> vector<2x512xf32>
    %c0_73 = arith.constant 0 : index
    %c0_74 = arith.constant 0 : index
    %103 = vector.load %arg6[%c0_73, %c0_74] : memref<512x128xf32, #tpu.memory_space<vmem>>, vector<512x128xf32>
    %cst_75 = arith.constant dense<0.000000e+00> : vector<2x128xf32>
    %104 = tpu.matmul %102, %103, %cst_75 {dimension_numbers = #tpu.dot_dimension_numbers<[1], [0], [0], [1], [0, 0, 1, 1], [], []>} : vector<2x512xf32>, vector<512x128xf32>, vector<2x128xf32> -> vector<2x128xf32>
    %c0_76 = arith.constant 0 : index
    %c0_77 = arith.constant 0 : index
    %105 = vector.load %arg7[%c0_76, %c0_77] : memref<1x128xf32, #tpu.memory_space<vmem>>, vector<1x128xf32>
    %106 = vector.broadcast %105 : vector<1x128xf32> to vector<2x128xf32>
    %107 = arith.addf %104, %106 : vector<2x128xf32>
    %cst_78 = arith.constant 0.000000e+00 : f32
    %108 = vector.broadcast %cst_78 : f32 to vector<2x128xf32>
    %109 = arith.maximumf %107, %108 : vector<2x128xf32>
    %c0_79 = arith.constant 0 : index
    %c0_80 = arith.constant 0 : index
    %110 = vector.load %arg8[%c0_79, %c0_80] : memref<128x128xf32, #tpu.memory_space<vmem>>, vector<128x128xf32>
    %cst_81 = arith.constant dense<0.000000e+00> : vector<2x128xf32>
    %111 = tpu.matmul %109, %110, %cst_81 {dimension_numbers = #tpu.dot_dimension_numbers<[1], [0], [0], [1], [0, 0, 1, 1], [], []>} : vector<2x128xf32>, vector<128x128xf32>, vector<2x128xf32> -> vector<2x128xf32>
    %c0_82 = arith.constant 0 : index
    %c0_83 = arith.constant 0 : index
    %112 = vector.load %arg9[%c0_82, %c0_83] : memref<1x128xf32, #tpu.memory_space<vmem>>, vector<1x128xf32>
    %113 = vector.broadcast %112 : vector<1x128xf32> to vector<2x128xf32>
    %114 = arith.addf %111, %113 : vector<2x128xf32>
    %c0_84 = arith.constant 0 : index
    %c0_85 = arith.constant 0 : index
    %115 = vector.load %arg10[%c0_84, %c0_85] : memref<2x128xf32, #tpu.memory_space<vmem>>, vector<2x128xf32>
    tpu.vector_store %arg10[%c0_84, %c0_85], %114 {strides = array<i32>} : memref<2x128xf32, #tpu.memory_space<vmem>>, vector<2x128xf32>,
    return
  }
  func.func @transform_0(%arg0: i32) -> (i32, i32) {
    %c0_i32 = arith.constant 0 : i32
    %c0_i32_0 = arith.constant 0 : i32
    return %arg0, %c0_i32 : i32, i32
  }
  func.func @transform_1(%arg0: i32) -> (i32, i32) {
    %c0_i32 = arith.constant 0 : i32
    %c0_i32_0 = arith.constant 0 : i32
    %c0_i32_1 = arith.constant 0 : i32
    return %c0_i32, %c0_i32_0 : i32, i32
  }
  func.func @transform_2(%arg0: i32) -> (i32, i32) {
    %c0_i32 = arith.constant 0 : i32
    %c0_i32_0 = arith.constant 0 : i32
    %c0_i32_1 = arith.constant 0 : i32
    return %c0_i32, %c0_i32_0 : i32, i32
  }
  func.func @transform_3(%arg0: i32) -> (i32, i32, i32) {
    %c0_i32 = arith.constant 0 : i32
    %c0_i32_0 = arith.constant 0 : i32
    %c0_i32_1 = arith.constant 0 : i32
    %c0_i32_2 = arith.constant 0 : i32
    return %c0_i32, %c0_i32_0, %c0_i32_1 : i32, i32, i32
  }
  func.func @transform_4(%arg0: i32) -> (i32, i32) {
    %c0_i32 = arith.constant 0 : i32
    %c0_i32_0 = arith.constant 0 : i32
    %c0_i32_1 = arith.constant 0 : i32
    return %c0_i32, %c0_i32_0 : i32, i32
  }
  func.func @transform_5(%arg0: i32) -> (i32, i32) {
    %c0_i32 = arith.constant 0 : i32
    %c0_i32_0 = arith.constant 0 : i32
    %c0_i32_1 = arith.constant 0 : i32
    return %c0_i32, %c0_i32_0 : i32, i32
  }
  func.func @transform_6(%arg0: i32) -> (i32, i32) {
    %c0_i32 = arith.constant 0 : i32
    %c0_i32_0 = arith.constant 0 : i32
    %c0_i32_1 = arith.constant 0 : i32
    return %c0_i32, %c0_i32_0 : i32, i32
  }
  func.func @transform_7(%arg0: i32) -> (i32, i32) {
    %c0_i32 = arith.constant 0 : i32
    %c0_i32_0 = arith.constant 0 : i32
    %c0_i32_1 = arith.constant 0 : i32
    return %c0_i32, %c0_i32_0 : i32, i32
  }
  func.func @transform_8(%arg0: i32) -> (i32, i32) {
    %c0_i32 = arith.constant 0 : i32
    %c0_i32_0 = arith.constant 0 : i32
    %c0_i32_1 = arith.constant 0 : i32
    return %c0_i32, %c0_i32_0 : i32, i32
  }
  func.func @transform_9(%arg0: i32) -> (i32, i32) {
    %c0_i32 = arith.constant 0 : i32
    %c0_i32_0 = arith.constant 0 : i32
    return %arg0, %c0_i32 : i32, i32
  }
}

</mosaic_0001>

<llo_original>
// kernel: forward.1
$region0: #{forward.1}
  #allocation0 [shape = 'u32[]', space=smem, size = 0x4, offset = 0x4, fixed_abs, tag = 'smem constant byte address 0x4 - core index']
  #allocation1 [shape = 'u32[144,128]{1,0:T(1,128)}', space=vmem, size = 0x12000, scoped, tag = 'internal scratch']
  #allocation2 [shape = 'f32[2,7,16,128]{3,2,1,0:T(8,128)}', space=vmem, size = 0x1c000, scoped, tag = 'scratch operand']
  #allocation3 [shape = 'f32[2,8,8,128]{3,2,1,0:T(8,128)}', space=vmem, size = 0x10000, scoped, tag = 'scratch operand']
  #allocation4 [shape = 'f32[32,128]{1,0:T(8,128)}', space=vmem, size = 0x4000, scoped, tag = 'scratch operand']
  %s0 = inlined_call_operand.vmem [shape: f32[448,36], index: 0, kind: input, shape index: {}]
  %s1 = inlined_call_operand.vmem [shape: f32[36,128], index: 1, kind: input, shape index: {}]
  %s2 = inlined_call_operand.vmem [shape: f32[1,128], index: 2, kind: input, shape index: {}]
  %s3 = inlined_call_operand.vmem [shape: f32[9,128,128], index: 3, kind: input, shape index: {}]
  %s4 = inlined_call_operand.vmem [shape: f32[1,128], index: 4, kind: input, shape index: {}]
  %s5 = inlined_call_operand.vmem [shape: f32[512,128], index: 5, kind: input, shape index: {}]
  %s6 = inlined_call_operand.vmem [shape: f32[1,128], index: 6, kind: input, shape index: {}]
  %s7 = inlined_call_operand.vmem [shape: f32[128,128], index: 7, kind: input, shape index: {}]
  %s8 = inlined_call_operand.vmem [shape: f32[1,128], index: 8, kind: input, shape index: {}]
  %s9 = inlined_call_operand.hbm [shape: f32[2,128], index: 9, kind: output, shape index: {}]
  %s10 = sld [smem:[#allocation0]]
  $region50: #{forward.1} parent=0
    _
  %s12 = ssub.s32 1, %s10
  %s13 = scalar_select 0, %s12, %s10
  $region1: #{forward.1} parent=0
    #allocation5 [shape = 'u8[1024]{0}', space=vmem, size = 0x400, scoped, tag = 'output window, operand 0, single buffered']
    #allocation6 [shape = 's32[1]{0}', space=sflag, size = 0x4, scoped, tag = 'scoped memory for forward.1']
    %14 = vsyncpa [#allocation6], 0
    // Predicated region
    $region2: #{forward.1} parent=1 // pred_check
      _
    $region3: #{forward.1} parent=1 // pred_check_branch
      %16 = sbr.rel (0) target = $region5
    $region4: #{forward.1} parent=1 // pred_region
      _
    $region5: #{forward.1} parent=1 // pred_fallthru
      _
    // Predicated region
    $region6: #{forward.1} parent=1 // pred_check
      _
    $region7: #{forward.1} parent=1 // pred_check_branch
      %18 = sbr.rel (0) target = $region9
    $region8: #{forward.1} parent=1 // pred_region
      _
    $region9: #{forward.1} parent=1 // pred_fallthru
      _
    // Predicated region
    $region10: #{forward.1} parent=1 // pred_check
      _
    $region11: #{forward.1} parent=1 // pred_check_branch
      %20 = sbr.rel (0) target = $region13
    $region12: #{forward.1} parent=1 // pred_region
      _
    $region13: #{forward.1} parent=1 // pred_fallthru
      _
    // Predicated region
    $region14: #{forward.1} parent=1 // pred_check
      _
    $region15: #{forward.1} parent=1 // pred_check_branch
      %22 = sbr.rel (0) target = $region17
    $region16: #{forward.1} parent=1 // pred_region
      _
    $region17: #{forward.1} parent=1 // pred_fallthru
      _
    // Predicated region
    $region18: #{forward.1} parent=1 // pred_check
      _
    $region19: #{forward.1} parent=1 // pred_check_branch
      %24 = sbr.rel (0) target = $region21
    $region20: #{forward.1} parent=1 // pred_region
      _
    $region21: #{forward.1} parent=1 // pred_fallthru
      _
    // Predicated region
    $region22: #{forward.1} parent=1 // pred_check
      _
    $region23: #{forward.1} parent=1 // pred_check_branch
      %26 = sbr.rel (0) target = $region25
    $region24: #{forward.1} parent=1 // pred_region
      _
    $region25: #{forward.1} parent=1 // pred_fallthru
      _
    // Predicated region
    $region26: #{forward.1} parent=1 // pred_check
      _
    $region27: #{forward.1} parent=1 // pred_check_branch
      %28 = sbr.rel (0) target = $region29
    $region28: #{forward.1} parent=1 // pred_region
      _
    $region29: #{forward.1} parent=1 // pred_fallthru
      _
    // Predicated region
    $region30: #{forward.1} parent=1 // pred_check
      _
    $region31: #{forward.1} parent=1 // pred_check_branch
      %30 = sbr.rel (0) target = $region33
    $region32: #{forward.1} parent=1 // pred_region
      _
    $region33: #{forward.1} parent=1 // pred_fallthru
      _
    // Predicated region
    $region34: #{forward.1} parent=1 // pred_check
      _
    $region35: #{forward.1} parent=1 // pred_check_branch
      %32 = sbr.rel (0) target = $region37
    $region36: #{forward.1} parent=1 // pred_region
      _
    $region37: #{forward.1} parent=1 // pred_fallthru
      _
    %v33 = vld [vmem:[%s0] sm:$0xff]
    %v34 = vld [vmem:[%s0 + $0x8] sm:$0xff]
    %v35 = vld [vmem:[%s0 + $0x10] sm:$0xff]
    %v36 = vld [vmem:[%s0 + $0x18] sm:$0xff]
    %v37 = vld [vmem:[%s0 + $0x20] sm:$0xff]
    %v38 = vld [vmem:[%s0 + $0x28] sm:$0xff]
    %v39 = vld [vmem:[%s0 + $0x30] sm:$0xff]
    %v40 = vld [vmem:[%s0 + $0x38] sm:$0xff]
    %v41 = vld [vmem:[%s0 + $0x40] sm:$0xff]
    %v42 = vld [vmem:[%s0 + $0x48] sm:$0xff]
    %v43 = vld [vmem:[%s0 + $0x50] sm:$0xff]
    %v44 = vld [vmem:[%s0 + $0x58] sm:$0xff]
    %v45 = vld [vmem:[%s0 + $0x60] sm:$0xff]
    %v46 = vld [vmem:[%s0 + $0x68] sm:$0xff]
    %v47 = vld [vmem:[%s0 + $0x70] sm:$0xff]
    %v48 = vld [vmem:[%s0 + $0x78] sm:$0xff]
    %v49 = vld [vmem:[%s0 + $0x80] sm:$0xff]
    %v50 = vld [vmem:[%s0 + $0x88] sm:$0xff]
    %v51 = vld [vmem:[%s0 + $0x90] sm:$0xff]
    %v52 = vld [vmem:[%s0 + $0x98] sm:$0xff]
    %v53 = vld [vmem:[%s0 + $0xa0] sm:$0xff]
    %v54 = vld [vmem:[%s0 + $0xa8] sm:$0xff]
    %v55 = vld [vmem:[%s0 + $0xb0] sm:$0xff]
    %v56 = vld [vmem:[%s0 + $0xb8] sm:$0xff]
    %v57 = vld [vmem:[%s0 + $0xc0] sm:$0xff]
    %v58 = vld [vmem:[%s0 + $0xc8] sm:$0xff]
    %v59 = vld [vmem:[%s0 + $0xd0] sm:$0xff]
    %v60 = vld [vmem:[%s0 + $0xd8] sm:$0xff]
    %v61 = vld [vmem:[%s0 + $0xe0] sm:$0xff]
    %v62 = vld [vmem:[%s0 + $0xe8] sm:$0xff]
    %v63 = vld [vmem:[%s0 + $0xf0] sm:$0xff]
    %v64 = vld [vmem:[%s0 + $0xf8] sm:$0xff]
    %v65 = vld [vmem:[%s0 + $0x100] sm:$0xff]
    %v66 = vld [vmem:[%s0 + $0x108] sm:$0xff]
    %v67 = vld [vmem:[%s0 + $0x110] sm:$0xff]
    %v68 = vld [vmem:[%s0 + $0x118] sm:$0xff]
    %v69 = vld [vmem:[%s0 + $0x120] sm:$0xff]
    %v70 = vld [vmem:[%s0 + $0x128] sm:$0xff]
    %v71 = vld [vmem:[%s0 + $0x130] sm:$0xff]
    %v72 = vld [vmem:[%s0 + $0x138] sm:$0xff]
    %v73 = vld [vmem:[%s0 + $0x140] sm:$0xff]
    %v74 = vld [vmem:[%s0 + $0x148] sm:$0xff]
    %v75 = vld [vmem:[%s0 + $0x150] sm:$0xff]
    %v76 = vld [vmem:[%s0 + $0x158] sm:$0xff]
    %v77 = vld [vmem:[%s0 + $0x160] sm:$0xff]
    %v78 = vld [vmem:[%s0 + $0x168] sm:$0xff]
    %v79 = vld [vmem:[%s0 + $0x170] sm:$0xff]
    %v80 = vld [vmem:[%s0 + $0x178] sm:$0xff]
    %v81 = vld [vmem:[%s0 + $0x180] sm:$0xff]
    %v82 = vld [vmem:[%s0 + $0x188] sm:$0xff]
    %v83 = vld [vmem:[%s0 + $0x190] sm:$0xff]
    %v84 = vld [vmem:[%s0 + $0x198] sm:$0xff]
    %v85 = vld [vmem:[%s0 + $0x1a0] sm:$0xff]
    %v86 = vld [vmem:[%s0 + $0x1a8] sm:$0xff]
    %v87 = vld [vmem:[%s0 + $0x1b0] sm:$0xff]
    %v88 = vld [vmem:[%s0 + $0x1b8] sm:$0xff]
    %v89 = vld [vmem:[%s1] sm:$0xff]
    %v90 = vld [vmem:[%s1 + $0x8] sm:$0xff]
    %v91 = vld [vmem:[%s1 + $0x10] sm:$0xff]
    %v92 = vld [vmem:[%s1 + $0x18] sm:$0xff]
    %v93 = vld [vmem:[%s1 + $0x20] sm:$0xf]
    %v94 = vld [vmem:[%s2] sm:$0x1]
    %v96 = vlaneseq
    %v97 = vshrl.u32 %v96, 7
    %v98 = vsub.s32 0, %v97
    %v99 = vrot.slane %v94, %v98
    %vm101 = vcmask 293888
    %v103 = vsel %vm101, %v33, 0
    %v106 = vsel %vm101, %v34, 0
    %v109 = vsel %vm101, %v35, 0
    %v112 = vsel %vm101, %v36, 0
    %v115 = vsel %vm101, %v37, 0
    %v118 = vsel %vm101, %v38, 0
    %v121 = vsel %vm101, %v39, 0
    %v124 = vsel %vm101, %v40, 0
    %v127 = vsel %vm101, %v41, 0
    %v130 = vsel %vm101, %v42, 0
    %v133 = vsel %vm101, %v43, 0
    %v136 = vsel %vm101, %v44, 0
    %v139 = vsel %vm101, %v45, 0
    %v142 = vsel %vm101, %v46, 0
    %v145 = vsel %vm101, %v47, 0
    %v148 = vsel %vm101, %v48, 0
    %v151 = vsel %vm101, %v49, 0
    %v154 = vsel %vm101, %v50, 0
    %v157 = vsel %vm101, %v51, 0
    %v160 = vsel %vm101, %v52, 0
    %v163 = vsel %vm101, %v53, 0
    %v166 = vsel %vm101, %v54, 0
    %v169 = vsel %vm101, %v55, 0
    %v172 = vsel %vm101, %v56, 0
    %v175 = vsel %vm101, %v57, 0
    %v178 = vsel %vm101, %v58, 0
    %v181 = vsel %vm101, %v59, 0
    %v184 = vsel %vm101, %v60, 0
    %v187 = vsel %vm101, %v61, 0
    %v190 = vsel %vm101, %v62, 0
    %v193 = vsel %vm101, %v63, 0
    %v196 = vsel %vm101, %v64, 0
    %v199 = vsel %vm101, %v65, 0
    %v202 = vsel %vm101, %v66, 0
    %v205 = vsel %vm101, %v67, 0
    %v208 = vsel %vm101, %v68, 0
    %v211 = vsel %vm101, %v69, 0
    %v214 = vsel %vm101, %v70, 0
    %v217 = vsel %vm101, %v71, 0
    %v220 = vsel %vm101, %v72, 0
    %v223 = vsel %vm101, %v73, 0
    %v226 = vsel %vm101, %v74, 0
    %v229 = vsel %vm101, %v75, 0
    %v232 = vsel %vm101, %v76, 0
    %v235 = vsel %vm101, %v77, 0
    %v238 = vsel %vm101, %v78, 0
    %v241 = vsel %vm101, %v79, 0
    %v244 = vsel %vm101, %v80, 0
    %v247 = vsel %vm101, %v81, 0
    %v250 = vsel %vm101, %v82, 0
    %v253 = vsel %vm101, %v83, 0
    %v256 = vsel %vm101, %v84, 0
    %v259 = vsel %vm101, %v85, 0
    %v262 = vsel %vm101, %v86, 0
    %v265 = vsel %vm101, %v87, 0
    %v268 = vsel %vm101, %v88, 0
    %vm270 = vcmask 1043456
    %v272 = vsel %vm270, %v93, 0
    %274 = vmatprep.subr.mxu0 0.0
    %275 = vmatpush1.msra.mxu0 %v89
    %276 = vmatprep.subr.mxu0 0.0
    %277 = vmatpush1.msra.mxu0 %v90
    %278 = vmatprep.subr.mxu0 0.0
    %279 = vmatpush1.msra.mxu0 %v91
    %280 = vmatprep.subr.mxu0 0.0
    %281 = vmatpush1.msra.mxu0 %v92
    %282 = vmatprep.subr.mxu0 0.0
    %283 = vmatpush1.msra.mxu0 %v272
    %284 = vmatprep.subr.mxu0 0.0
    %285 = vmatpush1.msra.mxu0 0.0
    %286 = vmatprep.subr.mxu0 0.0
    %287 = vmatpush1.msra.mxu0 0.0
    %288 = vmatprep.subr.mxu0 0.0
    %289 = vmatpush1.msra.mxu0 0.0
    %290 = vmatprep.subr.mxu0 0.0
    %291 = vmatpush1.msra.mxu0 0.0
    %292 = vmatprep.subr.mxu0 0.0
    %293 = vmatpush1.msra.mxu0 0.0
    %294 = vmatprep.subr.mxu0 0.0
    %295 = vmatpush1.msra.mxu0 0.0
    %296 = vmatprep.subr.mxu0 0.0
    %297 = vmatpush1.msra.mxu0 0.0
    %298 = vmatprep.subr.mxu0 0.0
    %299 = vmatpush1.msra.mxu0 0.0
    %300 = vmatprep.subr.mxu0 0.0
    %301 = vmatpush1.msra.mxu0 0.0
    %302 = vmatprep.subr.mxu0 0.0
    %303 = vmatpush1.msra.mxu0 0.0
    %304 = vmatprep.subr.mxu0 0.0
    %305 = vmatpush1.msra.mxu0 0.0
    %306 = vmatprep.subr.mxu0 0.0
    %307 = vmatpush1.msra.mxu0 0.0
    %308 = vmatprep.subr.mxu0 0.0
    %309 = vmatpush1.msra.mxu0 0.0
    %310 = vmatprep.subr.mxu0 0.0
    %311 = vmatpush1.msra.mxu0 0.0
    %312 = vmatprep.subr.mxu0 0.0
    %313 = vmatpush1.msra.mxu0 0.0
    %314 = vmatprep.subr.mxu0 0.0
    %315 = vmatpush1.msra.mxu0 0.0
    %316 = vmatprep.subr.mxu0 0.0
    %317 = vmatpush1.msra.mxu0 0.0
    %318 = vmatprep.subr.mxu0 0.0
    %319 = vmatpush1.msra.mxu0 0.0
    %320 = vmatprep.subr.mxu0 0.0
    %321 = vmatpush1.msra.mxu0 0.0
    %322 = vmatprep.subr.mxu0 0.0
    %323 = vmatpush1.msra.mxu0 0.0
    %324 = vmatprep.subr.mxu0 0.0
    %325 = vmatpush1.msra.mxu0 0.0
    %326 = vmatprep.subr.mxu0 0.0
    %327 = vmatpush1.msra.mxu0 0.0
    %328 = vmatprep.subr.mxu0 0.0
    %329 = vmatpush1.msra.mxu0 0.0
    %330 = vmatprep.subr.mxu0 0.0
    %331 = vmatpush1.msra.mxu0 0.0
    %332 = vmatprep.subr.mxu0 0.0
    %333 = vmatpush1.msra.mxu0 0.0
    %334 = vmatprep.subr.mxu0 0.0
    %335 = vmatpush1.msra.mxu0 0.0
    %336 = vmatprep.subr.mxu0 0.0
    %337 = vmatpush1.msra.mxu0 0.0
    %338 = vmatprep.mubr.f32.mxu0 0.0
    %339 = vmatmul.mubr.f32.gmra.mrb[0].mxu0 %v103
    %v340 = vpop.f32.mrb[0].mxu0
    %v341 = vadd.f32 %v99, %v340
    %v342 = vpop.f32.mrb[0].mxu0
    %343 = vmatprep.mubr.f32.mxu0 0.0
    %344 = vmatmul.mubr.f32.gmra.mrb[0].mxu0 %v106
    %v345 = vpop.f32.mrb[0].mxu0
    %v346 = vadd.f32 %v99, %v345
    %v347 = vpop.f32.mrb[0].mxu0
    %348 = vmatprep.mubr.f32.mxu0 0.0
    %349 = vmatmul.mubr.f32.gmra.mrb[0].mxu0 %v109
    %v350 = vpop.f32.mrb[0].mxu0
    %v351 = vadd.f32 %v99, %v350
    %v352 = vpop.f32.mrb[0].mxu0
    %353 = vmatprep.mubr.f32.mxu0 0.0
    %354 = vmatmul.mubr.f32.gmra.mrb[0].mxu0 %v112
    %v355 = vpop.f32.mrb[0].mxu0
    %v356 = vadd.f32 %v99, %v355
    %v357 = vpop.f32.mrb[0].mxu0
    %358 = vmatprep.mubr.f32.mxu0 0.0
    %359 = vmatmul.mubr.f32.gmra.mrb[0].mxu0 %v115
    %v360 = vpop.f32.mrb[0].mxu0
    %v361 = vadd.f32 %v99, %v360
    %v362 = vpop.f32.mrb[0].mxu0
    %363 = vmatprep.mubr.f32.mxu0 0.0
    %364 = vmatmul.mubr.f32.gmra.mrb[0].mxu0 %v118
    %v365 = vpop.f32.mrb[0].mxu0
    %v366 = vadd.f32 %v99, %v365
    %v367 = vpop.f32.mrb[0].mxu0
    %368 = vmatprep.mubr.f32.mxu0 0.0
    %369 = vmatmul.mubr.f32.gmra.mrb[0].mxu0 %v121
    %v370 = vpop.f32.mrb[0].mxu0
    %v371 = vadd.f32 %v99, %v370
    %v372 = vpop.f32.mrb[0].mxu0
    %373 = vmatprep.mubr.f32.mxu0 0.0
    %374 = vmatmul.mubr.f32.gmra.mrb[0].mxu0 %v124
    %v375 = vpop.f32.mrb[0].mxu0
    %v376 = vadd.f32 %v99, %v375
    %v377 = vpop.f32.mrb[0].mxu0
    %378 = vmatprep.mubr.f32.mxu0 0.0
    %379 = vmatmul.mubr.f32.gmra.mrb[0].mxu0 %v127
    %v380 = vpop.f32.mrb[0].mxu0
    %v381 = vadd.f32 %v99, %v380
    %v382 = vpop.f32.mrb[0].mxu0
    %383 = vmatprep.mubr.f32.mxu0 0.0
    %384 = vmatmul.mubr.f32.gmra.mrb[0].mxu0 %v130
    %v385 = vpop.f32.mrb[0].mxu0
    %v386 = vadd.f32 %v99, %v385
    %v387 = vpop.f32.mrb[0].mxu0
    %388 = vmatprep.mubr.f32.mxu0 0.0
    %389 = vmatmul.mubr.f32.gmra.mrb[0].mxu0 %v133
    %v390 = vpop.f32.mrb[0].mxu0
    %v391 = vadd.f32 %v99, %v390
    %v392 = vpop.f32.mrb[0].mxu0
    %393 = vmatprep.mubr.f32.mxu0 0.0
    %394 = vmatmul.mubr.f32.gmra.mrb[0].mxu0 %v136
    %v395 = vpop.f32.mrb[0].mxu0
    %v396 = vadd.f32 %v99, %v395
    %v397 = vpop.f32.mrb[0].mxu0
    %398 = vmatprep.mubr.f32.mxu0 0.0
    %399 = vmatmul.mubr.f32.gmra.mrb[0].mxu0 %v139
    %v400 = vpop.f32.mrb[0].mxu0
    %v401 = vadd.f32 %v99, %v400
    %v402 = vpop.f32.mrb[0].mxu0
    %403 = vmatprep.mubr.f32.mxu0 0.0
    %404 = vmatmul.mubr.f32.gmra.mrb[0].mxu0 %v142
    %v405 = vpop.f32.mrb[0].mxu0
    %v406 = vadd.f32 %v99, %v405
    %v407 = vpop.f32.mrb[0].mxu0
    %408 = vmatprep.mubr.f32.mxu0 0.0
    %409 = vmatmul.mubr.f32.gmra.mrb[0].mxu0 %v145
    %v410 = vpop.f32.mrb[0].mxu0
    %v411 = vadd.f32 %v99, %v410
    %v412 = vpop.f32.mrb[0].mxu0
    %413 = vmatprep.mubr.f32.mxu0 0.0
    %414 = vmatmul.mubr.f32.gmra.mrb[0].mxu0 %v148
    %v415 = vpop.f32.mrb[0].mxu0
    %v416 = vadd.f32 %v99, %v415
    %v417 = vpop.f32.mrb[0].mxu0
    %418 = vmatprep.mubr.f32.mxu0 0.0
    %419 = vmatmul.mubr.f32.gmra.mrb[0].mxu0 %v151
    %v420 = vpop.f32.mrb[0].mxu0
    %v421 = vadd.f32 %v99, %v420
    %v422 = vpop.f32.mrb[0].mxu0
    %423 = vmatprep.mubr.f32.mxu0 0.0
    %424 = vmatmul.mubr.f32.gmra.mrb[0].mxu0 %v154
    %v425 = vpop.f32.mrb[0].mxu0
    %v426 = vadd.f32 %v99, %v425
    %v427 = vpop.f32.mrb[0].mxu0
    %428 = vmatprep.mubr.f32.mxu0 0.0
    %429 = vmatmul.mubr.f32.gmra.mrb[0].mxu0 %v157
    %v430 = vpop.f32.mrb[0].mxu0
    %v431 = vadd.f32 %v99, %v430
    %v432 = vpop.f32.mrb[0].mxu0
    %433 = vmatprep.mubr.f32.mxu0 0.0
    %434 = vmatmul.mubr.f32.gmra.mrb[0].mxu0 %v160
    %v435 = vpop.f32.mrb[0].mxu0
    %v436 = vadd.f32 %v99, %v435
    %v437 = vpop.f32.mrb[0].mxu0
    %438 = vmatprep.mubr.f32.mxu0 0.0
    %439 = vmatmul.mubr.f32.gmra.mrb[0].mxu0 %v163
    %v440 = vpop.f32.mrb[0].mxu0
    %v441 = vadd.f32 %v99, %v440
    %v442 = vpop.f32.mrb[0].mxu0
    %443 = vmatprep.mubr.f32.mxu0 0.0
    %444 = vmatmul.mubr.f32.gmra.mrb[0].mxu0 %v166
    %v445 = vpop.f32.mrb[0].mxu0
    %v446 = vadd.f32 %v99, %v445
    %v447 = vpop.f32.mrb[0].mxu0
    %448 = vmatprep.mubr.f32.mxu0 0.0
    %449 = vmatmul.mubr.f32.gmra.mrb[0].mxu0 %v169
    %v450 = vpop.f32.mrb[0].mxu0
    %v451 = vadd.f32 %v99, %v450
    %v452 = vpop.f32.mrb[0].mxu0
    %453 = vmatprep.mubr.f32.mxu0 0.0
    %454 = vmatmul.mubr.f32.gmra.mrb[0].mxu0 %v172
    %v455 = vpop.f32.mrb[0].mxu0
    %v456 = vadd.f32 %v99, %v455
    %v457 = vpop.f32.mrb[0].mxu0
    %458 = vmatprep.mubr.f32.mxu0 0.0
    %459 = vmatmul.mubr.f32.gmra.mrb[0].mxu0 %v175
    %v460 = vpop.f32.mrb[0].mxu0
    %v461 = vadd.f32 %v99, %v460
    %v462 = vpop.f32.mrb[0].mxu0
    %463 = vmatprep.mubr.f32.mxu0 0.0
    %464 = vmatmul.mubr.f32.gmra.mrb[0].mxu0 %v178
    %v465 = vpop.f32.mrb[0].mxu0
    %v466 = vadd.f32 %v99, %v465
    %v467 = vpop.f32.mrb[0].mxu0
    %468 = vmatprep.mubr.f32.mxu0 0.0
    %469 = vmatmul.mubr.f32.gmra.mrb[0].mxu0 %v181
    %v470 = vpop.f32.mrb[0].mxu0
    %v471 = vadd.f32 %v99, %v470
    %v472 = vpop.f32.mrb[0].mxu0
    %473 = vmatprep.mubr.f32.mxu0 0.0
    %474 = vmatmul.mubr.f32.gmra.mrb[0].mxu0 %v184
    %v475 = vpop.f32.mrb[0].mxu0
    %v476 = vadd.f32 %v99, %v475
    %v477 = vpop.f32.mrb[0].mxu0
    %478 = vmatprep.mubr.f32.mxu0 0.0
    %479 = vmatmul.mubr.f32.gmra.mrb[0].mxu0 %v187
    %v480 = vpop.f32.mrb[0].mxu0
    %v481 = vadd.f32 %v99, %v480
    %v482 = vpop.f32.mrb[0].mxu0
    %483 = vmatprep.mubr.f32.mxu0 0.0
    %484 = vmatmul.mubr.f32.gmra.mrb[0].mxu0 %v190
    %v485 = vpop.f32.mrb[0].mxu0
    %v486 = vadd.f32 %v99, %v485
    %v487 = vpop.f32.mrb[0].mxu0
    %488 = vmatprep.mubr.f32.mxu0 0.0
    %489 = vmatmul.mubr.f32.gmra.mrb[0].mxu0 %v193
    %v490 = vpop.f32.mrb[0].mxu0
    %v491 = vadd.f32 %v99, %v490
    %v492 = vpop.f32.mrb[0].mxu0
    %493 = vmatprep.mubr.f32.mxu0 0.0
    %494 = vmatmul.mubr.f32.gmra.mrb[0].mxu0 %v196
    %v495 = vpop.f32.mrb[0].mxu0
    %v496 = vadd.f32 %v99, %v495
    %v497 = vpop.f32.mrb[0].mxu0
    %498 = vmatprep.mubr.f32.mxu0 0.0
    %499 = vmatmul.mubr.f32.gmra.mrb[0].mxu0 %v199
    %v500 = vpop.f32.mrb[0].mxu0
    %v501 = vadd.f32 %v99, %v500
    %v502 = vpop.f32.mrb[0].mxu0
    %503 = vmatprep.mubr.f32.mxu0 0.0
    %504 = vmatmul.mubr.f32.gmra.mrb[0].mxu0 %v202
    %v505 = vpop.f32.mrb[0].mxu0
    %v506 = vadd.f32 %v99, %v505
    %v507 = vpop.f32.mrb[0].mxu0
    %508 = vmatprep.mubr.f32.mxu0 0.0
    %509 = vmatmul.mubr.f32.gmra.mrb[0].mxu0 %v205
    %v510 = vpop.f32.mrb[0].mxu0
    %v511 = vadd.f32 %v99, %v510
    %v512 = vpop.f32.mrb[0].mxu0
    %513 = vmatprep.mubr.f32.mxu0 0.0
    %514 = vmatmul.mubr.f32.gmra.mrb[0].mxu0 %v208
    %v515 = vpop.f32.mrb[0].mxu0
    %v516 = vadd.f32 %v99, %v515
    %v517 = vpop.f32.mrb[0].mxu0
    %518 = vmatprep.mubr.f32.mxu0 0.0
    %519 = vmatmul.mubr.f32.gmra.mrb[0].mxu0 %v211
    %v520 = vpop.f32.mrb[0].mxu0
    %v521 = vadd.f32 %v99, %v520
    %v522 = vpop.f32.mrb[0].mxu0
    %523 = vmatprep.mubr.f32.mxu0 0.0
    %524 = vmatmul.mubr.f32.gmra.mrb[0].mxu0 %v214
    %v525 = vpop.f32.mrb[0].mxu0
    %v526 = vadd.f32 %v99, %v525
    %v527 = vpop.f32.mrb[0].mxu0
    %528 = vmatprep.mubr.f32.mxu0 0.0
    %529 = vmatmul.mubr.f32.gmra.mrb[0].mxu0 %v217
    %v530 = vpop.f32.mrb[0].mxu0
    %v531 = vadd.f32 %v99, %v530
    %v532 = vpop.f32.mrb[0].mxu0
    %533 = vmatprep.mubr.f32.mxu0 0.0
    %534 = vmatmul.mubr.f32.gmra.mrb[0].mxu0 %v220
    %v535 = vpop.f32.mrb[0].mxu0
    %v536 = vadd.f32 %v99, %v535
    %v537 = vpop.f32.mrb[0].mxu0
    %538 = vmatprep.mubr.f32.mxu0 0.0
    %539 = vmatmul.mubr.f32.gmra.mrb[0].mxu0 %v223
    %v540 = vpop.f32.mrb[0].mxu0
    %v541 = vadd.f32 %v99, %v540
    %v542 = vpop.f32.mrb[0].mxu0
    %543 = vmatprep.mubr.f32.mxu0 0.0
    %544 = vmatmul.mubr.f32.gmra.mrb[0].mxu0 %v226
    %v545 = vpop.f32.mrb[0].mxu0
    %v546 = vadd.f32 %v99, %v545
    %v547 = vpop.f32.mrb[0].mxu0
    %548 = vmatprep.mubr.f32.mxu0 0.0
    %549 = vmatmul.mubr.f32.gmra.mrb[0].mxu0 %v229
    %v550 = vpop.f32.mrb[0].mxu0
    %v551 = vadd.f32 %v99, %v550
    %v552 = vpop.f32.mrb[0].mxu0
    %553 = vmatprep.mubr.f32.mxu0 0.0
    %554 = vmatmul.mubr.f32.gmra.mrb[0].mxu0 %v232
    %v555 = vpop.f32.mrb[0].mxu0
    %v556 = vadd.f32 %v99, %v555
    %v557 = vpop.f32.mrb[0].mxu0
    %558 = vmatprep.mubr.f32.mxu0 0.0
    %559 = vmatmul.mubr.f32.gmra.mrb[0].mxu0 %v235
    %v560 = vpop.f32.mrb[0].mxu0
    %v561 = vadd.f32 %v99, %v560
    %v562 = vpop.f32.mrb[0].mxu0
    %563 = vmatprep.mubr.f32.mxu0 0.0
    %564 = vmatmul.mubr.f32.gmra.mrb[0].mxu0 %v238
    %v565 = vpop.f32.mrb[0].mxu0
    %v566 = vadd.f32 %v99, %v565
    %v567 = vpop.f32.mrb[0].mxu0
    %568 = vmatprep.mubr.f32.mxu0 0.0
    %569 = vmatmul.mubr.f32.gmra.mrb[0].mxu0 %v241
    %v570 = vpop.f32.mrb[0].mxu0
    %v571 = vadd.f32 %v99, %v570
    %v572 = vpop.f32.mrb[0].mxu0
    %573 = vmatprep.mubr.f32.mxu0 0.0
    %574 = vmatmul.mubr.f32.gmra.mrb[0].mxu0 %v244
    %v575 = vpop.f32.mrb[0].mxu0
    %v576 = vadd.f32 %v99, %v575
    %v577 = vpop.f32.mrb[0].mxu0
    %578 = vmatprep.mubr.f32.mxu0 0.0
    %579 = vmatmul.mubr.f32.gmra.mrb[0].mxu0 %v247
    %v580 = vpop.f32.mrb[0].mxu0
    %v581 = vadd.f32 %v99, %v580
    %v582 = vpop.f32.mrb[0].mxu0
    %583 = vmatprep.mubr.f32.mxu0 0.0
    %584 = vmatmul.mubr.f32.gmra.mrb[0].mxu0 %v250
    %v585 = vpop.f32.mrb[0].mxu0
    %v586 = vadd.f32 %v99, %v585
    %v587 = vpop.f32.mrb[0].mxu0
    %588 = vmatprep.mubr.f32.mxu0 0.0
    %589 = vmatmul.mubr.f32.gmra.mrb[0].mxu0 %v253
    %v590 = vpop.f32.mrb[0].mxu0
    %v591 = vadd.f32 %v99, %v590
    %v592 = vpop.f32.mrb[0].mxu0
    %593 = vmatprep.mubr.f32.mxu0 0.0
    %594 = vmatmul.mubr.f32.gmra.mrb[0].mxu0 %v256
    %v595 = vpop.f32.mrb[0].mxu0
    %v596 = vadd.f32 %v99, %v595
    %v597 = vpop.f32.mrb[0].mxu0
    %598 = vmatprep.mubr.f32.mxu0 0.0
    %599 = vmatmul.mubr.f32.gmra.mrb[0].mxu0 %v259
    %v600 = vpop.f32.mrb[0].mxu0
    %v601 = vadd.f32 %v99, %v600
    %v602 = vpop.f32.mrb[0].mxu0
    %603 = vmatprep.mubr.f32.mxu0 0.0
    %604 = vmatmul.mubr.f32.gmra.mrb[0].mxu0 %v262
    %v605 = vpop.f32.mrb[0].mxu0
    %v606 = vadd.f32 %v99, %v605
    %v607 = vpop.f32.mrb[0].mxu0
    %608 = vmatprep.mubr.f32.mxu0 0.0
    %609 = vmatmul.mubr.f32.gmra.mrb[0].mxu0 %v265
    %v610 = vpop.f32.mrb[0].mxu0
    %v611 = vadd.f32 %v99, %v610
    %v612 = vpop.f32.mrb[0].mxu0
    %613 = vmatprep.mubr.f32.mxu0 0.0
    %614 = vmatmul.mubr.f32.gmra.mrb[0].mxu0 %v268
    %v615 = vpop.f32.mrb[0].mxu0
    %v616 = vadd.f32 %v99, %v615
    %v617 = vpop.f32.mrb[0].mxu0
    %618 = vdwg.mxu0
    %v619 = vmax.f32 %v341, 0.0
    %v620 = vmax.f32 %v346, 0.0
    %v621 = vmax.f32 %v351, 0.0
    %v622 = vmax.f32 %v356, 0.0
    %v623 = vmax.f32 %v361, 0.0
    %v624 = vmax.f32 %v366, 0.0
    %v625 = vmax.f32 %v371, 0.0
    %v626 = vmax.f32 %v376, 0.0
    %v627 = vmax.f32 %v381, 0.0
    %v628 = vmax.f32 %v386, 0.0
    %v629 = vmax.f32 %v391, 0.0
    %v630 = vmax.f32 %v396, 0.0
    %v631 = vmax.f32 %v401, 0.0
    %v632 = vmax.f32 %v406, 0.0
    %v633 = vmax.f32 %v411, 0.0
    %v634 = vmax.f32 %v416, 0.0
    %v635 = vmax.f32 %v421, 0.0
    %v636 = vmax.f32 %v426, 0.0
    %v637 = vmax.f32 %v431, 0.0
    %v638 = vmax.f32 %v436, 0.0
    %v639 = vmax.f32 %v441, 0.0
    %v640 = vmax.f32 %v446, 0.0
    %v641 = vmax.f32 %v451, 0.0
    %v642 = vmax.f32 %v456, 0.0
    %v643 = vmax.f32 %v461, 0.0
    %v644 = vmax.f32 %v466, 0.0
    %v645 = vmax.f32 %v471, 0.0
    %v646 = vmax.f32 %v476, 0.0
    %v647 = vmax.f32 %v481, 0.0
    %v648 = vmax.f32 %v486, 0.0
    %v649 = vmax.f32 %v491, 0.0
    %v650 = vmax.f32 %v496, 0.0
    %v651 = vmax.f32 %v501, 0.0
    %v652 = vmax.f32 %v506, 0.0
    %v653 = vmax.f32 %v511, 0.0
    %v654 = vmax.f32 %v516, 0.0
    %v655 = vmax.f32 %v521, 0.0
    %v656 = vmax.f32 %v526, 0.0
    %v657 = vmax.f32 %v531, 0.0
    %v658 = vmax.f32 %v536, 0.0
    %v659 = vmax.f32 %v541, 0.0
    %v660 = vmax.f32 %v546, 0.0
    %v661 = vmax.f32 %v551, 0.0
    %v662 = vmax.f32 %v556, 0.0
    %v663 = vmax.f32 %v561, 0.0
    %v664 = vmax.f32 %v566, 0.0
    %v665 = vmax.f32 %v571, 0.0
    %v666 = vmax.f32 %v576, 0.0
    %v667 = vmax.f32 %v581, 0.0
    %v668 = vmax.f32 %v586, 0.0
    %v669 = vmax.f32 %v591, 0.0
    %v670 = vmax.f32 %v596, 0.0
    %v671 = vmax.f32 %v601, 0.0
    %v672 = vmax.f32 %v606, 0.0
    %v673 = vmax.f32 %v611, 0.0
    %v674 = vmax.f32 %v616, 0.0
    %v675 = vmax.f32 %v619, %v621
    %v676 = vmax.f32 %v620, %v622
    %v677 = vmax.f32 %v623, %v625
    %v678 = vmax.f32 %v624, %v626
    %v679 = vmax.f32 %v627, %v629
    %v680 = vmax.f32 %v628, %v630
    %v681 = vmax.f32 %v631, %v633
    %v682 = vmax.f32 %v632, %v634
    %v683 = vmax.f32 %v635, %v637
    %v684 = vmax.f32 %v636, %v638
    %v685 = vmax.f32 %v639, %v641
    %v686 = vmax.f32 %v640, %v642
    %v687 = vmax.f32 %v643, %v645
    %v688 = vmax.f32 %v644, %v646
    %v689 = vmax.f32 %v647, %v649
    %v690 = vmax.f32 %v648, %v650
    %v691 = vmax.f32 %v651, %v653
    %v692 = vmax.f32 %v652, %v654
    %v693 = vmax.f32 %v655, %v657
    %v694 = vmax.f32 %v656, %v658
    %v695 = vmax.f32 %v659, %v661
    %v696 = vmax.f32 %v660, %v662
    %v697 = vmax.f32 %v663, %v665
    %v698 = vmax.f32 %v664, %v666
    %v699 = vmax.f32 %v667, %v669
    %v700 = vmax.f32 %v668, %v670
    %v701 = vmax.f32 %v671, %v673
    %v702 = vmax.f32 %v672, %v674
    %703 = vst [vmem:[#allocation2] sm:$0xff] %v675
    %704 = vst [vmem:[#allocation2 + $0x8] sm:$0xff] %v676
    %705 = vst [vmem:[#allocation2 + $0x10] sm:$0xff] %v677
    %706 = vst [vmem:[#allocation2 + $0x18] sm:$0xff] %v678
    %707 = vst [vmem:[#allocation2 + $0x20] sm:$0xff] %v679
    %708 = vst [vmem:[#allocation2 + $0x28] sm:$0xff] %v680
    %709 = vst [vmem:[#allocation2 + $0x30] sm:$0xff] %v681
    %710 = vst [vmem:[#allocation2 + $0x38] sm:$0xff] %v682
    %711 = vst [vmem:[#allocation2 + $0x40] sm:$0xff] %v683
    %712 = vst [vmem:[#allocation2 + $0x48] sm:$0xff] %v684
    %713 = vst [vmem:[#allocation2 + $0x50] sm:$0xff] %v685
    %714 = vst [vmem:[#allocation2 + $0x58] sm:$0xff] %v686
    %715 = vst [vmem:[#allocation2 + $0x60] sm:$0xff] %v687
    %716 = vst [vmem:[#allocation2 + $0x68] sm:$0xff] %v688
    %717 = vst [vmem:[#allocation2 + $0x70] sm:$0xff] %v689
    %718 = vst [vmem:[#allocation2 + $0x78] sm:$0xff] %v690
    %719 = vst [vmem:[#allocation2 + $0x80] sm:$0xff] %v691
    %720 = vst [vmem:[#allocation2 + $0x88] sm:$0xff] %v692
    %721 = vst [vmem:[#allocation2 + $0x90] sm:$0xff] %v693
    %722 = vst [vmem:[#allocation2 + $0x98] sm:$0xff] %v694
    %723 = vst [vmem:[#allocation2 + $0xa0] sm:$0xff] %v695
    %724 = vst [vmem:[#allocation2 + $0xa8] sm:$0xff] %v696
    %725 = vst [vmem:[#allocation2 + $0xb0] sm:$0xff] %v697
    %726 = vst [vmem:[#allocation2 + $0xb8] sm:$0xff] %v698
    %727 = vst [vmem:[#allocation2 + $0xc0] sm:$0xff] %v699
    %728 = vst [vmem:[#allocation2 + $0xc8] sm:$0xff] %v700
    %729 = vst [vmem:[#allocation2 + $0xd0] sm:$0xff] %v701
    %730 = vst [vmem:[#allocation2 + $0xd8] sm:$0xff] %v702
    %v731 = vld [vmem:[#allocation2] ss:$2 sm:$0x7f]
    %s732 = scalar_lea.vmem [#allocation2], 16
    %v733 = vld [vmem:[%s732] ss:$2 sm:$0x7f]
    %s734 = scalar_lea.vmem [#allocation2], 32
    %v735 = vld [vmem:[%s734] ss:$2 sm:$0x7f]
    %s736 = scalar_lea.vmem [#allocation2], 48
    %v737 = vld [vmem:[%s736] ss:$2 sm:$0x7f]
    %s738 = scalar_lea.vmem [#allocation2], 64
    %v739 = vld [vmem:[%s738] ss:$2 sm:$0x7f]
    %s740 = scalar_lea.vmem [#allocation2], 80
    %v741 = vld [vmem:[%s740] ss:$2 sm:$0x7f]
    %s742 = scalar_lea.vmem [#allocation2], 96
    %v743 = vld [vmem:[%s742] ss:$2 sm:$0x7f]
    %s744 = scalar_lea.vmem [#allocation2], 112
    %v745 = vld [vmem:[%s744] ss:$2 sm:$0x7f]
    %s746 = scalar_lea.vmem [#allocation2], 128
    %v747 = vld [vmem:[%s746] ss:$2 sm:$0x7f]
    %s748 = scalar_lea.vmem [#allocation2], 144
    %v749 = vld [vmem:[%s748] ss:$2 sm:$0x7f]
    %s750 = scalar_lea.vmem [#allocation2], 160
    %v751 = vld [vmem:[%s750] ss:$2 sm:$0x7f]
    %s752 = scalar_lea.vmem [#allocation2], 176
    %v753 = vld [vmem:[%s752] ss:$2 sm:$0x7f]
    %s754 = scalar_lea.vmem [#allocation2], 192
    %v755 = vld [vmem:[%s754] ss:$2 sm:$0x7f]
    %s756 = scalar_lea.vmem [#allocation2], 208
    %v757 = vld [vmem:[%s756] ss:$2 sm:$0x7f]
    %s758 = scalar_lea.vmem [#allocation2], 1
    %v759 = vld [vmem:[%s758] ss:$2 sm:$0x7f]
    %s760 = scalar_lea.vmem [#allocation2], 17
    %v761 = vld [vmem:[%s760] ss:$2 sm:$0x7f]
    %s762 = scalar_lea.vmem [#allocation2], 33
    %v763 = vld [vmem:[%s762] ss:$2 sm:$0x7f]
    %s764 = scalar_lea.vmem [#allocation2], 49
    %v765 = vld [vmem:[%s764] ss:$2 sm:$0x7f]
    %s766 = scalar_lea.vmem [#allocation2], 65
    %v767 = vld [vmem:[%s766] ss:$2 sm:$0x7f]
    %s768 = scalar_lea.vmem [#allocation2], 81
    %v769 = vld [vmem:[%s768] ss:$2 sm:$0x7f]
    %s770 = scalar_lea.vmem [#allocation2], 97
    %v771 = vld [vmem:[%s770] ss:$2 sm:$0x7f]
    %s772 = scalar_lea.vmem [#allocation2], 113
    %v773 = vld [vmem:[%s772] ss:$2 sm:$0x7f]
    %s774 = scalar_lea.vmem [#allocation2], 129
    %v775 = vld [vmem:[%s774] ss:$2 sm:$0x7f]
    %s776 = scalar_lea.vmem [#allocation2], 145
    %v777 = vld [vmem:[%s776] ss:$2 sm:$0x7f]
    %s778 = scalar_lea.vmem [#allocation2], 161
    %v779 = vld [vmem:[%s778] ss:$2 sm:$0x7f]
    %s780 = scalar_lea.vmem [#allocation2], 177
    %v781 = vld [vmem:[%s780] ss:$2 sm:$0x7f]
    %s782 = scalar_lea.vmem [#allocation2], 193
    %v783 = vld [vmem:[%s782] ss:$2 sm:$0x7f]
    %s784 = scalar_lea.vmem [#allocation2], 209
    %v785 = vld [vmem:[%s784] ss:$2 sm:$0x7f]
    %v786 = vmax.f32 %v731, %v759
    %v787 = vmax.f32 %v733, %v761
    %v788 = vmax.f32 %v735, %v763
    %v789 = vmax.f32 %v737, %v765
    %v790 = vmax.f32 %v739, %v767
    %v791 = vmax.f32 %v741, %v769
    %v792 = vmax.f32 %v743, %v771
    %v793 = vmax.f32 %v745, %v773
    %v794 = vmax.f32 %v747, %v775
    %v795 = vmax.f32 %v749, %v777
    %v796 = vmax.f32 %v751, %v779
    %v797 = vmax.f32 %v753, %v781
    %v798 = vmax.f32 %v755, %v783
    %v799 = vmax.f32 %v757, %v785
    %p800 = scmp.eq.s32.totalorder 0, 0
    // Predicated region
    $region38: #{forward.1} parent=1 // pred_check
      %p801 = pneg %p800
    $region39: #{forward.1} parent=1 // pred_check_branch
      %803 = sbr.rel (%p801) target = $region41
    $region40: #{forward.1} parent=1 // pred_region
      %804 = vst [vmem:[#allocation3] sm:$0xff] 0.0
      %805 = vst [vmem:[#allocation3 + $0x8] sm:$0xff] 0.0
      %806 = vst [vmem:[#allocation3 + $0x10] sm:$0xff] 0.0
      %807 = vst [vmem:[#allocation3 + $0x18] sm:$0xff] 0.0
      %808 = vst [vmem:[#allocation3 + $0x20] sm:$0xff] 0.0
      %809 = vst [vmem:[#allocation3 + $0x28] sm:$0xff] 0.0
      %810 = vst [vmem:[#allocation3 + $0x30] sm:$0xff] 0.0
      %811 = vst [vmem:[#allocation3 + $0x38] sm:$0xff] 0.0
      %812 = vst [vmem:[#allocation3 + $0x40] sm:$0xff] 0.0
      %813 = vst [vmem:[#allocation3 + $0x48] sm:$0xff] 0.0
      %814 = vst [vmem:[#allocation3 + $0x50] sm:$0xff] 0.0
      %815 = vst [vmem:[#allocation3 + $0x58] sm:$0xff] 0.0
      %816 = vst [vmem:[#allocation3 + $0x60] sm:$0xff] 0.0
      %817 = vst [vmem:[#allocation3 + $0x68] sm:$0xff] 0.0
      %818 = vst [vmem:[#allocation3 + $0x70] sm:$0xff] 0.0
      %819 = vst [vmem:[#allocation3 + $0x78] sm:$0xff] 0.0
    $region41: #{forward.1} parent=1 // pred_fallthru
      _
    %820 = vst [vmem:[#allocation3] sm:$0x7f] %v786
    %821 = vst [vmem:[#allocation3 + $0x8] sm:$0x7f] %v787
    %822 = vst [vmem:[#allocation3 + $0x10] sm:$0x7f] %v788
    %823 = vst [vmem:[#allocation3 + $0x18] sm:$0x7f] %v789
    %824 = vst [vmem:[#allocation3 + $0x20] sm:$0x7f] %v790
    %825 = vst [vmem:[#allocation3 + $0x28] sm:$0x7f] %v791
    %826 = vst [vmem:[#allocation3 + $0x30] sm:$0x7f] %v792
    %827 = vst [vmem:[#allocation3 + $0x40] sm:$0x7f] %v793
    %828 = vst [vmem:[#allocation3 + $0x48] sm:$0x7f] %v794
    %829 = vst [vmem:[#allocation3 + $0x50] sm:$0x7f] %v795
    %830 = vst [vmem:[#allocation3 + $0x58] sm:$0x7f] %v796
    %831 = vst [vmem:[#allocation3 + $0x60] sm:$0x7f] %v797
    %832 = vst [vmem:[#allocation3 + $0x68] sm:$0x7f] %v798
    %833 = vst [vmem:[#allocation3 + $0x70] sm:$0x7f] %v799
    %v834 = vld [vmem:[#allocation3] sm:$0xff]
    %v835 = vld [vmem:[#allocation3 + $0x8] sm:$0xff]
    %v836 = vld [vmem:[#allocation3 + $0x10] sm:$0xff]
    %v837 = vld [vmem:[#allocation3 + $0x18] sm:$0xff]
    %v838 = vld [vmem:[#allocation3 + $0x20] sm:$0xff]
    %v839 = vld [vmem:[#allocation3 + $0x28] sm:$0xff]
    %v840 = vld [vmem:[#allocation3 + $0x30] sm:$0xff]
    %v841 = vld [vmem:[#allocation3 + $0x38] sm:$0xff]
    %v842 = vld [vmem:[#allocation3 + $0x40] sm:$0xff]
    %v843 = vld [vmem:[#allocation3 + $0x48] sm:$0xff]
    %v844 = vld [vmem:[#allocation3 + $0x50] sm:$0xff]
    %v845 = vld [vmem:[#allocation3 + $0x58] sm:$0xff]
    %v846 = vld [vmem:[#allocation3 + $0x60] sm:$0xff]
    %v847 = vld [vmem:[#allocation3 + $0x68] sm:$0xff]
    %v848 = vld [vmem:[#allocation3 + $0x70] sm:$0xff]
    %v849 = vld [vmem:[#allocation3 + $0x78] sm:$0xff]
    %v850 = vld [vmem:[%s3] sm:$0xff]
    %v851 = vld [vmem:[%s3 + $0x8] sm:$0xff]
    %v852 = vld [vmem:[%s3 + $0x10] sm:$0xff]
    %v853 = vld [vmem:[%s3 + $0x18] sm:$0xff]
    %v854 = vld [vmem:[%s3 + $0x20] sm:$0xff]
    %v855 = vld [vmem:[%s3 + $0x28] sm:$0xff]
    %v856 = vld [vmem:[%s3 + $0x30] sm:$0xff]
    %v857 = vld [vmem:[%s3 + $0x38] sm:$0xff]
    %v858 = vld [vmem:[%s3 + $0x40] sm:$0xff]
    %v859 = vld [vmem:[%s3 + $0x48] sm:$0xff]
    %v860 = vld [vmem:[%s3 + $0x50] sm:$0xff]
    %v861 = vld [vmem:[%s3 + $0x58] sm:$0xff]
    %v862 = vld [vmem:[%s3 + $0x60] sm:$0xff]
    %v863 = vld [vmem:[%s3 + $0x68] sm:$0xff]
    %v864 = vld [vmem:[%s3 + $0x70] sm:$0xff]
    %v865 = vld [vmem:[%s3 + $0x78] sm:$0xff]
    %vm878 = vcmask 1046528
    %v879 = vrot.slane %v834, 1
    %v880 = vrot.slane %v835, 1
    %v881 = vsel %vm878, %v879, %v880
    %v882 = vrot.slane %v836, 1
    %v883 = vsel %vm878, %v880, %v882
    %v884 = vrot.slane %v837, 1
    %v885 = vsel %vm878, %v882, %v884
    %v886 = vrot.slane %v838, 1
    %v887 = vsel %vm878, %v884, %v886
    %v888 = vrot.slane %v839, 1
    %v889 = vsel %vm878, %v886, %v888
    %v890 = vrot.slane %v842, 1
    %v891 = vrot.slane %v843, 1
    %v892 = vsel %vm878, %v890, %v891
    %v893 = vrot.slane %v844, 1
    %v894 = vsel %vm878, %v891, %v893
    %v895 = vrot.slane %v845, 1
    %v896 = vsel %vm878, %v893, %v895
    %v897 = vrot.slane %v846, 1
    %v898 = vsel %vm878, %v895, %v897
    %v899 = vrot.slane %v847, 1
    %v900 = vsel %vm878, %v897, %v899
    %s911 = scalar_lea.vmem %s3, 128
    %v912 = vld [vmem:[%s911] sm:$0xff]
    %v913 = vld [vmem:[%s911 + $0x8] sm:$0xff]
    %v914 = vld [vmem:[%s911 + $0x10] sm:$0xff]
    %v915 = vld [vmem:[%s911 + $0x18] sm:$0xff]
    %v916 = vld [vmem:[%s911 + $0x20] sm:$0xff]
    %v917 = vld [vmem:[%s911 + $0x28] sm:$0xff]
    %v918 = vld [vmem:[%s911 + $0x30] sm:$0xff]
    %v919 = vld [vmem:[%s911 + $0x38] sm:$0xff]
    %v920 = vld [vmem:[%s911 + $0x40] sm:$0xff]
    %v921 = vld [vmem:[%s911 + $0x48] sm:$0xff]
    %v922 = vld [vmem:[%s911 + $0x50] sm:$0xff]
    %v923 = vld [vmem:[%s911 + $0x58] sm:$0xff]
    %v924 = vld [vmem:[%s911 + $0x60] sm:$0xff]
    %v925 = vld [vmem:[%s911 + $0x68] sm:$0xff]
    %v926 = vld [vmem:[%s911 + $0x70] sm:$0xff]
    %v927 = vld [vmem:[%s911 + $0x78] sm:$0xff]
    %928 = vmatprep.subr.mxu0 0.0
    %929 = vmatpush1.msra.mxu0 %v912
    %930 = vmatprep.subr.mxu0 0.0
    %931 = vmatpush1.msra.mxu0 %v913
    %932 = vmatprep.subr.mxu0 0.0
    %933 = vmatpush1.msra.mxu0 %v914
    %934 = vmatprep.subr.mxu0 0.0
    %935 = vmatpush1.msra.mxu0 %v915
    %936 = vmatprep.subr.mxu0 0.0
    %937 = vmatpush1.msra.mxu0 %v916
    %938 = vmatprep.subr.mxu0 0.0
    %939 = vmatpush1.msra.mxu0 %v917
    %940 = vmatprep.subr.mxu0 0.0
    %941 = vmatpush1.msra.mxu0 %v918
    %942 = vmatprep.subr.mxu0 0.0
    %943 = vmatpush1.msra.mxu0 %v919
    %944 = vmatprep.subr.mxu0 0.0
    %945 = vmatpush1.msra.mxu0 %v920
    %946 = vmatprep.subr.mxu0 0.0
    %947 = vmatpush1.msra.mxu0 %v921
    %948 = vmatprep.subr.mxu0 0.0
    %949 = vmatpush1.msra.mxu0 %v922
    %950 = vmatprep.subr.mxu0 0.0
    %951 = vmatpush1.msra.mxu0 %v923
    %952 = vmatprep.subr.mxu0 0.0
    %953 = vmatpush1.msra.mxu0 %v924
    %954 = vmatprep.subr.mxu0 0.0
    %955 = vmatpush1.msra.mxu0 %v925
    %956 = vmatprep.subr.mxu0 0.0
    %957 = vmatpush1.msra.mxu0 %v926
    %958 = vmatprep.subr.mxu0 0.0
    %959 = vmatpush1.msra.mxu0 %v927
    %960 = vmatprep.subr.mxu0 0.0
    %961 = vmatpush1.msra.mxu0 0.0
    %962 = vmatprep.subr.mxu0 0.0
    %963 = vmatpush1.msra.mxu0 0.0
    %964 = vmatprep.subr.mxu0 0.0
    %965 = vmatpush1.msra.mxu0 0.0
    %966 = vmatprep.subr.mxu0 0.0
    %967 = vmatpush1.msra.mxu0 0.0
    %968 = vmatprep.subr.mxu0 0.0
    %969 = vmatpush1.msra.mxu0 0.0
    %970 = vmatprep.subr.mxu0 0.0
    %971 = vmatpush1.msra.mxu0 0.0
    %972 = vmatprep.subr.mxu0 0.0
    %973 = vmatpush1.msra.mxu0 0.0
    %974 = vmatprep.subr.mxu0 0.0
    %975 = vmatpush1.msra.mxu0 0.0
    %976 = vmatprep.subr.mxu0 0.0
    %977 = vmatpush1.msra.mxu0 0.0
    %978 = vmatprep.subr.mxu0 0.0
    %979 = vmatpush1.msra.mxu0 0.0
    %980 = vmatprep.subr.mxu0 0.0
    %981 = vmatpush1.msra.mxu0 0.0
    %982 = vmatprep.subr.mxu0 0.0
    %983 = vmatpush1.msra.mxu0 0.0
    %984 = vmatprep.subr.mxu0 0.0
    %985 = vmatpush1.msra.mxu0 0.0
    %986 = vmatprep.subr.mxu0 0.0
    %987 = vmatpush1.msra.mxu0 0.0
    %988 = vmatprep.subr.mxu0 0.0
    %989 = vmatpush1.msra.mxu0 0.0
    %990 = vmatprep.subr.mxu0 0.0
    %991 = vmatpush1.msra.mxu0 0.0
    %992 = vmatprep.mubr.f32.mxu0 0.0
    %993 = vmatmul.mubr.f32.gmra.mrb[0].mxu0 %v881
    %v994 = vpop.f32.mrb[0].mxu0
    %v995 = vadd.f32 0.0, %v994
    %v996 = vpop.f32.mrb[0].mxu0
    %997 = vmatprep.mubr.f32.mxu0 0.0
    %998 = vmatmul.mubr.f32.gmra.mrb[0].mxu0 %v883
    %v999 = vpop.f32.mrb[0].mxu0
    %v1000 = vadd.f32 0.0, %v999
    %v1001 = vpop.f32.mrb[0].mxu0
    %1002 = vmatprep.mubr.f32.mxu0 0.0
    %1003 = vmatmul.mubr.f32.gmra.mrb[0].mxu0 %v885
    %v1004 = vpop.f32.mrb[0].mxu0
    %v1005 = vadd.f32 0.0, %v1004
    %v1006 = vpop.f32.mrb[0].mxu0
    %1007 = vmatprep.mubr.f32.mxu0 0.0
    %1008 = vmatmul.mubr.f32.gmra.mrb[0].mxu0 %v887
    %v1009 = vpop.f32.mrb[0].mxu0
    %v1010 = vadd.f32 0.0, %v1009
    %v1011 = vpop.f32.mrb[0].mxu0
    %1012 = vmatprep.mubr.f32.mxu0 0.0
    %1013 = vmatmul.mubr.f32.gmra.mrb[0].mxu0 %v889
    %v1014 = vpop.f32.mrb[0].mxu0
    %v1015 = vpop.f32.mrb[0].mxu0
    %1016 = vmatprep.mubr.f32.mxu0 0.0
    %1017 = vmatmul.mubr.f32.gmra.mrb[0].mxu0 %v892
    %v1018 = vpop.f32.mrb[0].mxu0
    %v1019 = vadd.f32 0.0, %v1018
    %v1020 = vpop.f32.mrb[0].mxu0
    %1021 = vmatprep.mubr.f32.mxu0 0.0
    %1022 = vmatmul.mubr.f32.gmra.mrb[0].mxu0 %v894
    %v1023 = vpop.f32.mrb[0].mxu0
    %v1024 = vadd.f32 0.0, %v1023
    %v1025 = vpop.f32.mrb[0].mxu0
    %1026 = vmatprep.mubr.f32.mxu0 0.0
    %1027 = vmatmul.mubr.f32.gmra.mrb[0].mxu0 %v896
    %v1028 = vpop.f32.mrb[0].mxu0
    %v1029 = vadd.f32 0.0, %v1028
    %v1030 = vpop.f32.mrb[0].mxu0
    %1031 = vmatprep.mubr.f32.mxu0 0.0
    %1032 = vmatmul.mubr.f32.gmra.mrb[0].mxu0 %v898
    %v1033 = vpop.f32.mrb[0].mxu0
    %v1034 = vadd.f32 0.0, %v1033
    %v1035 = vpop.f32.mrb[0].mxu0
    %1036 = vmatprep.mubr.f32.mxu0 0.0
    %1037 = vmatmul.mubr.f32.gmra.mrb[0].mxu0 %v900
    %v1038 = vpop.f32.mrb[0].mxu0
    %v1039 = vpop.f32.mrb[0].mxu0
    %1040 = vdwg.mxu0
    %1041 = vmatprep.subr.mxu0 0.0
    %1042 = vmatpush1.msra.mxu0 %v850
    %1043 = vmatprep.subr.mxu0 0.0
    %1044 = vmatpush1.msra.mxu0 %v851
    %1045 = vmatprep.subr.mxu0 0.0
    %1046 = vmatpush1.msra.mxu0 %v852
    %1047 = vmatprep.subr.mxu0 0.0
    %1048 = vmatpush1.msra.mxu0 %v853
    %1049 = vmatprep.subr.mxu0 0.0
    %1050 = vmatpush1.msra.mxu0 %v854
    %1051 = vmatprep.subr.mxu0 0.0
    %1052 = vmatpush1.msra.mxu0 %v855
    %1053 = vmatprep.subr.mxu0 0.0
    %1054 = vmatpush1.msra.mxu0 %v856
    %1055 = vmatprep.subr.mxu0 0.0
    %1056 = vmatpush1.msra.mxu0 %v857
    %1057 = vmatprep.subr.mxu0 0.0
    %1058 = vmatpush1.msra.mxu0 %v858
    %1059 = vmatprep.subr.mxu0 0.0
    %1060 = vmatpush1.msra.mxu0 %v859
    %1061 = vmatprep.subr.mxu0 0.0
    %1062 = vmatpush1.msra.mxu0 %v860
    %1063 = vmatprep.subr.mxu0 0.0
    %1064 = vmatpush1.msra.mxu0 %v861
    %1065 = vmatprep.subr.mxu0 0.0
    %1066 = vmatpush1.msra.mxu0 %v862
    %1067 = vmatprep.subr.mxu0 0.0
    %1068 = vmatpush1.msra.mxu0 %v863
    %1069 = vmatprep.subr.mxu0 0.0
    %1070 = vmatpush1.msra.mxu0 %v864
    %1071 = vmatprep.subr.mxu0 0.0
    %1072 = vmatpush1.msra.mxu0 %v865
    %1073 = vmatprep.subr.mxu0 0.0
    %1074 = vmatpush1.msra.mxu0 0.0
    %1075 = vmatprep.subr.mxu0 0.0
    %1076 = vmatpush1.msra.mxu0 0.0
    %1077 = vmatprep.subr.mxu0 0.0
    %1078 = vmatpush1.msra.mxu0 0.0
    %1079 = vmatprep.subr.mxu0 0.0
    %1080 = vmatpush1.msra.mxu0 0.0
    %1081 = vmatprep.subr.mxu0 0.0
    %1082 = vmatpush1.msra.mxu0 0.0
    %1083 = vmatprep.subr.mxu0 0.0
    %1084 = vmatpush1.msra.mxu0 0.0
    %1085 = vmatprep.subr.mxu0 0.0
    %1086 = vmatpush1.msra.mxu0 0.0
    %1087 = vmatprep.subr.mxu0 0.0
    %1088 = vmatpush1.msra.mxu0 0.0
    %1089 = vmatprep.subr.mxu0 0.0
    %1090 = vmatpush1.msra.mxu0 0.0
    %1091 = vmatprep.subr.mxu0 0.0
    %1092 = vmatpush1.msra.mxu0 0.0
    %1093 = vmatprep.subr.mxu0 0.0
    %1094 = vmatpush1.msra.mxu0 0.0
    %1095 = vmatprep.subr.mxu0 0.0
    %1096 = vmatpush1.msra.mxu0 0.0
    %1097 = vmatprep.subr.mxu0 0.0
    %1098 = vmatpush1.msra.mxu0 0.0
    %1099 = vmatprep.subr.mxu0 0.0
    %1100 = vmatpush1.msra.mxu0 0.0
    %1101 = vmatprep.subr.mxu0 0.0
    %1102 = vmatpush1.msra.mxu0 0.0
    %1103 = vmatprep.subr.mxu0 0.0
    %1104 = vmatpush1.msra.mxu0 0.0
    %1105 = vmatprep.mubr.f32.mxu0 0.0
    %1106 = vmatmul.mubr.f32.gmra.mrb[0].mxu0 %v834
    %v1107 = vpop.f32.mrb[0].mxu0
    %v1108 = vadd.f32 %v995, %v1107
    %v1109 = vpop.f32.mrb[0].mxu0
    %1110 = vmatprep.mubr.f32.mxu0 0.0
    %1111 = vmatmul.mubr.f32.gmra.mrb[0].mxu0 %v835
    %v1112 = vpop.f32.mrb[0].mxu0
    %v1113 = vadd.f32 %v1000, %v1112
    %v1114 = vpop.f32.mrb[0].mxu0
    %1115 = vmatprep.mubr.f32.mxu0 0.0
    %1116 = vmatmul.mubr.f32.gmra.mrb[0].mxu0 %v836
    %v1117 = vpop.f32.mrb[0].mxu0
    %v1118 = vadd.f32 %v1005, %v1117
    %v1119 = vpop.f32.mrb[0].mxu0
    %1120 = vmatprep.mubr.f32.mxu0 0.0
    %1121 = vmatmul.mubr.f32.gmra.mrb[0].mxu0 %v837
    %v1122 = vpop.f32.mrb[0].mxu0
    %v1123 = vadd.f32 %v1010, %v1122
    %v1124 = vpop.f32.mrb[0].mxu0
    %1125 = vmatprep.mubr.f32.mxu0 0.0
    %1126 = vmatmul.mubr.f32.gmra.mrb[0].mxu0 %v838
    %v1127 = vpop.f32.mrb[0].mxu0
    %v1128 = vpop.f32.mrb[0].mxu0
    %1129 = vmatprep.mubr.f32.mxu0 0.0
    %1130 = vmatmul.mubr.f32.gmra.mrb[0].mxu0 %v842
    %v1131 = vpop.f32.mrb[0].mxu0
    %v1132 = vadd.f32 %v1019, %v1131
    %v1133 = vpop.f32.mrb[0].mxu0
    %1134 = vmatprep.mubr.f32.mxu0 0.0
    %1135 = vmatmul.mubr.f32.gmra.mrb[0].mxu0 %v843
    %v1136 = vpop.f32.mrb[0].mxu0
    %v1137 = vadd.f32 %v1024, %v1136
    %v1138 = vpop.f32.mrb[0].mxu0
    %1139 = vmatprep.mubr.f32.mxu0 0.0
    %1140 = vmatmul.mubr.f32.gmra.mrb[0].mxu0 %v844
    %v1141 = vpop.f32.mrb[0].mxu0
    %v1142 = vadd.f32 %v1029, %v1141
    %v1143 = vpop.f32.mrb[0].mxu0
    %1144 = vmatprep.mubr.f32.mxu0 0.0
    %1145 = vmatmul.mubr.f32.gmra.mrb[0].mxu0 %v845
    %v1146 = vpop.f32.mrb[0].mxu0
    %v1147 = vadd.f32 %v1034, %v1146
    %v1148 = vpop.f32.mrb[0].mxu0
    %1149 = vmatprep.mubr.f32.mxu0 0.0
    %1150 = vmatmul.mubr.f32.gmra.mrb[0].mxu0 %v846
    %v1151 = vpop.f32.mrb[0].mxu0
    %v1152 = vpop.f32.mrb[0].mxu0
    %1153 = vdwg.mxu0
    %vm1154 = vcmask 1045504
    %v1155 = vrot.slane %v834, 2
    %v1156 = vrot.slane %v835, 2
    %v1157 = vsel %vm1154, %v1155, %v1156
    %v1158 = vrot.slane %v836, 2
    %v1159 = vsel %vm1154, %v1156, %v1158
    %v1160 = vrot.slane %v837, 2
    %v1161 = vsel %vm1154, %v1158, %v1160
    %v1162 = vrot.slane %v838, 2
    %v1163 = vsel %vm1154, %v1160, %v1162
    %v1164 = vrot.slane %v839, 2
    %v1165 = vsel %vm1154, %v1162, %v1164
    %v1166 = vrot.slane %v842, 2
    %v1167 = vrot.slane %v843, 2
    %v1168 = vsel %vm1154, %v1166, %v1167
    %v1169 = vrot.slane %v844, 2
    %v1170 = vsel %vm1154, %v1167, %v1169
    %v1171 = vrot.slane %v845, 2
    %v1172 = vsel %vm1154, %v1169, %v1171
    %v1173 = vrot.slane %v846, 2
    %v1174 = vsel %vm1154, %v1171, %v1173
    %v1175 = vrot.slane %v847, 2
    %v1176 = vsel %vm1154, %v1173, %v1175
    %s1187 = scalar_lea.vmem %s3, 256
    %v1188 = vld [vmem:[%s1187] sm:$0xff]
    %v1189 = vld [vmem:[%s1187 + $0x8] sm:$0xff]
    %v1190 = vld [vmem:[%s1187 + $0x10] sm:$0xff]
    %v1191 = vld [vmem:[%s1187 + $0x18] sm:$0xff]
    %v1192 = vld [vmem:[%s1187 + $0x20] sm:$0xff]
    %v1193 = vld [vmem:[%s1187 + $0x28] sm:$0xff]
    %v1194 = vld [vmem:[%s1187 + $0x30] sm:$0xff]
    %v1195 = vld [vmem:[%s1187 + $0x38] sm:$0xff]
    %v1196 = vld [vmem:[%s1187 + $0x40] sm:$0xff]
    %v1197 = vld [vmem:[%s1187 + $0x48] sm:$0xff]
    %v1198 = vld [vmem:[%s1187 + $0x50] sm:$0xff]
    %v1199 = vld [vmem:[%s1187 + $0x58] sm:$0xff]
    %v1200 = vld [vmem:[%s1187 + $0x60] sm:$0xff]
    %v1201 = vld [vmem:[%s1187 + $0x68] sm:$0xff]
    %v1202 = vld [vmem:[%s1187 + $0x70] sm:$0xff]
    %v1203 = vld [vmem:[%s1187 + $0x78] sm:$0xff]
    %1204 = vmatprep.subr.mxu0 0.0
    %1205 = vmatpush1.msra.mxu0 %v1188
    %1206 = vmatprep.subr.mxu0 0.0
    %1207 = vmatpush1.msra.mxu0 %v1189
    %1208 = vmatprep.subr.mxu0 0.0
    %1209 = vmatpush1.msra.mxu0 %v1190
    %1210 = vmatprep.subr.mxu0 0.0
    %1211 = vmatpush1.msra.mxu0 %v1191
    %1212 = vmatprep.subr.mxu0 0.0
    %1213 = vmatpush1.msra.mxu0 %v1192
    %1214 = vmatprep.subr.mxu0 0.0
    %1215 = vmatpush1.msra.mxu0 %v1193
    %1216 = vmatprep.subr.mxu0 0.0
    %1217 = vmatpush1.msra.mxu0 %v1194
    %1218 = vmatprep.subr.mxu0 0.0
    %1219 = vmatpush1.msra.mxu0 %v1195
    %1220 = vmatprep.subr.mxu0 0.0
    %1221 = vmatpush1.msra.mxu0 %v1196
    %1222 = vmatprep.subr.mxu0 0.0
    %1223 = vmatpush1.msra.mxu0 %v1197
    %1224 = vmatprep.subr.mxu0 0.0
    %1225 = vmatpush1.msra.mxu0 %v1198
    %1226 = vmatprep.subr.mxu0 0.0
    %1227 = vmatpush1.msra.mxu0 %v1199
    %1228 = vmatprep.subr.mxu0 0.0
    %1229 = vmatpush1.msra.mxu0 %v1200
    %1230 = vmatprep.subr.mxu0 0.0
    %1231 = vmatpush1.msra.mxu0 %v1201
    %1232 = vmatprep.subr.mxu0 0.0
    %1233 = vmatpush1.msra.mxu0 %v1202
    %1234 = vmatprep.subr.mxu0 0.0
    %1235 = vmatpush1.msra.mxu0 %v1203
    %1236 = vmatprep.subr.mxu0 0.0
    %1237 = vmatpush1.msra.mxu0 0.0
    %1238 = vmatprep.subr.mxu0 0.0
    %1239 = vmatpush1.msra.mxu0 0.0
    %1240 = vmatprep.subr.mxu0 0.0
    %1241 = vmatpush1.msra.mxu0 0.0
    %1242 = vmatprep.subr.mxu0 0.0
    %1243 = vmatpush1.msra.mxu0 0.0
    %1244 = vmatprep.subr.mxu0 0.0
    %1245 = vmatpush1.msra.mxu0 0.0
    %1246 = vmatprep.subr.mxu0 0.0
    %1247 = vmatpush1.msra.mxu0 0.0
    %1248 = vmatprep.subr.mxu0 0.0
    %1249 = vmatpush1.msra.mxu0 0.0
    %1250 = vmatprep.subr.mxu0 0.0
    %1251 = vmatpush1.msra.mxu0 0.0
    %1252 = vmatprep.subr.mxu0 0.0
    %1253 = vmatpush1.msra.mxu0 0.0
    %1254 = vmatprep.subr.mxu0 0.0
    %1255 = vmatpush1.msra.mxu0 0.0
    %1256 = vmatprep.subr.mxu0 0.0
    %1257 = vmatpush1.msra.mxu0 0.0
    %1258 = vmatprep.subr.mxu0 0.0
    %1259 = vmatpush1.msra.mxu0 0.0
    %1260 = vmatprep.subr.mxu0 0.0
    %1261 = vmatpush1.msra.mxu0 0.0
    %1262 = vmatprep.subr.mxu0 0.0
    %1263 = vmatpush1.msra.mxu0 0.0
    %1264 = vmatprep.subr.mxu0 0.0
    %1265 = vmatpush1.msra.mxu0 0.0
    %1266 = vmatprep.subr.mxu0 0.0
    %1267 = vmatpush1.msra.mxu0 0.0
    %1268 = vmatprep.mubr.f32.mxu0 0.0
    %1269 = vmatmul.mubr.f32.gmra.mrb[0].mxu0 %v1157
    %v1270 = vpop.f32.mrb[0].mxu0
    %v1271 = vadd.f32 0.0, %v1270
    %v1272 = vpop.f32.mrb[0].mxu0
    %1273 = vmatprep.mubr.f32.mxu0 0.0
    %1274 = vmatmul.mubr.f32.gmra.mrb[0].mxu0 %v1159
    %v1275 = vpop.f32.mrb[0].mxu0
    %v1276 = vadd.f32 0.0, %v1275
    %v1277 = vpop.f32.mrb[0].mxu0
    %1278 = vmatprep.mubr.f32.mxu0 0.0
    %1279 = vmatmul.mubr.f32.gmra.mrb[0].mxu0 %v1161
    %v1280 = vpop.f32.mrb[0].mxu0
    %v1281 = vadd.f32 0.0, %v1280
    %v1282 = vpop.f32.mrb[0].mxu0
    %1283 = vmatprep.mubr.f32.mxu0 0.0
    %1284 = vmatmul.mubr.f32.gmra.mrb[0].mxu0 %v1163
    %v1285 = vpop.f32.mrb[0].mxu0
    %v1286 = vadd.f32 0.0, %v1285
    %v1287 = vpop.f32.mrb[0].mxu0
    %1288 = vmatprep.mubr.f32.mxu0 0.0
    %1289 = vmatmul.mubr.f32.gmra.mrb[0].mxu0 %v1165
    %v1290 = vpop.f32.mrb[0].mxu0
    %v1291 = vpop.f32.mrb[0].mxu0
    %1292 = vmatprep.mubr.f32.mxu0 0.0
    %1293 = vmatmul.mubr.f32.gmra.mrb[0].mxu0 %v1168
    %v1294 = vpop.f32.mrb[0].mxu0
    %v1295 = vadd.f32 0.0, %v1294
    %v1296 = vpop.f32.mrb[0].mxu0
    %1297 = vmatprep.mubr.f32.mxu0 0.0
    %1298 = vmatmul.mubr.f32.gmra.mrb[0].mxu0 %v1170
    %v1299 = vpop.f32.mrb[0].mxu0
    %v1300 = vadd.f32 0.0, %v1299
    %v1301 = vpop.f32.mrb[0].mxu0
    %1302 = vmatprep.mubr.f32.mxu0 0.0
    %1303 = vmatmul.mubr.f32.gmra.mrb[0].mxu0 %v1172
    %v1304 = vpop.f32.mrb[0].mxu0
    %v1305 = vadd.f32 0.0, %v1304
    %v1306 = vpop.f32.mrb[0].mxu0
    %1307 = vmatprep.mubr.f32.mxu0 0.0
    %1308 = vmatmul.mubr.f32.gmra.mrb[0].mxu0 %v1174
    %v1309 = vpop.f32.mrb[0].mxu0
    %v1310 = vadd.f32 0.0, %v1309
    %v1311 = vpop.f32.mrb[0].mxu0
    %1312 = vmatprep.mubr.f32.mxu0 0.0
    %1313 = vmatmul.mubr.f32.gmra.mrb[0].mxu0 %v1176
    %v1314 = vpop.f32.mrb[0].mxu0
    %v1315 = vpop.f32.mrb[0].mxu0
    %1316 = vdwg.mxu0
    %v1317 = vadd.f32 %v1108, %v1271
    %v1318 = vadd.f32 %v1113, %v1276
    %v1319 = vadd.f32 %v1118, %v1281
    %v1320 = vadd.f32 %v1123, %v1286
    %v1321 = vadd.f32 %v1132, %v1295
    %v1322 = vadd.f32 %v1137, %v1300
    %v1323 = vadd.f32 %v1142, %v1305
    %v1324 = vadd.f32 %v1147, %v1310
    %s1325 = scalar_lea.vmem %s3, 384
    %v1326 = vld [vmem:[%s1325] sm:$0xff]
    %v1327 = vld [vmem:[%s1325 + $0x8] sm:$0xff]
    %v1328 = vld [vmem:[%s1325 + $0x10] sm:$0xff]
    %v1329 = vld [vmem:[%s1325 + $0x18] sm:$0xff]
    %v1330 = vld [vmem:[%s1325 + $0x20] sm:$0xff]
    %v1331 = vld [vmem:[%s1325 + $0x28] sm:$0xff]
    %v1332 = vld [vmem:[%s1325 + $0x30] sm:$0xff]
    %v1333 = vld [vmem:[%s1325 + $0x38] sm:$0xff]
    %v1334 = vld [vmem:[%s1325 + $0x40] sm:$0xff]
    %v1335 = vld [vmem:[%s1325 + $0x48] sm:$0xff]
    %v1336 = vld [vmem:[%s1325 + $0x50] sm:$0xff]
    %v1337 = vld [vmem:[%s1325 + $0x58] sm:$0xff]
    %v1338 = vld [vmem:[%s1325 + $0x60] sm:$0xff]
    %v1339 = vld [vmem:[%s1325 + $0x68] sm:$0xff]
    %v1340 = vld [vmem:[%s1325 + $0x70] sm:$0xff]
    %v1341 = vld [vmem:[%s1325 + $0x78] sm:$0xff]
    %1342 = vmatprep.subr.mxu0 0.0
    %1343 = vmatpush1.msra.mxu0 %v1326
    %1344 = vmatprep.subr.mxu0 0.0
    %1345 = vmatpush1.msra.mxu0 %v1327
    %1346 = vmatprep.subr.mxu0 0.0
    %1347 = vmatpush1.msra.mxu0 %v1328
    %1348 = vmatprep.subr.mxu0 0.0
    %1349 = vmatpush1.msra.mxu0 %v1329
    %1350 = vmatprep.subr.mxu0 0.0
    %1351 = vmatpush1.msra.mxu0 %v1330
    %1352 = vmatprep.subr.mxu0 0.0
    %1353 = vmatpush1.msra.mxu0 %v1331
    %1354 = vmatprep.subr.mxu0 0.0
    %1355 = vmatpush1.msra.mxu0 %v1332
    %1356 = vmatprep.subr.mxu0 0.0
    %1357 = vmatpush1.msra.mxu0 %v1333
    %1358 = vmatprep.subr.mxu0 0.0
    %1359 = vmatpush1.msra.mxu0 %v1334
    %1360 = vmatprep.subr.mxu0 0.0
    %1361 = vmatpush1.msra.mxu0 %v1335
    %1362 = vmatprep.subr.mxu0 0.0
    %1363 = vmatpush1.msra.mxu0 %v1336
    %1364 = vmatprep.subr.mxu0 0.0
    %1365 = vmatpush1.msra.mxu0 %v1337
    %1366 = vmatprep.subr.mxu0 0.0
    %1367 = vmatpush1.msra.mxu0 %v1338
    %1368 = vmatprep.subr.mxu0 0.0
    %1369 = vmatpush1.msra.mxu0 %v1339
    %1370 = vmatprep.subr.mxu0 0.0
    %1371 = vmatpush1.msra.mxu0 %v1340
    %1372 = vmatprep.subr.mxu0 0.0
    %1373 = vmatpush1.msra.mxu0 %v1341
    %1374 = vmatprep.subr.mxu0 0.0
    %1375 = vmatpush1.msra.mxu0 0.0
    %1376 = vmatprep.subr.mxu0 0.0
    %1377 = vmatpush1.msra.mxu0 0.0
    %1378 = vmatprep.subr.mxu0 0.0
    %1379 = vmatpush1.msra.mxu0 0.0
    %1380 = vmatprep.subr.mxu0 0.0
    %1381 = vmatpush1.msra.mxu0 0.0
    %1382 = vmatprep.subr.mxu0 0.0
    %1383 = vmatpush1.msra.mxu0 0.0
    %1384 = vmatprep.subr.mxu0 0.0
    %1385 = vmatpush1.msra.mxu0 0.0
    %1386 = vmatprep.subr.mxu0 0.0
    %1387 = vmatpush1.msra.mxu0 0.0
    %1388 = vmatprep.subr.mxu0 0.0
    %1389 = vmatpush1.msra.mxu0 0.0
    %1390 = vmatprep.subr.mxu0 0.0
    %1391 = vmatpush1.msra.mxu0 0.0
    %1392 = vmatprep.subr.mxu0 0.0
    %1393 = vmatpush1.msra.mxu0 0.0
    %1394 = vmatprep.subr.mxu0 0.0
    %1395 = vmatpush1.msra.mxu0 0.0
    %1396 = vmatprep.subr.mxu0 0.0
    %1397 = vmatpush1.msra.mxu0 0.0
    %1398 = vmatprep.subr.mxu0 0.0
    %1399 = vmatpush1.msra.mxu0 0.0
    %1400 = vmatprep.subr.mxu0 0.0
    %1401 = vmatpush1.msra.mxu0 0.0
    %1402 = vmatprep.subr.mxu0 0.0
    %1403 = vmatpush1.msra.mxu0 0.0
    %1404 = vmatprep.subr.mxu0 0.0
    %1405 = vmatpush1.msra.mxu0 0.0
    %1406 = vmatprep.mubr.f32.mxu0 0.0
    %1407 = vmatmul.mubr.f32.gmra.mrb[0].mxu0 %v835
    %v1408 = vpop.f32.mrb[0].mxu0
    %v1409 = vadd.f32 0.0, %v1408
    %v1410 = vpop.f32.mrb[0].mxu0
    %1411 = vmatprep.mubr.f32.mxu0 0.0
    %1412 = vmatmul.mubr.f32.gmra.mrb[0].mxu0 %v836
    %v1413 = vpop.f32.mrb[0].mxu0
    %v1414 = vadd.f32 0.0, %v1413
    %v1415 = vpop.f32.mrb[0].mxu0
    %1416 = vmatprep.mubr.f32.mxu0 0.0
    %1417 = vmatmul.mubr.f32.gmra.mrb[0].mxu0 %v837
    %v1418 = vpop.f32.mrb[0].mxu0
    %v1419 = vadd.f32 0.0, %v1418
    %v1420 = vpop.f32.mrb[0].mxu0
    %1421 = vmatprep.mubr.f32.mxu0 0.0
    %1422 = vmatmul.mubr.f32.gmra.mrb[0].mxu0 %v838
    %v1423 = vpop.f32.mrb[0].mxu0
    %v1424 = vadd.f32 0.0, %v1423
    %v1425 = vpop.f32.mrb[0].mxu0
    %1426 = vmatprep.mubr.f32.mxu0 0.0
    %1427 = vmatmul.mubr.f32.gmra.mrb[0].mxu0 %v839
    %v1428 = vpop.f32.mrb[0].mxu0
    %v1429 = vpop.f32.mrb[0].mxu0
    %1430 = vmatprep.mubr.f32.mxu0 0.0
    %1431 = vmatmul.mubr.f32.gmra.mrb[0].mxu0 %v843
    %v1432 = vpop.f32.mrb[0].mxu0
    %v1433 = vadd.f32 0.0, %v1432
    %v1434 = vpop.f32.mrb[0].mxu0
    %1435 = vmatprep.mubr.f32.mxu0 0.0
    %1436 = vmatmul.mubr.f32.gmra.mrb[0].mxu0 %v844
    %v1437 = vpop.f32.mrb[0].mxu0
    %v1438 = vadd.f32 0.0, %v1437
    %v1439 = vpop.f32.mrb[0].mxu0
    %1440 = vmatprep.mubr.f32.mxu0 0.0
    %1441 = vmatmul.mubr.f32.gmra.mrb[0].mxu0 %v845
    %v1442 = vpop.f32.mrb[0].mxu0
    %v1443 = vadd.f32 0.0, %v1442
    %v1444 = vpop.f32.mrb[0].mxu0
    %1445 = vmatprep.mubr.f32.mxu0 0.0
    %1446 = vmatmul.mubr.f32.gmra.mrb[0].mxu0 %v846
    %v1447 = vpop.f32.mrb[0].mxu0
    %v1448 = vadd.f32 0.0, %v1447
    %v1449 = vpop.f32.mrb[0].mxu0
    %1450 = vmatprep.mubr.f32.mxu0 0.0
    %1451 = vmatmul.mubr.f32.gmra.mrb[0].mxu0 %v847
    %v1452 = vpop.f32.mrb[0].mxu0
    %v1453 = vpop.f32.mrb[0].mxu0
    %1454 = vdwg.mxu0
    %v1455 = vadd.f32 %v1317, %v1409
    %v1456 = vadd.f32 %v1318, %v1414
    %v1457 = vadd.f32 %v1319, %v1419
    %v1458 = vadd.f32 %v1320, %v1424
    %v1459 = vadd.f32 %v1321, %v1433
    %v1460 = vadd.f32 %v1322, %v1438
    %v1461 = vadd.f32 %v1323, %v1443
    %v1462 = vadd.f32 %v1324, %v1448
    %v1465 = vrot.slane %v840, 1
    %v1466 = vsel %vm878, %v888, %v1465
    %v1467 = vrot.slane %v848, 1
    %v1468 = vsel %vm878, %v899, %v1467
    %s1471 = scalar_lea.vmem %s3, 512
    %v1472 = vld [vmem:[%s1471] sm:$0xff]
    %v1473 = vld [vmem:[%s1471 + $0x8] sm:$0xff]
    %v1474 = vld [vmem:[%s1471 + $0x10] sm:$0xff]
    %v1475 = vld [vmem:[%s1471 + $0x18] sm:$0xff]
    %v1476 = vld [vmem:[%s1471 + $0x20] sm:$0xff]
    %v1477 = vld [vmem:[%s1471 + $0x28] sm:$0xff]
    %v1478 = vld [vmem:[%s1471 + $0x30] sm:$0xff]
    %v1479 = vld [vmem:[%s1471 + $0x38] sm:$0xff]
    %v1480 = vld [vmem:[%s1471 + $0x40] sm:$0xff]
    %v1481 = vld [vmem:[%s1471 + $0x48] sm:$0xff]
    %v1482 = vld [vmem:[%s1471 + $0x50] sm:$0xff]
    %v1483 = vld [vmem:[%s1471 + $0x58] sm:$0xff]
    %v1484 = vld [vmem:[%s1471 + $0x60] sm:$0xff]
    %v1485 = vld [vmem:[%s1471 + $0x68] sm:$0xff]
    %v1486 = vld [vmem:[%s1471 + $0x70] sm:$0xff]
    %v1487 = vld [vmem:[%s1471 + $0x78] sm:$0xff]
    %1488 = vmatprep.subr.mxu0 0.0
    %1489 = vmatpush1.msra.mxu0 %v1472
    %1490 = vmatprep.subr.mxu0 0.0
    %1491 = vmatpush1.msra.mxu0 %v1473
    %1492 = vmatprep.subr.mxu0 0.0
    %1493 = vmatpush1.msra.mxu0 %v1474
    %1494 = vmatprep.subr.mxu0 0.0
    %1495 = vmatpush1.msra.mxu0 %v1475
    %1496 = vmatprep.subr.mxu0 0.0
    %1497 = vmatpush1.msra.mxu0 %v1476
    %1498 = vmatprep.subr.mxu0 0.0
    %1499 = vmatpush1.msra.mxu0 %v1477
    %1500 = vmatprep.subr.mxu0 0.0
    %1501 = vmatpush1.msra.mxu0 %v1478
    %1502 = vmatprep.subr.mxu0 0.0
    %1503 = vmatpush1.msra.mxu0 %v1479
    %1504 = vmatprep.subr.mxu0 0.0
    %1505 = vmatpush1.msra.mxu0 %v1480
    %1506 = vmatprep.subr.mxu0 0.0
    %1507 = vmatpush1.msra.mxu0 %v1481
    %1508 = vmatprep.subr.mxu0 0.0
    %1509 = vmatpush1.msra.mxu0 %v1482
    %1510 = vmatprep.subr.mxu0 0.0
    %1511 = vmatpush1.msra.mxu0 %v1483
    %1512 = vmatprep.subr.mxu0 0.0
    %1513 = vmatpush1.msra.mxu0 %v1484
    %1514 = vmatprep.subr.mxu0 0.0
    %1515 = vmatpush1.msra.mxu0 %v1485
    %1516 = vmatprep.subr.mxu0 0.0
    %1517 = vmatpush1.msra.mxu0 %v1486
    %1518 = vmatprep.subr.mxu0 0.0
    %1519 = vmatpush1.msra.mxu0 %v1487
    %1520 = vmatprep.subr.mxu0 0.0
    %1521 = vmatpush1.msra.mxu0 0.0
    %1522 = vmatprep.subr.mxu0 0.0
    %1523 = vmatpush1.msra.mxu0 0.0
    %1524 = vmatprep.subr.mxu0 0.0
    %1525 = vmatpush1.msra.mxu0 0.0
    %1526 = vmatprep.subr.mxu0 0.0
    %1527 = vmatpush1.msra.mxu0 0.0
    %1528 = vmatprep.subr.mxu0 0.0
    %1529 = vmatpush1.msra.mxu0 0.0
    %1530 = vmatprep.subr.mxu0 0.0
    %1531 = vmatpush1.msra.mxu0 0.0
    %1532 = vmatprep.subr.mxu0 0.0
    %1533 = vmatpush1.msra.mxu0 0.0
    %1534 = vmatprep.subr.mxu0 0.0
    %1535 = vmatpush1.msra.mxu0 0.0
    %1536 = vmatprep.subr.mxu0 0.0
    %1537 = vmatpush1.msra.mxu0 0.0
    %1538 = vmatprep.subr.mxu0 0.0
    %1539 = vmatpush1.msra.mxu0 0.0
    %1540 = vmatprep.subr.mxu0 0.0
    %1541 = vmatpush1.msra.mxu0 0.0
    %1542 = vmatprep.subr.mxu0 0.0
    %1543 = vmatpush1.msra.mxu0 0.0
    %1544 = vmatprep.subr.mxu0 0.0
    %1545 = vmatpush1.msra.mxu0 0.0
    %1546 = vmatprep.subr.mxu0 0.0
    %1547 = vmatpush1.msra.mxu0 0.0
    %1548 = vmatprep.subr.mxu0 0.0
    %1549 = vmatpush1.msra.mxu0 0.0
    %1550 = vmatprep.subr.mxu0 0.0
    %1551 = vmatpush1.msra.mxu0 0.0
    %1552 = vmatprep.mubr.f32.mxu0 0.0
    %1553 = vmatmul.mubr.f32.gmra.mrb[0].mxu0 %v883
    %v1554 = vpop.f32.mrb[0].mxu0
    %v1555 = vadd.f32 0.0, %v1554
    %v1556 = vpop.f32.mrb[0].mxu0
    %1557 = vmatprep.mubr.f32.mxu0 0.0
    %1558 = vmatmul.mubr.f32.gmra.mrb[0].mxu0 %v885
    %v1559 = vpop.f32.mrb[0].mxu0
    %v1560 = vadd.f32 0.0, %v1559
    %v1561 = vpop.f32.mrb[0].mxu0
    %1562 = vmatprep.mubr.f32.mxu0 0.0
    %1563 = vmatmul.mubr.f32.gmra.mrb[0].mxu0 %v887
    %v1564 = vpop.f32.mrb[0].mxu0
    %v1565 = vadd.f32 0.0, %v1564
    %v1566 = vpop.f32.mrb[0].mxu0
    %1567 = vmatprep.mubr.f32.mxu0 0.0
    %1568 = vmatmul.mubr.f32.gmra.mrb[0].mxu0 %v889
    %v1569 = vpop.f32.mrb[0].mxu0
    %v1570 = vadd.f32 0.0, %v1569
    %v1571 = vpop.f32.mrb[0].mxu0
    %1572 = vmatprep.mubr.f32.mxu0 0.0
    %1573 = vmatmul.mubr.f32.gmra.mrb[0].mxu0 %v1466
    %v1574 = vpop.f32.mrb[0].mxu0
    %v1575 = vpop.f32.mrb[0].mxu0
    %1576 = vmatprep.mubr.f32.mxu0 0.0
    %1577 = vmatmul.mubr.f32.gmra.mrb[0].mxu0 %v894
    %v1578 = vpop.f32.mrb[0].mxu0
    %v1579 = vadd.f32 0.0, %v1578
    %v1580 = vpop.f32.mrb[0].mxu0
    %1581 = vmatprep.mubr.f32.mxu0 0.0
    %1582 = vmatmul.mubr.f32.gmra.mrb[0].mxu0 %v896
    %v1583 = vpop.f32.mrb[0].mxu0
    %v1584 = vadd.f32 0.0, %v1583
    %v1585 = vpop.f32.mrb[0].mxu0
    %1586 = vmatprep.mubr.f32.mxu0 0.0
    %1587 = vmatmul.mubr.f32.gmra.mrb[0].mxu0 %v898
    %v1588 = vpop.f32.mrb[0].mxu0
    %v1589 = vadd.f32 0.0, %v1588
    %v1590 = vpop.f32.mrb[0].mxu0
    %1591 = vmatprep.mubr.f32.mxu0 0.0
    %1592 = vmatmul.mubr.f32.gmra.mrb[0].mxu0 %v900
    %v1593 = vpop.f32.mrb[0].mxu0
    %v1594 = vadd.f32 0.0, %v1593
    %v1595 = vpop.f32.mrb[0].mxu0
    %1596 = vmatprep.mubr.f32.mxu0 0.0
    %1597 = vmatmul.mubr.f32.gmra.mrb[0].mxu0 %v1468
    %v1598 = vpop.f32.mrb[0].mxu0
    %v1599 = vpop.f32.mrb[0].mxu0
    %1600 = vdwg.mxu0
    %v1601 = vadd.f32 %v1455, %v1555
    %v1602 = vadd.f32 %v1456, %v1560
    %v1603 = vadd.f32 %v1457, %v1565
    %v1604 = vadd.f32 %v1458, %v1570
    %v1605 = vadd.f32 %v1459, %v1579
    %v1606 = vadd.f32 %v1460, %v1584
    %v1607 = vadd.f32 %v1461, %v1589
    %v1608 = vadd.f32 %v1462, %v1594
    %v1609 = vrot.slane %v840, 2
    %v1610 = vsel %vm1154, %v1164, %v1609
    %v1611 = vrot.slane %v848, 2
    %v1612 = vsel %vm1154, %v1175, %v1611
    %s1615 = scalar_lea.vmem %s3, 640
    %v1616 = vld [vmem:[%s1615] sm:$0xff]
    %v1617 = vld [vmem:[%s1615 + $0x8] sm:$0xff]
    %v1618 = vld [vmem:[%s1615 + $0x10] sm:$0xff]
    %v1619 = vld [vmem:[%s1615 + $0x18] sm:$0xff]
    %v1620 = vld [vmem:[%s1615 + $0x20] sm:$0xff]
    %v1621 = vld [vmem:[%s1615 + $0x28] sm:$0xff]
    %v1622 = vld [vmem:[%s1615 + $0x30] sm:$0xff]
    %v1623 = vld [vmem:[%s1615 + $0x38] sm:$0xff]
    %v1624 = vld [vmem:[%s1615 + $0x40] sm:$0xff]
    %v1625 = vld [vmem:[%s1615 + $0x48] sm:$0xff]
    %v1626 = vld [vmem:[%s1615 + $0x50] sm:$0xff]
    %v1627 = vld [vmem:[%s1615 + $0x58] sm:$0xff]
    %v1628 = vld [vmem:[%s1615 + $0x60] sm:$0xff]
    %v1629 = vld [vmem:[%s1615 + $0x68] sm:$0xff]
    %v1630 = vld [vmem:[%s1615 + $0x70] sm:$0xff]
    %v1631 = vld [vmem:[%s1615 + $0x78] sm:$0xff]
    %1632 = vmatprep.subr.mxu0 0.0
    %1633 = vmatpush1.msra.mxu0 %v1616
    %1634 = vmatprep.subr.mxu0 0.0
    %1635 = vmatpush1.msra.mxu0 %v1617
    %1636 = vmatprep.subr.mxu0 0.0
    %1637 = vmatpush1.msra.mxu0 %v1618
    %1638 = vmatprep.subr.mxu0 0.0
    %1639 = vmatpush1.msra.mxu0 %v1619
    %1640 = vmatprep.subr.mxu0 0.0
    %1641 = vmatpush1.msra.mxu0 %v1620
    %1642 = vmatprep.subr.mxu0 0.0
    %1643 = vmatpush1.msra.mxu0 %v1621
    %1644 = vmatprep.subr.mxu0 0.0
    %1645 = vmatpush1.msra.mxu0 %v1622
    %1646 = vmatprep.subr.mxu0 0.0
    %1647 = vmatpush1.msra.mxu0 %v1623
    %1648 = vmatprep.subr.mxu0 0.0
    %1649 = vmatpush1.msra.mxu0 %v1624
    %1650 = vmatprep.subr.mxu0 0.0
    %1651 = vmatpush1.msra.mxu0 %v1625
    %1652 = vmatprep.subr.mxu0 0.0
    %1653 = vmatpush1.msra.mxu0 %v1626
    %1654 = vmatprep.subr.mxu0 0.0
    %1655 = vmatpush1.msra.mxu0 %v1627
    %1656 = vmatprep.subr.mxu0 0.0
    %1657 = vmatpush1.msra.mxu0 %v1628
    %1658 = vmatprep.subr.mxu0 0.0
    %1659 = vmatpush1.msra.mxu0 %v1629
    %1660 = vmatprep.subr.mxu0 0.0
    %1661 = vmatpush1.msra.mxu0 %v1630
    %1662 = vmatprep.subr.mxu0 0.0
    %1663 = vmatpush1.msra.mxu0 %v1631
    %1664 = vmatprep.subr.mxu0 0.0
    %1665 = vmatpush1.msra.mxu0 0.0
    %1666 = vmatprep.subr.mxu0 0.0
    %1667 = vmatpush1.msra.mxu0 0.0
    %1668 = vmatprep.subr.mxu0 0.0
    %1669 = vmatpush1.msra.mxu0 0.0
    %1670 = vmatprep.subr.mxu0 0.0
    %1671 = vmatpush1.msra.mxu0 0.0
    %1672 = vmatprep.subr.mxu0 0.0
    %1673 = vmatpush1.msra.mxu0 0.0
    %1674 = vmatprep.subr.mxu0 0.0
    %1675 = vmatpush1.msra.mxu0 0.0
    %1676 = vmatprep.subr.mxu0 0.0
    %1677 = vmatpush1.msra.mxu0 0.0
    %1678 = vmatprep.subr.mxu0 0.0
    %1679 = vmatpush1.msra.mxu0 0.0
    %1680 = vmatprep.subr.mxu0 0.0
    %1681 = vmatpush1.msra.mxu0 0.0
    %1682 = vmatprep.subr.mxu0 0.0
    %1683 = vmatpush1.msra.mxu0 0.0
    %1684 = vmatprep.subr.mxu0 0.0
    %1685 = vmatpush1.msra.mxu0 0.0
    %1686 = vmatprep.subr.mxu0 0.0
    %1687 = vmatpush1.msra.mxu0 0.0
    %1688 = vmatprep.subr.mxu0 0.0
    %1689 = vmatpush1.msra.mxu0 0.0
    %1690 = vmatprep.subr.mxu0 0.0
    %1691 = vmatpush1.msra.mxu0 0.0
    %1692 = vmatprep.subr.mxu0 0.0
    %1693 = vmatpush1.msra.mxu0 0.0
    %1694 = vmatprep.subr.mxu0 0.0
    %1695 = vmatpush1.msra.mxu0 0.0
    %1696 = vmatprep.mubr.f32.mxu0 0.0
    %1697 = vmatmul.mubr.f32.gmra.mrb[0].mxu0 %v1159
    %v1698 = vpop.f32.mrb[0].mxu0
    %v1699 = vadd.f32 0.0, %v1698
    %v1700 = vpop.f32.mrb[0].mxu0
    %1701 = vmatprep.mubr.f32.mxu0 0.0
    %1702 = vmatmul.mubr.f32.gmra.mrb[0].mxu0 %v1161
    %v1703 = vpop.f32.mrb[0].mxu0
    %v1704 = vadd.f32 0.0, %v1703
    %v1705 = vpop.f32.mrb[0].mxu0
    %1706 = vmatprep.mubr.f32.mxu0 0.0
    %1707 = vmatmul.mubr.f32.gmra.mrb[0].mxu0 %v1163
    %v1708 = vpop.f32.mrb[0].mxu0
    %v1709 = vadd.f32 0.0, %v1708
    %v1710 = vpop.f32.mrb[0].mxu0
    %1711 = vmatprep.mubr.f32.mxu0 0.0
    %1712 = vmatmul.mubr.f32.gmra.mrb[0].mxu0 %v1165
    %v1713 = vpop.f32.mrb[0].mxu0
    %v1714 = vadd.f32 0.0, %v1713
    %v1715 = vpop.f32.mrb[0].mxu0
    %1716 = vmatprep.mubr.f32.mxu0 0.0
    %1717 = vmatmul.mubr.f32.gmra.mrb[0].mxu0 %v1610
    %v1718 = vpop.f32.mrb[0].mxu0
    %v1719 = vpop.f32.mrb[0].mxu0
    %1720 = vmatprep.mubr.f32.mxu0 0.0
    %1721 = vmatmul.mubr.f32.gmra.mrb[0].mxu0 %v1170
    %v1722 = vpop.f32.mrb[0].mxu0
    %v1723 = vadd.f32 0.0, %v1722
    %v1724 = vpop.f32.mrb[0].mxu0
    %1725 = vmatprep.mubr.f32.mxu0 0.0
    %1726 = vmatmul.mubr.f32.gmra.mrb[0].mxu0 %v1172
    %v1727 = vpop.f32.mrb[0].mxu0
    %v1728 = vadd.f32 0.0, %v1727
    %v1729 = vpop.f32.mrb[0].mxu0
    %1730 = vmatprep.mubr.f32.mxu0 0.0
    %1731 = vmatmul.mubr.f32.gmra.mrb[0].mxu0 %v1174
    %v1732 = vpop.f32.mrb[0].mxu0
    %v1733 = vadd.f32 0.0, %v1732
    %v1734 = vpop.f32.mrb[0].mxu0
    %1735 = vmatprep.mubr.f32.mxu0 0.0
    %1736 = vmatmul.mubr.f32.gmra.mrb[0].mxu0 %v1176
    %v1737 = vpop.f32.mrb[0].mxu0
    %v1738 = vadd.f32 0.0, %v1737
    %v1739 = vpop.f32.mrb[0].mxu0
    %1740 = vmatprep.mubr.f32.mxu0 0.0
    %1741 = vmatmul.mubr.f32.gmra.mrb[0].mxu0 %v1612
    %v1742 = vpop.f32.mrb[0].mxu0
    %v1743 = vpop.f32.mrb[0].mxu0
    %1744 = vdwg.mxu0
    %v1745 = vadd.f32 %v1601, %v1699
    %v1746 = vadd.f32 %v1602, %v1704
    %v1747 = vadd.f32 %v1603, %v1709
    %v1748 = vadd.f32 %v1604, %v1714
    %v1749 = vadd.f32 %v1605, %v1723
    %v1750 = vadd.f32 %v1606, %v1728
    %v1751 = vadd.f32 %v1607, %v1733
    %v1752 = vadd.f32 %v1608, %v1738
    %s1753 = scalar_lea.vmem %s3, 768
    %v1754 = vld [vmem:[%s1753] sm:$0xff]
    %v1755 = vld [vmem:[%s1753 + $0x8] sm:$0xff]
    %v1756 = vld [vmem:[%s1753 + $0x10] sm:$0xff]
    %v1757 = vld [vmem:[%s1753 + $0x18] sm:$0xff]
    %v1758 = vld [vmem:[%s1753 + $0x20] sm:$0xff]
    %v1759 = vld [vmem:[%s1753 + $0x28] sm:$0xff]
    %v1760 = vld [vmem:[%s1753 + $0x30] sm:$0xff]
    %v1761 = vld [vmem:[%s1753 + $0x38] sm:$0xff]
    %v1762 = vld [vmem:[%s1753 + $0x40] sm:$0xff]
    %v1763 = vld [vmem:[%s1753 + $0x48] sm:$0xff]
    %v1764 = vld [vmem:[%s1753 + $0x50] sm:$0xff]
    %v1765 = vld [vmem:[%s1753 + $0x58] sm:$0xff]
    %v1766 = vld [vmem:[%s1753 + $0x60] sm:$0xff]
    %v1767 = vld [vmem:[%s1753 + $0x68] sm:$0xff]
    %v1768 = vld [vmem:[%s1753 + $0x70] sm:$0xff]
    %v1769 = vld [vmem:[%s1753 + $0x78] sm:$0xff]
    %1770 = vmatprep.subr.mxu0 0.0
    %1771 = vmatpush1.msra.mxu0 %v1754
    %1772 = vmatprep.subr.mxu0 0.0
    %1773 = vmatpush1.msra.mxu0 %v1755
    %1774 = vmatprep.subr.mxu0 0.0
    %1775 = vmatpush1.msra.mxu0 %v1756
    %1776 = vmatprep.subr.mxu0 0.0
    %1777 = vmatpush1.msra.mxu0 %v1757
    %1778 = vmatprep.subr.mxu0 0.0
    %1779 = vmatpush1.msra.mxu0 %v1758
    %1780 = vmatprep.subr.mxu0 0.0
    %1781 = vmatpush1.msra.mxu0 %v1759
    %1782 = vmatprep.subr.mxu0 0.0
    %1783 = vmatpush1.msra.mxu0 %v1760
    %1784 = vmatprep.subr.mxu0 0.0
    %1785 = vmatpush1.msra.mxu0 %v1761
    %1786 = vmatprep.subr.mxu0 0.0
    %1787 = vmatpush1.msra.mxu0 %v1762
    %1788 = vmatprep.subr.mxu0 0.0
    %1789 = vmatpush1.msra.mxu0 %v1763
    %1790 = vmatprep.subr.mxu0 0.0
    %1791 = vmatpush1.msra.mxu0 %v1764
    %1792 = vmatprep.subr.mxu0 0.0
    %1793 = vmatpush1.msra.mxu0 %v1765
    %1794 = vmatprep.subr.mxu0 0.0
    %1795 = vmatpush1.msra.mxu0 %v1766
    %1796 = vmatprep.subr.mxu0 0.0
    %1797 = vmatpush1.msra.mxu0 %v1767
    %1798 = vmatprep.subr.mxu0 0.0
    %1799 = vmatpush1.msra.mxu0 %v1768
    %1800 = vmatprep.subr.mxu0 0.0
    %1801 = vmatpush1.msra.mxu0 %v1769
    %1802 = vmatprep.subr.mxu0 0.0
    %1803 = vmatpush1.msra.mxu0 0.0
    %1804 = vmatprep.subr.mxu0 0.0
    %1805 = vmatpush1.msra.mxu0 0.0
    %1806 = vmatprep.subr.mxu0 0.0
    %1807 = vmatpush1.msra.mxu0 0.0
    %1808 = vmatprep.subr.mxu0 0.0
    %1809 = vmatpush1.msra.mxu0 0.0
    %1810 = vmatprep.subr.mxu0 0.0
    %1811 = vmatpush1.msra.mxu0 0.0
    %1812 = vmatprep.subr.mxu0 0.0
    %1813 = vmatpush1.msra.mxu0 0.0
    %1814 = vmatprep.subr.mxu0 0.0
    %1815 = vmatpush1.msra.mxu0 0.0
    %1816 = vmatprep.subr.mxu0 0.0
    %1817 = vmatpush1.msra.mxu0 0.0
    %1818 = vmatprep.subr.mxu0 0.0
    %1819 = vmatpush1.msra.mxu0 0.0
    %1820 = vmatprep.subr.mxu0 0.0
    %1821 = vmatpush1.msra.mxu0 0.0
    %1822 = vmatprep.subr.mxu0 0.0
    %1823 = vmatpush1.msra.mxu0 0.0
    %1824 = vmatprep.subr.mxu0 0.0
    %1825 = vmatpush1.msra.mxu0 0.0
    %1826 = vmatprep.subr.mxu0 0.0
    %1827 = vmatpush1.msra.mxu0 0.0
    %1828 = vmatprep.subr.mxu0 0.0
    %1829 = vmatpush1.msra.mxu0 0.0
    %1830 = vmatprep.subr.mxu0 0.0
    %1831 = vmatpush1.msra.mxu0 0.0
    %1832 = vmatprep.subr.mxu0 0.0
    %1833 = vmatpush1.msra.mxu0 0.0
    %1834 = vmatprep.mubr.f32.mxu0 0.0
    %1835 = vmatmul.mubr.f32.gmra.mrb[0].mxu0 %v836
    %v1836 = vpop.f32.mrb[0].mxu0
    %v1837 = vadd.f32 0.0, %v1836
    %v1838 = vpop.f32.mrb[0].mxu0
    %1839 = vmatprep.mubr.f32.mxu0 0.0
    %1840 = vmatmul.mubr.f32.gmra.mrb[0].mxu0 %v837
    %v1841 = vpop.f32.mrb[0].mxu0
    %v1842 = vadd.f32 0.0, %v1841
    %v1843 = vpop.f32.mrb[0].mxu0
    %1844 = vmatprep.mubr.f32.mxu0 0.0
    %1845 = vmatmul.mubr.f32.gmra.mrb[0].mxu0 %v838
    %v1846 = vpop.f32.mrb[0].mxu0
    %v1847 = vadd.f32 0.0, %v1846
    %v1848 = vpop.f32.mrb[0].mxu0
    %1849 = vmatprep.mubr.f32.mxu0 0.0
    %1850 = vmatmul.mubr.f32.gmra.mrb[0].mxu0 %v839
    %v1851 = vpop.f32.mrb[0].mxu0
    %v1852 = vadd.f32 0.0, %v1851
    %v1853 = vpop.f32.mrb[0].mxu0
    %1854 = vmatprep.mubr.f32.mxu0 0.0
    %1855 = vmatmul.mubr.f32.gmra.mrb[0].mxu0 %v840
    %v1856 = vpop.f32.mrb[0].mxu0
    %v1857 = vpop.f32.mrb[0].mxu0
    %1858 = vmatprep.mubr.f32.mxu0 0.0
    %1859 = vmatmul.mubr.f32.gmra.mrb[0].mxu0 %v844
    %v1860 = vpop.f32.mrb[0].mxu0
    %v1861 = vadd.f32 0.0, %v1860
    %v1862 = vpop.f32.mrb[0].mxu0
    %1863 = vmatprep.mubr.f32.mxu0 0.0
    %1864 = vmatmul.mubr.f32.gmra.mrb[0].mxu0 %v845
    %v1865 = vpop.f32.mrb[0].mxu0
    %v1866 = vadd.f32 0.0, %v1865
    %v1867 = vpop.f32.mrb[0].mxu0
    %1868 = vmatprep.mubr.f32.mxu0 0.0
    %1869 = vmatmul.mubr.f32.gmra.mrb[0].mxu0 %v846
    %v1870 = vpop.f32.mrb[0].mxu0
    %v1871 = vadd.f32 0.0, %v1870
    %v1872 = vpop.f32.mrb[0].mxu0
    %1873 = vmatprep.mubr.f32.mxu0 0.0
    %1874 = vmatmul.mubr.f32.gmra.mrb[0].mxu0 %v847
    %v1875 = vpop.f32.mrb[0].mxu0
    %v1876 = vadd.f32 0.0, %v1875
    %v1877 = vpop.f32.mrb[0].mxu0
    %1878 = vmatprep.mubr.f32.mxu0 0.0
    %1879 = vmatmul.mubr.f32.gmra.mrb[0].mxu0 %v848
    %v1880 = vpop.f32.mrb[0].mxu0
    %v1881 = vpop.f32.mrb[0].mxu0
    %1882 = vdwg.mxu0
    %v1883 = vadd.f32 %v1745, %v1837
    %v1884 = vadd.f32 %v1746, %v1842
    %v1885 = vadd.f32 %v1747, %v1847
    %v1886 = vadd.f32 %v1748, %v1852
    %v1887 = vadd.f32 %v1749, %v1861
    %v1888 = vadd.f32 %v1750, %v1866
    %v1889 = vadd.f32 %v1751, %v1871
    %v1890 = vadd.f32 %v1752, %v1876
    %v1893 = vrot.slane %v841, 1
    %v1894 = vsel %vm878, %v1465, %v1893
    %v1895 = vrot.slane %v849, 1
    %v1896 = vsel %vm878, %v1467, %v1895
    %s1899 = scalar_lea.vmem %s3, 896
    %v1900 = vld [vmem:[%s1899] sm:$0xff]
    %v1901 = vld [vmem:[%s1899 + $0x8] sm:$0xff]
    %v1902 = vld [vmem:[%s1899 + $0x10] sm:$0xff]
    %v1903 = vld [vmem:[%s1899 + $0x18] sm:$0xff]
    %v1904 = vld [vmem:[%s1899 + $0x20] sm:$0xff]
    %v1905 = vld [vmem:[%s1899 + $0x28] sm:$0xff]
    %v1906 = vld [vmem:[%s1899 + $0x30] sm:$0xff]
    %v1907 = vld [vmem:[%s1899 + $0x38] sm:$0xff]
    %v1908 = vld [vmem:[%s1899 + $0x40] sm:$0xff]
    %v1909 = vld [vmem:[%s1899 + $0x48] sm:$0xff]
    %v1910 = vld [vmem:[%s1899 + $0x50] sm:$0xff]
    %v1911 = vld [vmem:[%s1899 + $0x58] sm:$0xff]
    %v1912 = vld [vmem:[%s1899 + $0x60] sm:$0xff]
    %v1913 = vld [vmem:[%s1899 + $0x68] sm:$0xff]
    %v1914 = vld [vmem:[%s1899 + $0x70] sm:$0xff]
    %v1915 = vld [vmem:[%s1899 + $0x78] sm:$0xff]
    %1916 = vmatprep.subr.mxu0 0.0
    %1917 = vmatpush1.msra.mxu0 %v1900
    %1918 = vmatprep.subr.mxu0 0.0
    %1919 = vmatpush1.msra.mxu0 %v1901
    %1920 = vmatprep.subr.mxu0 0.0
    %1921 = vmatpush1.msra.mxu0 %v1902
    %1922 = vmatprep.subr.mxu0 0.0
    %1923 = vmatpush1.msra.mxu0 %v1903
    %1924 = vmatprep.subr.mxu0 0.0
    %1925 = vmatpush1.msra.mxu0 %v1904
    %1926 = vmatprep.subr.mxu0 0.0
    %1927 = vmatpush1.msra.mxu0 %v1905
    %1928 = vmatprep.subr.mxu0 0.0
    %1929 = vmatpush1.msra.mxu0 %v1906
    %1930 = vmatprep.subr.mxu0 0.0
    %1931 = vmatpush1.msra.mxu0 %v1907
    %1932 = vmatprep.subr.mxu0 0.0
    %1933 = vmatpush1.msra.mxu0 %v1908
    %1934 = vmatprep.subr.mxu0 0.0
    %1935 = vmatpush1.msra.mxu0 %v1909
    %1936 = vmatprep.subr.mxu0 0.0
    %1937 = vmatpush1.msra.mxu0 %v1910
    %1938 = vmatprep.subr.mxu0 0.0
    %1939 = vmatpush1.msra.mxu0 %v1911
    %1940 = vmatprep.subr.mxu0 0.0
    %1941 = vmatpush1.msra.mxu0 %v1912
    %1942 = vmatprep.subr.mxu0 0.0
    %1943 = vmatpush1.msra.mxu0 %v1913
    %1944 = vmatprep.subr.mxu0 0.0
    %1945 = vmatpush1.msra.mxu0 %v1914
    %1946 = vmatprep.subr.mxu0 0.0
    %1947 = vmatpush1.msra.mxu0 %v1915
    %1948 = vmatprep.subr.mxu0 0.0
    %1949 = vmatpush1.msra.mxu0 0.0
    %1950 = vmatprep.subr.mxu0 0.0
    %1951 = vmatpush1.msra.mxu0 0.0
    %1952 = vmatprep.subr.mxu0 0.0
    %1953 = vmatpush1.msra.mxu0 0.0
    %1954 = vmatprep.subr.mxu0 0.0
    %1955 = vmatpush1.msra.mxu0 0.0
    %1956 = vmatprep.subr.mxu0 0.0
    %1957 = vmatpush1.msra.mxu0 0.0
    %1958 = vmatprep.subr.mxu0 0.0
    %1959 = vmatpush1.msra.mxu0 0.0
    %1960 = vmatprep.subr.mxu0 0.0
    %1961 = vmatpush1.msra.mxu0 0.0
    %1962 = vmatprep.subr.mxu0 0.0
    %1963 = vmatpush1.msra.mxu0 0.0
    %1964 = vmatprep.subr.mxu0 0.0
    %1965 = vmatpush1.msra.mxu0 0.0
    %1966 = vmatprep.subr.mxu0 0.0
    %1967 = vmatpush1.msra.mxu0 0.0
    %1968 = vmatprep.subr.mxu0 0.0
    %1969 = vmatpush1.msra.mxu0 0.0
    %1970 = vmatprep.subr.mxu0 0.0
    %1971 = vmatpush1.msra.mxu0 0.0
    %1972 = vmatprep.subr.mxu0 0.0
    %1973 = vmatpush1.msra.mxu0 0.0
    %1974 = vmatprep.subr.mxu0 0.0
    %1975 = vmatpush1.msra.mxu0 0.0
    %1976 = vmatprep.subr.mxu0 0.0
    %1977 = vmatpush1.msra.mxu0 0.0
    %1978 = vmatprep.subr.mxu0 0.0
    %1979 = vmatpush1.msra.mxu0 0.0
    %1980 = vmatprep.mubr.f32.mxu0 0.0
    %1981 = vmatmul.mubr.f32.gmra.mrb[0].mxu0 %v885
    %v1982 = vpop.f32.mrb[0].mxu0
    %v1983 = vadd.f32 0.0, %v1982
    %v1984 = vpop.f32.mrb[0].mxu0
    %1985 = vmatprep.mubr.f32.mxu0 0.0
    %1986 = vmatmul.mubr.f32.gmra.mrb[0].mxu0 %v887
    %v1987 = vpop.f32.mrb[0].mxu0
    %v1988 = vadd.f32 0.0, %v1987
    %v1989 = vpop.f32.mrb[0].mxu0
    %1990 = vmatprep.mubr.f32.mxu0 0.0
    %1991 = vmatmul.mubr.f32.gmra.mrb[0].mxu0 %v889
    %v1992 = vpop.f32.mrb[0].mxu0
    %v1993 = vadd.f32 0.0, %v1992
    %v1994 = vpop.f32.mrb[0].mxu0
    %1995 = vmatprep.mubr.f32.mxu0 0.0
    %1996 = vmatmul.mubr.f32.gmra.mrb[0].mxu0 %v1466
    %v1997 = vpop.f32.mrb[0].mxu0
    %v1998 = vadd.f32 0.0, %v1997
    %v1999 = vpop.f32.mrb[0].mxu0
    %2000 = vmatprep.mubr.f32.mxu0 0.0
    %2001 = vmatmul.mubr.f32.gmra.mrb[0].mxu0 %v1894
    %v2002 = vpop.f32.mrb[0].mxu0
    %v2003 = vpop.f32.mrb[0].mxu0
    %2004 = vmatprep.mubr.f32.mxu0 0.0
    %2005 = vmatmul.mubr.f32.gmra.mrb[0].mxu0 %v896
    %v2006 = vpop.f32.mrb[0].mxu0
    %v2007 = vadd.f32 0.0, %v2006
    %v2008 = vpop.f32.mrb[0].mxu0
    %2009 = vmatprep.mubr.f32.mxu0 0.0
    %2010 = vmatmul.mubr.f32.gmra.mrb[0].mxu0 %v898
    %v2011 = vpop.f32.mrb[0].mxu0
    %v2012 = vadd.f32 0.0, %v2011
    %v2013 = vpop.f32.mrb[0].mxu0
    %2014 = vmatprep.mubr.f32.mxu0 0.0
    %2015 = vmatmul.mubr.f32.gmra.mrb[0].mxu0 %v900
    %v2016 = vpop.f32.mrb[0].mxu0
    %v2017 = vadd.f32 0.0, %v2016
    %v2018 = vpop.f32.mrb[0].mxu0
    %2019 = vmatprep.mubr.f32.mxu0 0.0
    %2020 = vmatmul.mubr.f32.gmra.mrb[0].mxu0 %v1468
    %v2021 = vpop.f32.mrb[0].mxu0
    %v2022 = vadd.f32 0.0, %v2021
    %v2023 = vpop.f32.mrb[0].mxu0
    %2024 = vmatprep.mubr.f32.mxu0 0.0
    %2025 = vmatmul.mubr.f32.gmra.mrb[0].mxu0 %v1896
    %v2026 = vpop.f32.mrb[0].mxu0
    %v2027 = vpop.f32.mrb[0].mxu0
    %2028 = vdwg.mxu0
    %v2029 = vadd.f32 %v1883, %v1983
    %v2030 = vadd.f32 %v1884, %v1988
    %v2031 = vadd.f32 %v1885, %v1993
    %v2032 = vadd.f32 %v1886, %v1998
    %v2033 = vadd.f32 %v1887, %v2007
    %v2034 = vadd.f32 %v1888, %v2012
    %v2035 = vadd.f32 %v1889, %v2017
    %v2036 = vadd.f32 %v1890, %v2022
    %v2037 = vrot.slane %v841, 2
    %v2038 = vsel %vm1154, %v1609, %v2037
    %v2039 = vrot.slane %v849, 2
    %v2040 = vsel %vm1154, %v1611, %v2039
    %s2043 = scalar_lea.vmem %s3, 1024
    %v2044 = vld [vmem:[%s2043] sm:$0xff]
    %v2045 = vld [vmem:[%s2043 + $0x8] sm:$0xff]
    %v2046 = vld [vmem:[%s2043 + $0x10] sm:$0xff]
    %v2047 = vld [vmem:[%s2043 + $0x18] sm:$0xff]
    %v2048 = vld [vmem:[%s2043 + $0x20] sm:$0xff]
    %v2049 = vld [vmem:[%s2043 + $0x28] sm:$0xff]
    %v2050 = vld [vmem:[%s2043 + $0x30] sm:$0xff]
    %v2051 = vld [vmem:[%s2043 + $0x38] sm:$0xff]
    %v2052 = vld [vmem:[%s2043 + $0x40] sm:$0xff]
    %v2053 = vld [vmem:[%s2043 + $0x48] sm:$0xff]
    %v2054 = vld [vmem:[%s2043 + $0x50] sm:$0xff]
    %v2055 = vld [vmem:[%s2043 + $0x58] sm:$0xff]
    %v2056 = vld [vmem:[%s2043 + $0x60] sm:$0xff]
    %v2057 = vld [vmem:[%s2043 + $0x68] sm:$0xff]
    %v2058 = vld [vmem:[%s2043 + $0x70] sm:$0xff]
    %v2059 = vld [vmem:[%s2043 + $0x78] sm:$0xff]
    %2060 = vmatprep.subr.mxu0 0.0
    %2061 = vmatpush1.msra.mxu0 %v2044
    %2062 = vmatprep.subr.mxu0 0.0
    %2063 = vmatpush1.msra.mxu0 %v2045
    %2064 = vmatprep.subr.mxu0 0.0
    %2065 = vmatpush1.msra.mxu0 %v2046
    %2066 = vmatprep.subr.mxu0 0.0
    %2067 = vmatpush1.msra.mxu0 %v2047
    %2068 = vmatprep.subr.mxu0 0.0
    %2069 = vmatpush1.msra.mxu0 %v2048
    %2070 = vmatprep.subr.mxu0 0.0
    %2071 = vmatpush1.msra.mxu0 %v2049
    %2072 = vmatprep.subr.mxu0 0.0
    %2073 = vmatpush1.msra.mxu0 %v2050
    %2074 = vmatprep.subr.mxu0 0.0
    %2075 = vmatpush1.msra.mxu0 %v2051
    %2076 = vmatprep.subr.mxu0 0.0
    %2077 = vmatpush1.msra.mxu0 %v2052
    %2078 = vmatprep.subr.mxu0 0.0
    %2079 = vmatpush1.msra.mxu0 %v2053
    %2080 = vmatprep.subr.mxu0 0.0
    %2081 = vmatpush1.msra.mxu0 %v2054
    %2082 = vmatprep.subr.mxu0 0.0
    %2083 = vmatpush1.msra.mxu0 %v2055
    %2084 = vmatprep.subr.mxu0 0.0
    %2085 = vmatpush1.msra.mxu0 %v2056
    %2086 = vmatprep.subr.mxu0 0.0
    %2087 = vmatpush1.msra.mxu0 %v2057
    %2088 = vmatprep.subr.mxu0 0.0
    %2089 = vmatpush1.msra.mxu0 %v2058
    %2090 = vmatprep.subr.mxu0 0.0
    %2091 = vmatpush1.msra.mxu0 %v2059
    %2092 = vmatprep.subr.mxu0 0.0
    %2093 = vmatpush1.msra.mxu0 0.0
    %2094 = vmatprep.subr.mxu0 0.0
    %2095 = vmatpush1.msra.mxu0 0.0
    %2096 = vmatprep.subr.mxu0 0.0
    %2097 = vmatpush1.msra.mxu0 0.0
    %2098 = vmatprep.subr.mxu0 0.0
    %2099 = vmatpush1.msra.mxu0 0.0
    %2100 = vmatprep.subr.mxu0 0.0
    %2101 = vmatpush1.msra.mxu0 0.0
    %2102 = vmatprep.subr.mxu0 0.0
    %2103 = vmatpush1.msra.mxu0 0.0
    %2104 = vmatprep.subr.mxu0 0.0
    %2105 = vmatpush1.msra.mxu0 0.0
    %2106 = vmatprep.subr.mxu0 0.0
    %2107 = vmatpush1.msra.mxu0 0.0
    %2108 = vmatprep.subr.mxu0 0.0
    %2109 = vmatpush1.msra.mxu0 0.0
    %2110 = vmatprep.subr.mxu0 0.0
    %2111 = vmatpush1.msra.mxu0 0.0
    %2112 = vmatprep.subr.mxu0 0.0
    %2113 = vmatpush1.msra.mxu0 0.0
    %2114 = vmatprep.subr.mxu0 0.0
    %2115 = vmatpush1.msra.mxu0 0.0
    %2116 = vmatprep.subr.mxu0 0.0
    %2117 = vmatpush1.msra.mxu0 0.0
    %2118 = vmatprep.subr.mxu0 0.0
    %2119 = vmatpush1.msra.mxu0 0.0
    %2120 = vmatprep.subr.mxu0 0.0
    %2121 = vmatpush1.msra.mxu0 0.0
    %2122 = vmatprep.subr.mxu0 0.0
    %2123 = vmatpush1.msra.mxu0 0.0
    %2124 = vmatprep.mubr.f32.mxu0 0.0
    %2125 = vmatmul.mubr.f32.gmra.mrb[0].mxu0 %v1161
    %v2126 = vpop.f32.mrb[0].mxu0
    %v2127 = vadd.f32 0.0, %v2126
    %v2128 = vpop.f32.mrb[0].mxu0
    %2129 = vmatprep.mubr.f32.mxu0 0.0
    %2130 = vmatmul.mubr.f32.gmra.mrb[0].mxu0 %v1163
    %v2131 = vpop.f32.mrb[0].mxu0
    %v2132 = vadd.f32 0.0, %v2131
    %v2133 = vpop.f32.mrb[0].mxu0
    %2134 = vmatprep.mubr.f32.mxu0 0.0
    %2135 = vmatmul.mubr.f32.gmra.mrb[0].mxu0 %v1165
    %v2136 = vpop.f32.mrb[0].mxu0
    %v2137 = vadd.f32 0.0, %v2136
    %v2138 = vpop.f32.mrb[0].mxu0
    %2139 = vmatprep.mubr.f32.mxu0 0.0
    %2140 = vmatmul.mubr.f32.gmra.mrb[0].mxu0 %v1610
    %v2141 = vpop.f32.mrb[0].mxu0
    %v2142 = vadd.f32 0.0, %v2141
    %v2143 = vpop.f32.mrb[0].mxu0
    %2144 = vmatprep.mubr.f32.mxu0 0.0
    %2145 = vmatmul.mubr.f32.gmra.mrb[0].mxu0 %v2038
    %v2146 = vpop.f32.mrb[0].mxu0
    %v2147 = vpop.f32.mrb[0].mxu0
    %2148 = vmatprep.mubr.f32.mxu0 0.0
    %2149 = vmatmul.mubr.f32.gmra.mrb[0].mxu0 %v1172
    %v2150 = vpop.f32.mrb[0].mxu0
    %v2151 = vadd.f32 0.0, %v2150
    %v2152 = vpop.f32.mrb[0].mxu0
    %2153 = vmatprep.mubr.f32.mxu0 0.0
    %2154 = vmatmul.mubr.f32.gmra.mrb[0].mxu0 %v1174
    %v2155 = vpop.f32.mrb[0].mxu0
    %v2156 = vadd.f32 0.0, %v2155
    %v2157 = vpop.f32.mrb[0].mxu0
    %2158 = vmatprep.mubr.f32.mxu0 0.0
    %2159 = vmatmul.mubr.f32.gmra.mrb[0].mxu0 %v1176
    %v2160 = vpop.f32.mrb[0].mxu0
    %v2161 = vadd.f32 0.0, %v2160
    %v2162 = vpop.f32.mrb[0].mxu0
    %2163 = vmatprep.mubr.f32.mxu0 0.0
    %2164 = vmatmul.mubr.f32.gmra.mrb[0].mxu0 %v1612
    %v2165 = vpop.f32.mrb[0].mxu0
    %v2166 = vadd.f32 0.0, %v2165
    %v2167 = vpop.f32.mrb[0].mxu0
    %2168 = vmatprep.mubr.f32.mxu0 0.0
    %2169 = vmatmul.mubr.f32.gmra.mrb[0].mxu0 %v2040
    %v2170 = vpop.f32.mrb[0].mxu0
    %v2171 = vpop.f32.mrb[0].mxu0
    %2172 = vdwg.mxu0
    %v2173 = vadd.f32 %v2029, %v2127
    %v2174 = vadd.f32 %v2030, %v2132
    %v2175 = vadd.f32 %v2031, %v2137
    %v2176 = vadd.f32 %v2032, %v2142
    %v2177 = vadd.f32 %v2033, %v2151
    %v2178 = vadd.f32 %v2034, %v2156
    %v2179 = vadd.f32 %v2035, %v2161
    %v2180 = vadd.f32 %v2036, %v2166
    %v2181 = vld [vmem:[%s4] sm:$0x1]
    %v2183 = vlaneseq
    %v2184 = vshrl.u32 %v2183, 7
    %v2185 = vsub.s32 0, %v2184
    %v2186 = vrot.slane %v2181, %v2185
    %v2188 = vadd.f32 %v2173, %v2186
    %v2189 = vadd.f32 %v2174, %v2186
    %v2190 = vadd.f32 %v2175, %v2186
    %v2191 = vadd.f32 %v2176, %v2186
    %v2192 = vadd.f32 %v2177, %v2186
    %v2193 = vadd.f32 %v2178, %v2186
    %v2194 = vadd.f32 %v2179, %v2186
    %v2195 = vadd.f32 %v2180, %v2186
    %v2196 = vmax.f32 %v2188, 0.0
    %v2197 = vmax.f32 %v2189, 0.0
    %v2198 = vmax.f32 %v2190, 0.0
    %v2199 = vmax.f32 %v2191, 0.0
    %v2200 = vmax.f32 %v2192, 0.0
    %v2201 = vmax.f32 %v2193, 0.0
    %v2202 = vmax.f32 %v2194, 0.0
    %v2203 = vmax.f32 %v2195, 0.0
    %v2204 = vmax.f32 %v2196, %v2197
    %v2205 = vmax.f32 %v2198, %v2199
    %v2206 = vmax.f32 %v2200, %v2201
    %v2207 = vmax.f32 %v2202, %v2203
    %2208 = vst [vmem:[#allocation4] sm:$0xff] %v2204
    %2209 = vst [vmem:[#allocation4 + $0x8] sm:$0xff] %v2205
    %2210 = vst [vmem:[#allocation4 + $0x10] sm:$0xff] %v2206
    %2211 = vst [vmem:[#allocation4 + $0x18] sm:$0xff] %v2207
    %v2212 = vld [vmem:[#allocation4] ss:$16 sm:$0x3]
    %s2213 = scalar_lea.vmem [#allocation4], 1
    %v2214 = vld [vmem:[%s2213] ss:$16 sm:$0x3]
    %v2215 = vmax.f32 %v2212, %v2214
    %s2216 = scalar_lea.vmem [#allocation4], 2
    %v2217 = vld [vmem:[%s2216] ss:$16 sm:$0x3]
    %s2218 = scalar_lea.vmem [#allocation4], 3
    %v2219 = vld [vmem:[%s2218] ss:$16 sm:$0x3]
    %v2220 = vmax.f32 %v2217, %v2219
    %s2221 = scalar_lea.vmem [#allocation4], 8
    %v2222 = vld [vmem:[%s2221] ss:$16 sm:$0x3]
    %s2223 = scalar_lea.vmem [#allocation4], 9
    %v2224 = vld [vmem:[%s2223] ss:$16 sm:$0x3]
    %v2225 = vmax.f32 %v2222, %v2224
    %s2226 = scalar_lea.vmem [#allocation4], 10
    %v2227 = vld [vmem:[%s2226] ss:$16 sm:$0x3]
    %s2228 = scalar_lea.vmem [#allocation4], 11
    %v2229 = vld [vmem:[%s2228] ss:$16 sm:$0x3]
    %v2230 = vmax.f32 %v2227, %v2229
    %v2231 = vld [vmem:[%s5] sm:$0xff]
    %v2232 = vld [vmem:[%s5 + $0x8] sm:$0xff]
    %v2233 = vld [vmem:[%s5 + $0x10] sm:$0xff]
    %v2234 = vld [vmem:[%s5 + $0x18] sm:$0xff]
    %v2235 = vld [vmem:[%s5 + $0x20] sm:$0xff]
    %v2236 = vld [vmem:[%s5 + $0x28] sm:$0xff]
    %v2237 = vld [vmem:[%s5 + $0x30] sm:$0xff]
    %v2238 = vld [vmem:[%s5 + $0x38] sm:$0xff]
    %v2239 = vld [vmem:[%s5 + $0x40] sm:$0xff]
    %v2240 = vld [vmem:[%s5 + $0x48] sm:$0xff]
    %v2241 = vld [vmem:[%s5 + $0x50] sm:$0xff]
    %v2242 = vld [vmem:[%s5 + $0x58] sm:$0xff]
    %v2243 = vld [vmem:[%s5 + $0x60] sm:$0xff]
    %v2244 = vld [vmem:[%s5 + $0x68] sm:$0xff]
    %v2245 = vld [vmem:[%s5 + $0x70] sm:$0xff]
    %v2246 = vld [vmem:[%s5 + $0x78] sm:$0xff]
    %v2247 = vld [vmem:[%s5 + $0x80] sm:$0xff]
    %v2248 = vld [vmem:[%s5 + $0x88] sm:$0xff]
    %v2249 = vld [vmem:[%s5 + $0x90] sm:$0xff]
    %v2250 = vld [vmem:[%s5 + $0x98] sm:$0xff]
    %v2251 = vld [vmem:[%s5 + $0xa0] sm:$0xff]
    %v2252 = vld [vmem:[%s5 + $0xa8] sm:$0xff]
    %v2253 = vld [vmem:[%s5 + $0xb0] sm:$0xff]
    %v2254 = vld [vmem:[%s5 + $0xb8] sm:$0xff]
    %v2255 = vld [vmem:[%s5 + $0xc0] sm:$0xff]
    %v2256 = vld [vmem:[%s5 + $0xc8] sm:$0xff]
    %v2257 = vld [vmem:[%s5 + $0xd0] sm:$0xff]
    %v2258 = vld [vmem:[%s5 + $0xd8] sm:$0xff]
    %v2259 = vld [vmem:[%s5 + $0xe0] sm:$0xff]
    %v2260 = vld [vmem:[%s5 + $0xe8] sm:$0xff]
    %v2261 = vld [vmem:[%s5 + $0xf0] sm:$0xff]
    %v2262 = vld [vmem:[%s5 + $0xf8] sm:$0xff]
    %v2263 = vld [vmem:[%s5 + $0x100] sm:$0xff]
    %v2264 = vld [vmem:[%s5 + $0x108] sm:$0xff]
    %v2265 = vld [vmem:[%s5 + $0x110] sm:$0xff]
    %v2266 = vld [vmem:[%s5 + $0x118] sm:$0xff]
    %v2267 = vld [vmem:[%s5 + $0x120] sm:$0xff]
    %v2268 = vld [vmem:[%s5 + $0x128] sm:$0xff]
    %v2269 = vld [vmem:[%s5 + $0x130] sm:$0xff]
    %v2270 = vld [vmem:[%s5 + $0x138] sm:$0xff]
    %v2271 = vld [vmem:[%s5 + $0x140] sm:$0xff]
    %v2272 = vld [vmem:[%s5 + $0x148] sm:$0xff]
    %v2273 = vld [vmem:[%s5 + $0x150] sm:$0xff]
    %v2274 = vld [vmem:[%s5 + $0x158] sm:$0xff]
    %v2275 = vld [vmem:[%s5 + $0x160] sm:$0xff]
    %v2276 = vld [vmem:[%s5 + $0x168] sm:$0xff]
    %v2277 = vld [vmem:[%s5 + $0x170] sm:$0xff]
    %v2278 = vld [vmem:[%s5 + $0x178] sm:$0xff]
    %v2279 = vld [vmem:[%s5 + $0x180] sm:$0xff]
    %v2280 = vld [vmem:[%s5 + $0x188] sm:$0xff]
    %v2281 = vld [vmem:[%s5 + $0x190] sm:$0xff]
    %v2282 = vld [vmem:[%s5 + $0x198] sm:$0xff]
    %v2283 = vld [vmem:[%s5 + $0x1a0] sm:$0xff]
    %v2284 = vld [vmem:[%s5 + $0x1a8] sm:$0xff]
    %v2285 = vld [vmem:[%s5 + $0x1b0] sm:$0xff]
    %v2286 = vld [vmem:[%s5 + $0x1b8] sm:$0xff]
    %v2287 = vld [vmem:[%s5 + $0x1c0] sm:$0xff]
    %v2288 = vld [vmem:[%s5 + $0x1c8] sm:$0xff]
    %v2289 = vld [vmem:[%s5 + $0x1d0] sm:$0xff]
    %v2290 = vld [vmem:[%s5 + $0x1d8] sm:$0xff]
    %v2291 = vld [vmem:[%s5 + $0x1e0] sm:$0xff]
    %v2292 = vld [vmem:[%s5 + $0x1e8] sm:$0xff]
    %v2293 = vld [vmem:[%s5 + $0x1f0] sm:$0xff]
    %v2294 = vld [vmem:[%s5 + $0x1f8] sm:$0xff]
    %v2295 = vld [vmem:[%s6] sm:$0x1]
    %v2297 = vlaneseq
    %v2298 = vshrl.u32 %v2297, 7
    %v2299 = vsub.s32 0, %v2298
    %v2300 = vrot.slane %v2295, %v2299
    %2302 = vmatprep.subr.mxu0 0.0
    %2303 = vmatpush1.msra.mxu0 %v2231
    %2304 = vmatprep.subr.mxu0 0.0
    %2305 = vmatpush1.msra.mxu0 %v2232
    %2306 = vmatprep.subr.mxu0 0.0
    %2307 = vmatpush1.msra.mxu0 %v2233
    %2308 = vmatprep.subr.mxu0 0.0
    %2309 = vmatpush1.msra.mxu0 %v2234
    %2310 = vmatprep.subr.mxu0 0.0
    %2311 = vmatpush1.msra.mxu0 %v2235
    %2312 = vmatprep.subr.mxu0 0.0
    %2313 = vmatpush1.msra.mxu0 %v2236
    %2314 = vmatprep.subr.mxu0 0.0
    %2315 = vmatpush1.msra.mxu0 %v2237
    %2316 = vmatprep.subr.mxu0 0.0
    %2317 = vmatpush1.msra.mxu0 %v2238
    %2318 = vmatprep.subr.mxu0 0.0
    %2319 = vmatpush1.msra.mxu0 %v2239
    %2320 = vmatprep.subr.mxu0 0.0
    %2321 = vmatpush1.msra.mxu0 %v2240
    %2322 = vmatprep.subr.mxu0 0.0
    %2323 = vmatpush1.msra.mxu0 %v2241
    %2324 = vmatprep.subr.mxu0 0.0
    %2325 = vmatpush1.msra.mxu0 %v2242
    %2326 = vmatprep.subr.mxu0 0.0
    %2327 = vmatpush1.msra.mxu0 %v2243
    %2328 = vmatprep.subr.mxu0 0.0
    %2329 = vmatpush1.msra.mxu0 %v2244
    %2330 = vmatprep.subr.mxu0 0.0
    %2331 = vmatpush1.msra.mxu0 %v2245
    %2332 = vmatprep.subr.mxu0 0.0
    %2333 = vmatpush1.msra.mxu0 %v2246
    %2334 = vmatprep.subr.mxu0 0.0
    %2335 = vmatpush1.msra.mxu0 %v2247
    %2336 = vmatprep.subr.mxu0 0.0
    %2337 = vmatpush1.msra.mxu0 %v2248
    %2338 = vmatprep.subr.mxu0 0.0
    %2339 = vmatpush1.msra.mxu0 %v2249
    %2340 = vmatprep.subr.mxu0 0.0
    %2341 = vmatpush1.msra.mxu0 %v2250
    %2342 = vmatprep.subr.mxu0 0.0
    %2343 = vmatpush1.msra.mxu0 %v2251
    %2344 = vmatprep.subr.mxu0 0.0
    %2345 = vmatpush1.msra.mxu0 %v2252
    %2346 = vmatprep.subr.mxu0 0.0
    %2347 = vmatpush1.msra.mxu0 %v2253
    %2348 = vmatprep.subr.mxu0 0.0
    %2349 = vmatpush1.msra.mxu0 %v2254
    %2350 = vmatprep.subr.mxu0 0.0
    %2351 = vmatpush1.msra.mxu0 %v2255
    %2352 = vmatprep.subr.mxu0 0.0
    %2353 = vmatpush1.msra.mxu0 %v2256
    %2354 = vmatprep.subr.mxu0 0.0
    %2355 = vmatpush1.msra.mxu0 %v2257
    %2356 = vmatprep.subr.mxu0 0.0
    %2357 = vmatpush1.msra.mxu0 %v2258
    %2358 = vmatprep.subr.mxu0 0.0
    %2359 = vmatpush1.msra.mxu0 %v2259
    %2360 = vmatprep.subr.mxu0 0.0
    %2361 = vmatpush1.msra.mxu0 %v2260
    %2362 = vmatprep.subr.mxu0 0.0
    %2363 = vmatpush1.msra.mxu0 %v2261
    %2364 = vmatprep.subr.mxu0 0.0
    %2365 = vmatpush1.msra.mxu0 %v2262
    %2366 = vmatprep.mubr.f32.mxu0 %v2220
    %2367 = vmatmul.mubr.f32.gmra.mrb[0].mxu0 %v2215
    %v2368 = vpop.f32.mrb[0].mxu0
    %v2369 = vadd.f32 %v2300, %v2368
    %v2370 = vpop.f32.mrb[0].mxu0
    %2371 = vdwg.mxu0
    %2372 = vmatprep.subr.mxu0 0.0
    %2373 = vmatpush1.msra.mxu0 %v2263
    %2374 = vmatprep.subr.mxu0 0.0
    %2375 = vmatpush1.msra.mxu0 %v2264
    %2376 = vmatprep.subr.mxu0 0.0
    %2377 = vmatpush1.msra.mxu0 %v2265
    %2378 = vmatprep.subr.mxu0 0.0
    %2379 = vmatpush1.msra.mxu0 %v2266
    %2380 = vmatprep.subr.mxu0 0.0
    %2381 = vmatpush1.msra.mxu0 %v2267
    %2382 = vmatprep.subr.mxu0 0.0
    %2383 = vmatpush1.msra.mxu0 %v2268
    %2384 = vmatprep.subr.mxu0 0.0
    %2385 = vmatpush1.msra.mxu0 %v2269
    %2386 = vmatprep.subr.mxu0 0.0
    %2387 = vmatpush1.msra.mxu0 %v2270
    %2388 = vmatprep.subr.mxu0 0.0
    %2389 = vmatpush1.msra.mxu0 %v2271
    %2390 = vmatprep.subr.mxu0 0.0
    %2391 = vmatpush1.msra.mxu0 %v2272
    %2392 = vmatprep.subr.mxu0 0.0
    %2393 = vmatpush1.msra.mxu0 %v2273
    %2394 = vmatprep.subr.mxu0 0.0
    %2395 = vmatpush1.msra.mxu0 %v2274
    %2396 = vmatprep.subr.mxu0 0.0
    %2397 = vmatpush1.msra.mxu0 %v2275
    %2398 = vmatprep.subr.mxu0 0.0
    %2399 = vmatpush1.msra.mxu0 %v2276
    %2400 = vmatprep.subr.mxu0 0.0
    %2401 = vmatpush1.msra.mxu0 %v2277
    %2402 = vmatprep.subr.mxu0 0.0
    %2403 = vmatpush1.msra.mxu0 %v2278
    %2404 = vmatprep.subr.mxu0 0.0
    %2405 = vmatpush1.msra.mxu0 %v2279
    %2406 = vmatprep.subr.mxu0 0.0
    %2407 = vmatpush1.msra.mxu0 %v2280
    %2408 = vmatprep.subr.mxu0 0.0
    %2409 = vmatpush1.msra.mxu0 %v2281
    %2410 = vmatprep.subr.mxu0 0.0
    %2411 = vmatpush1.msra.mxu0 %v2282
    %2412 = vmatprep.subr.mxu0 0.0
    %2413 = vmatpush1.msra.mxu0 %v2283
    %2414 = vmatprep.subr.mxu0 0.0
    %2415 = vmatpush1.msra.mxu0 %v2284
    %2416 = vmatprep.subr.mxu0 0.0
    %2417 = vmatpush1.msra.mxu0 %v2285
    %2418 = vmatprep.subr.mxu0 0.0
    %2419 = vmatpush1.msra.mxu0 %v2286
    %2420 = vmatprep.subr.mxu0 0.0
    %2421 = vmatpush1.msra.mxu0 %v2287
    %2422 = vmatprep.subr.mxu0 0.0
    %2423 = vmatpush1.msra.mxu0 %v2288
    %2424 = vmatprep.subr.mxu0 0.0
    %2425 = vmatpush1.msra.mxu0 %v2289
    %2426 = vmatprep.subr.mxu0 0.0
    %2427 = vmatpush1.msra.mxu0 %v2290
    %2428 = vmatprep.subr.mxu0 0.0
    %2429 = vmatpush1.msra.mxu0 %v2291
    %2430 = vmatprep.subr.mxu0 0.0
    %2431 = vmatpush1.msra.mxu0 %v2292
    %2432 = vmatprep.subr.mxu0 0.0
    %2433 = vmatpush1.msra.mxu0 %v2293
    %2434 = vmatprep.subr.mxu0 0.0
    %2435 = vmatpush1.msra.mxu0 %v2294
    %2436 = vmatprep.mubr.f32.mxu0 %v2230
    %2437 = vmatmul.mubr.f32.gmra.mrb[0].mxu0 %v2225
    %v2438 = vpop.f32.mrb[0].mxu0
    %v2439 = vadd.f32 %v2369, %v2438
    %v2440 = vpop.f32.mrb[0].mxu0
    %2441 = vdwg.mxu0
    %v2442 = vmax.f32 %v2439, 0.0
    %v2443 = vld [vmem:[%s7] sm:$0xff]
    %v2444 = vld [vmem:[%s7 + $0x8] sm:$0xff]
    %v2445 = vld [vmem:[%s7 + $0x10] sm:$0xff]
    %v2446 = vld [vmem:[%s7 + $0x18] sm:$0xff]
    %v2447 = vld [vmem:[%s7 + $0x20] sm:$0xff]
    %v2448 = vld [vmem:[%s7 + $0x28] sm:$0xff]
    %v2449 = vld [vmem:[%s7 + $0x30] sm:$0xff]
    %v2450 = vld [vmem:[%s7 + $0x38] sm:$0xff]
    %v2451 = vld [vmem:[%s7 + $0x40] sm:$0xff]
    %v2452 = vld [vmem:[%s7 + $0x48] sm:$0xff]
    %v2453 = vld [vmem:[%s7 + $0x50] sm:$0xff]
    %v2454 = vld [vmem:[%s7 + $0x58] sm:$0xff]
    %v2455 = vld [vmem:[%s7 + $0x60] sm:$0xff]
    %v2456 = vld [vmem:[%s7 + $0x68] sm:$0xff]
    %v2457 = vld [vmem:[%s7 + $0x70] sm:$0xff]
    %v2458 = vld [vmem:[%s7 + $0x78] sm:$0xff]
    %v2459 = vld [vmem:[%s8] sm:$0x1]
    %v2461 = vlaneseq
    %v2462 = vshrl.u32 %v2461, 7
    %v2463 = vsub.s32 0, %v2462
    %v2464 = vrot.slane %v2459, %v2463
    %2466 = vmatprep.subr.mxu0 0.0
    %2467 = vmatpush1.msra.mxu0 %v2443
    %2468 = vmatprep.subr.mxu0 0.0
    %2469 = vmatpush1.msra.mxu0 %v2444
    %2470 = vmatprep.subr.mxu0 0.0
    %2471 = vmatpush1.msra.mxu0 %v2445
    %2472 = vmatprep.subr.mxu0 0.0
    %2473 = vmatpush1.msra.mxu0 %v2446
    %2474 = vmatprep.subr.mxu0 0.0
    %2475 = vmatpush1.msra.mxu0 %v2447
    %2476 = vmatprep.subr.mxu0 0.0
    %2477 = vmatpush1.msra.mxu0 %v2448
    %2478 = vmatprep.subr.mxu0 0.0
    %2479 = vmatpush1.msra.mxu0 %v2449
    %2480 = vmatprep.subr.mxu0 0.0
    %2481 = vmatpush1.msra.mxu0 %v2450
    %2482 = vmatprep.subr.mxu0 0.0
    %2483 = vmatpush1.msra.mxu0 %v2451
    %2484 = vmatprep.subr.mxu0 0.0
    %2485 = vmatpush1.msra.mxu0 %v2452
    %2486 = vmatprep.subr.mxu0 0.0
    %2487 = vmatpush1.msra.mxu0 %v2453
    %2488 = vmatprep.subr.mxu0 0.0
    %2489 = vmatpush1.msra.mxu0 %v2454
    %2490 = vmatprep.subr.mxu0 0.0
    %2491 = vmatpush1.msra.mxu0 %v2455
    %2492 = vmatprep.subr.mxu0 0.0
    %2493 = vmatpush1.msra.mxu0 %v2456
    %2494 = vmatprep.subr.mxu0 0.0
    %2495 = vmatpush1.msra.mxu0 %v2457
    %2496 = vmatprep.subr.mxu0 0.0
    %2497 = vmatpush1.msra.mxu0 %v2458
    %2498 = vmatprep.subr.mxu0 0.0
    %2499 = vmatpush1.msra.mxu0 0.0
    %2500 = vmatprep.subr.mxu0 0.0
    %2501 = vmatpush1.msra.mxu0 0.0
    %2502 = vmatprep.subr.mxu0 0.0
    %2503 = vmatpush1.msra.mxu0 0.0
    %2504 = vmatprep.subr.mxu0 0.0
    %2505 = vmatpush1.msra.mxu0 0.0
    %2506 = vmatprep.subr.mxu0 0.0
    %2507 = vmatpush1.msra.mxu0 0.0
    %2508 = vmatprep.subr.mxu0 0.0
    %2509 = vmatpush1.msra.mxu0 0.0
    %2510 = vmatprep.subr.mxu0 0.0
    %2511 = vmatpush1.msra.mxu0 0.0
    %2512 = vmatprep.subr.mxu0 0.0
    %2513 = vmatpush1.msra.mxu0 0.0
    %2514 = vmatprep.subr.mxu0 0.0
    %2515 = vmatpush1.msra.mxu0 0.0
    %2516 = vmatprep.subr.mxu0 0.0
    %2517 = vmatpush1.msra.mxu0 0.0
    %2518 = vmatprep.subr.mxu0 0.0
    %2519 = vmatpush1.msra.mxu0 0.0
    %2520 = vmatprep.subr.mxu0 0.0
    %2521 = vmatpush1.msra.mxu0 0.0
    %2522 = vmatprep.subr.mxu0 0.0
    %2523 = vmatpush1.msra.mxu0 0.0
    %2524 = vmatprep.subr.mxu0 0.0
    %2525 = vmatpush1.msra.mxu0 0.0
    %2526 = vmatprep.subr.mxu0 0.0
    %2527 = vmatpush1.msra.mxu0 0.0
    %2528 = vmatprep.subr.mxu0 0.0
    %2529 = vmatpush1.msra.mxu0 0.0
    %2530 = vmatprep.mubr.f32.mxu0 0.0
    %2531 = vmatmul.mubr.f32.gmra.mrb[0].mxu0 %v2442
    %v2532 = vpop.f32.mrb[0].mxu0
    %v2533 = vadd.f32 %v2464, %v2532
    %v2534 = vpop.f32.mrb[0].mxu0
    %2535 = vdwg.mxu0
    %2536 = vst [vmem:[#allocation5] sm:$0x3] %v2533
    // Predicated region
    $region42: #{forward.1} parent=1 // pred_check
      _
    $region43: #{forward.1} parent=1 // pred_check_branch
      %2538 = sbr.rel (0) target = $region45
    $region44: #{forward.1} parent=1 // pred_region
      %s2540 = ssub.s32 32, 32
      %2541 = vsyncadd [#allocation6], %s2540
      %s2543 = sshll.u32 [#allocation5], 4
      %s2544 = int_to_ptr.vmem [resolvable:$true] %s2543
      %2546 = dma.vmem_to_hbm [thread:$0]  %s2544, 32, %s9, [#allocation6]
    $region45: #{forward.1} parent=1 // pred_fallthru
      _
    // Predicated region
    $region46: #{forward.1} parent=1 // pred_check
      _
    $region47: #{forward.1} parent=1 // pred_check_branch
      %2548 = sbr.rel (0) target = $region49
    $region48: #{forward.1} parent=1 // pred_region
      %2549 = dma.done [#allocation6], 32
    $region49: #{forward.1} parent=1 // pred_fallthru
      _
    %2550 = vsyncpa [#allocation6], 1

</llo_original>
